<compile_context>
chip_gen: v5e
topology: v5e:2x2
jax: 0.10.0
libtpu: 0.0.40
codegen_flags: <defaults>
</compile_context>

<pallas_src>
import jax
import jax.numpy as jnp
from jax.experimental import pallas as pl
from jax.experimental.pallas import tpu as pltpu

D_MODEL = 64
N_CXT = 97
FLAT = N_CXT * D_MODEL  # 6208


def _round_up(n, m):
    return ((n + m - 1) // m) * m


def _erf(z):
    # Abramowitz & Stegun 7.1.26 rational approximation, |abs err| <= 1.5e-7.
    # Built only from exp/abs/mul/add/div/where (all Mosaic-supported).
    a1, a2, a3, a4, a5 = (0.254829592, -0.284496736, 1.421413741,
                          -1.453152027, 1.061405429)
    p = 0.3275911
    za = jnp.abs(z)
    t = 1.0 / (1.0 + p * za)
    poly = t * (a1 + t * (a2 + t * (a3 + t * (a4 + t * a5))))
    e = 1.0 - poly * jnp.exp(-za * za)
    return jnp.where(z < 0.0, -e, e)


def _gelu_erf(x):
    # Exact (erf-form) GELU, matching torch.nn.GELU() default numerics.
    return 0.5 * x * (1.0 + _erf(x * 0.7071067811865476))


def _regressor_head_kernel(x_ref, w1_ref, b1_ref, w2_ref, b2_ref, o_ref):
    # x tile arrives as f32 from HBM (single 4 B/elem pass); cast to bf16 on the
    # VPU so the MXU runs its native bf16 path with f32 accumulation.
    x_bf = x_ref[...].astype(jnp.bfloat16)
    h = jnp.dot(x_bf, w1_ref[...], preferred_element_type=jnp.float32)  # (tb, 64) f32
    h = h + b1_ref[...]                                                 # (1, 64) broadcast
    h = _gelu_erf(h)
    # Linear(64 -> 1): VPU multiply + lane reduction (avoids an N=1 MXU matmul).
    o = jnp.sum(h * w2_ref[...], axis=-1, keepdims=True)               # (tb, 1) f32
    o_ref[...] = o + b2_ref[0, 0]                                       # SMEM scalar bias


def polar_area_regressor(x, params, *, tile_b=512):
    """x: (B, N_CXT, D_MODEL) float32 -> (B, 1) float32."""
    B = x.shape[0]
    w1, b1, w2, b2 = params

    x2d = x.reshape(B, FLAT)                               # f32, no dtype-conversion pass
    w1 = w1.astype(jnp.bfloat16)                           # (FLAT, D_MODEL), tiny, resident
    b1 = b1.reshape(1, D_MODEL).astype(jnp.float32)
    w2 = w2.reshape(1, D_MODEL).astype(jnp.float32)
    b2 = b2.reshape(1, 1).astype(jnp.float32)

    # Batch tile: full extent if B is small, else a multiple of 8 (f32 sublanes).
    if B <= tile_b:
        tb = B
    else:
        tb = _round_up(min(tile_b, B), 8)
    grid = (pl.cdiv(B, tb),)                               # ragged last block, no padding

    # VMEM: 2 f32 x tiles (double buffer) + bf16 w1 buffers + small vectors + slack,
    # capped below the physical VMEM of the current chip (64 MiB on v7x).
    vmem_needed = (2 * tb * FLAT * 4
                   + 2 * FLAT * D_MODEL * 2
                   + 8 * tb * 4
                   + (4 << 20))
    try:
        phys_vmem = int(pltpu.get_tpu_info().vmem_capacity_bytes)
    except Exception:
        phys_vmem = 64 << 20                               # conservative (v7x) fallback
    vmem_limit = int(min(max(vmem_needed, 32 << 20), phys_vmem - (8 << 20)))

    out = pl.pallas_call(
        _regressor_head_kernel,
        out_shape=jax.ShapeDtypeStruct((B, 1), jnp.float32),
        grid=grid,
        in_specs=[
            pl.BlockSpec((tb, FLAT), lambda i: (i, 0)),             # x tile (streamed)
            pl.BlockSpec((FLAT, D_MODEL), lambda i: (0, 0)),        # w1 (resident)
            pl.BlockSpec((1, D_MODEL), lambda i: (0, 0)),           # b1 (resident)
            pl.BlockSpec((1, D_MODEL), lambda i: (0, 0)),           # w2 (resident)
            pl.BlockSpec((1, 1), lambda i: (0, 0),
                         memory_space=pltpu.MemorySpace.SMEM),      # b2 scalar
        ],
        out_specs=pl.BlockSpec((tb, 1), lambda i: (i, 0)),
        compiler_params=pltpu.CompilerParams(
            dimension_semantics=("parallel",),
            vmem_limit_bytes=vmem_limit,
        ),
    )(x2d, w1, b1, w2, b2)

    return out


def init_params(key):
    """Deterministic synthetic parameters (PyTorch Linear-style uniform init)."""
    k1, k2, k3, k4 = jax.random.split(key, 4)
    bound1 = 1.0 / jnp.sqrt(FLAT)
    bound2 = 1.0 / jnp.sqrt(D_MODEL)
    w1 = jax.random.uniform(k1, (FLAT, D_MODEL), jnp.float32, -bound1, bound1)
    b1 = jax.random.uniform(k2, (1, D_MODEL), jnp.float32, -bound1, bound1)
    w2 = jax.random.uniform(k3, (1, D_MODEL), jnp.float32, -bound2, bound2)
    b2 = jax.random.uniform(k4, (1, 1), jnp.float32, -bound2, bound2)
    return (w1, b1, w2, b2)


if __name__ == "__main__":
    key = jax.random.PRNGKey(0)
    k_x, k_x2, k_p = jax.random.split(key, 3)

    params = init_params(k_p)
    w1, b1, w2, b2 = params

    def reference(xx):
        x2d = xx.reshape(xx.shape[0], FLAT)
        h = jax.nn.gelu(x2d @ w1 + b1, approximate=False)   # erf GELU (torch default)
        return h @ w2.reshape(D_MODEL, 1) + b2

    # Small primary test: batch=2 (block == full batch extent).
    B = 2
    x = jax.random.normal(k_x, (B, N_CXT, D_MODEL), jnp.float32)
    out = jax.block_until_ready(jax.jit(polar_area_regressor)(x, params))
    ref = reference(x)
    assert out.shape == (B, 1)
    assert jnp.allclose(out, ref, atol=5e-2, rtol=5e-2), (out, ref)

    # Ragged-last-block path (no padding): B not a multiple of the batch tile.
    B2 = 20
    x2 = jax.random.normal(k_x2, (B2, N_CXT, D_MODEL), jnp.float32)
    run_ragged = jax.jit(lambda xx, pp: polar_area_regressor(xx, pp, tile_b=8))
    out2 = jax.block_until_ready(run_ragged(x2, params))
    ref2 = reference(x2)
    assert out2.shape == (B2, 1)
    assert jnp.allclose(out2, ref2, atol=5e-2, rtol=5e-2), (out2, ref2)

    print("KERNEL_OK")
</pallas_src>

<mosaic_0001>
module attributes {stable_mosaic.version = 11 : i64} {
  func.func @_regressor_head_kernel(%arg0: i32, %arg1: memref<2x6208xf32, #tpu.memory_space<vmem>>, %arg2: memref<6208x64xbf16, #tpu.memory_space<vmem>>, %arg3: memref<1x64xf32, #tpu.memory_space<vmem>>, %arg4: memref<1x64xf32, #tpu.memory_space<vmem>>, %arg5: memref<1x1xf32, #tpu.memory_space<smem>>, %arg6: memref<2x1xf32, #tpu.memory_space<vmem>>) attributes {dimension_semantics = [#tpu.dimension_semantics<parallel>], iteration_bounds = array<i64: 1>, scalar_prefetch = 0 : i64, scratch_operands = 0 : i64, tpu.core_type = #tpu.core_type<tc>, window_params = [{transform_indices = @transform_0, window_bounds = array<i64: 2, 6208>}, {pipeline_mode = #tpu.pipeline_mode<synchronous>, transform_indices = @transform_1, window_bounds = array<i64: 6208, 64>}, {pipeline_mode = #tpu.pipeline_mode<synchronous>, transform_indices = @transform_2, window_bounds = array<i64: 1, 64>}, {pipeline_mode = #tpu.pipeline_mode<synchronous>, transform_indices = @transform_3, window_bounds = array<i64: 1, 64>}, {transform_indices = @transform_4, window_bounds = array<i64: 1, 1>}, {transform_indices = @transform_5, window_bounds = array<i64: 2, 1>}]} {
    %c0 = arith.constant 0 : index
    %c0_0 = arith.constant 0 : index
    %0 = vector.load %arg1[%c0, %c0_0] : memref<2x6208xf32, #tpu.memory_space<vmem>>, vector<2x6208xf32>
    %1 = arith.truncf %0 : vector<2x6208xf32> to vector<2x6208xbf16>
    %c0_1 = arith.constant 0 : index
    %c0_2 = arith.constant 0 : index
    %2 = vector.load %arg2[%c0_1, %c0_2] : memref<6208x64xbf16, #tpu.memory_space<vmem>>, vector<6208x64xbf16>
    %cst = arith.constant dense<0.000000e+00> : vector<2x64xf32>
    %3 = tpu.matmul %1, %2, %cst {dimension_numbers = #tpu.dot_dimension_numbers<[1], [0], [0], [1], [0, 0, 1, 1], [], []>} : vector<2x6208xbf16>, vector<6208x64xbf16>, vector<2x64xf32> -> vector<2x64xf32>
    %c0_3 = arith.constant 0 : index
    %c0_4 = arith.constant 0 : index
    %4 = vector.load %arg3[%c0_3, %c0_4] : memref<1x64xf32, #tpu.memory_space<vmem>>, vector<1x64xf32>
    %5 = vector.broadcast %4 : vector<1x64xf32> to vector<2x64xf32>
    %6 = arith.addf %3, %5 : vector<2x64xf32>
    %cst_5 = arith.constant 5.000000e-01 : f32
    %7 = vector.broadcast %cst_5 : f32 to vector<2x64xf32>
    %8 = arith.mulf %7, %6 : vector<2x64xf32>
    %cst_6 = arith.constant 0.707106769 : f32
    %9 = vector.broadcast %cst_6 : f32 to vector<2x64xf32>
    %10 = arith.mulf %6, %9 : vector<2x64xf32>
    %11 = math.absf %10 : vector<2x64xf32>
    %cst_7 = arith.constant 0.327591091 : f32
    %12 = vector.broadcast %cst_7 : f32 to vector<2x64xf32>
    %13 = arith.mulf %12, %11 : vector<2x64xf32>
    %cst_8 = arith.constant 1.000000e+00 : f32
    %14 = vector.broadcast %cst_8 : f32 to vector<2x64xf32>
    %15 = arith.addf %14, %13 : vector<2x64xf32>
    %cst_9 = arith.constant 1.000000e+00 : f32
    %16 = vector.broadcast %cst_9 : f32 to vector<2x64xf32>
    %17 = arith.divf %16, %15 : vector<2x64xf32>
    %cst_10 = arith.constant 1.06140542 : f32
    %18 = vector.broadcast %cst_10 : f32 to vector<2x64xf32>
    %19 = arith.mulf %17, %18 : vector<2x64xf32>
    %cst_11 = arith.constant -1.45315206 : f32
    %20 = vector.broadcast %cst_11 : f32 to vector<2x64xf32>
    %21 = arith.addf %20, %19 : vector<2x64xf32>
    %22 = arith.mulf %17, %21 : vector<2x64xf32>
    %cst_12 = arith.constant 1.42141378 : f32
    %23 = vector.broadcast %cst_12 : f32 to vector<2x64xf32>
    %24 = arith.addf %23, %22 : vector<2x64xf32>
    %25 = arith.mulf %17, %24 : vector<2x64xf32>
    %cst_13 = arith.constant -0.284496725 : f32
    %26 = vector.broadcast %cst_13 : f32 to vector<2x64xf32>
    %27 = arith.addf %26, %25 : vector<2x64xf32>
    %28 = arith.mulf %17, %27 : vector<2x64xf32>
    %cst_14 = arith.constant 0.254829586 : f32
    %29 = vector.broadcast %cst_14 : f32 to vector<2x64xf32>
    %30 = arith.addf %29, %28 : vector<2x64xf32>
    %31 = arith.mulf %17, %30 : vector<2x64xf32>
    %cst_15 = arith.constant 0.000000e+00 : f32
    %32 = vector.broadcast %cst_15 : f32 to vector<2x64xf32>
    %33 = arith.subf %32, %11 : vector<2x64xf32>
    %34 = arith.mulf %33, %11 : vector<2x64xf32>
    %35 = math.exp %34 : vector<2x64xf32>
    %36 = arith.mulf %31, %35 : vector<2x64xf32>
    %cst_16 = arith.constant 1.000000e+00 : f32
    %37 = vector.broadcast %cst_16 : f32 to vector<2x64xf32>
    %38 = arith.subf %37, %36 : vector<2x64xf32>
    %cst_17 = arith.constant 0.000000e+00 : f32
    %39 = vector.broadcast %cst_17 : f32 to vector<2x64xf32>
    %40 = arith.cmpf olt, %10, %39 : vector<2x64xf32>
    %cst_18 = arith.constant 0.000000e+00 : f32
    %41 = vector.broadcast %cst_18 : f32 to vector<2x64xf32>
    %42 = arith.subf %41, %38 : vector<2x64xf32>
    %43 = arith.select %40, %42, %38 : vector<2x64xi1>, vector<2x64xf32>
    %cst_19 = arith.constant 1.000000e+00 : f32
    %44 = vector.broadcast %cst_19 : f32 to vector<2x64xf32>
    %45 = arith.addf %44, %43 : vector<2x64xf32>
    %46 = arith.mulf %8, %45 : vector<2x64xf32>
    %c0_20 = arith.constant 0 : index
    %c0_21 = arith.constant 0 : index
    %47 = vector.load %arg4[%c0_20, %c0_21] : memref<1x64xf32, #tpu.memory_space<vmem>>, vector<1x64xf32>
    %48 = vector.broadcast %47 : vector<1x64xf32> to vector<2x64xf32>
    %49 = arith.mulf %46, %48 : vector<2x64xf32>
    %cst_22 = arith.constant dense<0.000000e+00> : vector<2xf32>
    %50 = vector.multi_reduction <add>, %49, %cst_22 [1] : vector<2x64xf32> to vector<2xf32>
    %51 = vector.shape_cast %50 : vector<2xf32> to vector<2x1xf32>
    %c0_23 = arith.constant 0 : index
    %c0_24 = arith.constant 0 : index
    %52 = memref.load %arg5[%c0_23, %c0_24] : memref<1x1xf32, #tpu.memory_space<smem>>
    %53 = vector.broadcast %52 : f32 to vector<2x1xf32>
    %54 = arith.addf %51, %53 : vector<2x1xf32>
    %c0_25 = arith.constant 0 : index
    %c0_26 = arith.constant 0 : index
    %55 = vector.load %arg6[%c0_25, %c0_26] : memref<2x1xf32, #tpu.memory_space<vmem>>, vector<2x1xf32>
    tpu.vector_store %arg6[%c0_25, %c0_26], %54 {strides = array<i32>} : memref<2x1xf32, #tpu.memory_space<vmem>>, vector<2x1xf32>,
    return
  }
  func.func @transform_0(%arg0: i32) -> (i32, i32) {
    %c0_i32 = arith.constant 0 : i32
    %c0_i32_0 = arith.constant 0 : i32
    return %arg0, %c0_i32 : i32, i32
  }
  func.func @transform_1(%arg0: i32) -> (i32, i32) {
    %c0_i32 = arith.constant 0 : i32
    %c0_i32_0 = arith.constant 0 : i32
    %c0_i32_1 = arith.constant 0 : i32
    return %c0_i32, %c0_i32_0 : i32, i32
  }
  func.func @transform_2(%arg0: i32) -> (i32, i32) {
    %c0_i32 = arith.constant 0 : i32
    %c0_i32_0 = arith.constant 0 : i32
    %c0_i32_1 = arith.constant 0 : i32
    return %c0_i32, %c0_i32_0 : i32, i32
  }
  func.func @transform_3(%arg0: i32) -> (i32, i32) {
    %c0_i32 = arith.constant 0 : i32
    %c0_i32_0 = arith.constant 0 : i32
    %c0_i32_1 = arith.constant 0 : i32
    return %c0_i32, %c0_i32_0 : i32, i32
  }
  func.func @transform_4(%arg0: i32) -> (i32, i32) {
    %c0_i32 = arith.constant 0 : i32
    %c0_i32_0 = arith.constant 0 : i32
    %c0_i32_1 = arith.constant 0 : i32
    return %c0_i32, %c0_i32_0 : i32, i32
  }
  func.func @transform_5(%arg0: i32) -> (i32, i32) {
    %c0_i32 = arith.constant 0 : i32
    %c0_i32_0 = arith.constant 0 : i32
    return %arg0, %c0_i32 : i32, i32
  }
}

</mosaic_0001>

<llo_original>
// kernel: polar_area_regressor.1
$region0: #{polar_area_regressor.1}
  #allocation0 [shape = 'u32[]', space=smem, size = 0x4, offset = 0x4, fixed_abs, tag = 'smem constant byte address 0x4 - core index']
  #allocation1 [shape = 'u32[72,128]{1,0:T(1,128)}', space=vmem, size = 0x9000, scoped, tag = 'internal scratch']
  #allocation2 [shape = 'f32[1,1]{1,0:T(1,128)S(6)}', space=smem, size = 0x200, scoped, tag = 'scoped memory for polar_area_regressor.1']
  %s0 = inlined_call_operand.vmem [shape: f32[2,6208], index: 0, kind: input, shape index: {}]
  %s1 = inlined_call_operand.vmem [shape: bf16[6208,64], index: 1, kind: input, shape index: {}]
  %s2 = inlined_call_operand.vmem [shape: f32[1,64], index: 2, kind: input, shape index: {}]
  %s3 = inlined_call_operand.vmem [shape: f32[1,64], index: 3, kind: input, shape index: {}]
  %s4 = inlined_call_operand.<no memory space> [shape: f32[1,1], index: 4, kind: input, shape index: {}]
  %s5 = inlined_call_operand.vmem [shape: f32[2,1], index: 5, kind: output, shape index: {}]
  %s6 = sld [smem:[#allocation0]]
  $region30: #{polar_area_regressor.1} parent=0
    _
  %s8 = ssub.s32 1, %s6
  %s9 = scalar_select 0, %s8, %s6
  %10 = sst [smem:[#allocation2]] %s4
  // Predicated region
  $region2: #{polar_area_regressor.1} parent=0 // pred_check
    _
  $region3: #{polar_area_regressor.1} parent=0 // pred_check_branch
    %12 = sbr.rel (0) target = $region5
  $region4: #{polar_area_regressor.1} parent=0 // pred_region
    _
  $region5: #{polar_area_regressor.1} parent=0 // pred_fallthru
    _
  // Predicated region
  $region6: #{polar_area_regressor.1} parent=0 // pred_check
    _
  $region7: #{polar_area_regressor.1} parent=0 // pred_check_branch
    %14 = sbr.rel (0) target = $region9
  $region8: #{polar_area_regressor.1} parent=0 // pred_region
    _
  $region9: #{polar_area_regressor.1} parent=0 // pred_fallthru
    _
  // Predicated region
  $region10: #{polar_area_regressor.1} parent=0 // pred_check
    _
  $region11: #{polar_area_regressor.1} parent=0 // pred_check_branch
    %16 = sbr.rel (0) target = $region13
  $region12: #{polar_area_regressor.1} parent=0 // pred_region
    _
  $region13: #{polar_area_regressor.1} parent=0 // pred_fallthru
    _
  // Predicated region
  $region14: #{polar_area_regressor.1} parent=0 // pred_check
    _
  $region15: #{polar_area_regressor.1} parent=0 // pred_check_branch
    %18 = sbr.rel (0) target = $region17
  $region16: #{polar_area_regressor.1} parent=0 // pred_region
    _
  $region17: #{polar_area_regressor.1} parent=0 // pred_fallthru
    _
  // Predicated region
  $region18: #{polar_area_regressor.1} parent=0 // pred_check
    _
  $region19: #{polar_area_regressor.1} parent=0 // pred_check_branch
    %20 = sbr.rel (0) target = $region21
  $region20: #{polar_area_regressor.1} parent=0 // pred_region
    _
  $region21: #{polar_area_regressor.1} parent=0 // pred_fallthru
    _
  %v22 = vld [vmem:[%s0] sm:$0xff]
  %v23 = vld [vmem:[%s0 + $0x8] sm:$0xff]
  %v24 = vld [vmem:[%s0 + $0x10] sm:$0xff]
  %v25 = vld [vmem:[%s0 + $0x18] sm:$0xff]
  %v26 = vld [vmem:[%s0 + $0x20] sm:$0xff]
  %v27 = vld [vmem:[%s0 + $0x28] sm:$0xff]
  %v28 = vld [vmem:[%s0 + $0x30] sm:$0xff]
  %v29 = vld [vmem:[%s0 + $0x38] sm:$0xff]
  %v30 = vld [vmem:[%s0 + $0x40] sm:$0xff]
  %v31 = vld [vmem:[%s0 + $0x48] sm:$0xff]
  %v32 = vld [vmem:[%s0 + $0x50] sm:$0xff]
  %v33 = vld [vmem:[%s0 + $0x58] sm:$0xff]
  %v34 = vld [vmem:[%s0 + $0x60] sm:$0x3]
  %48 = vst [vmem:[#allocation1] ss:$4 sm:$0xff] %v22
  %s49 = scalar_lea.vmem [#allocation1], 32
  %50 = vst [vmem:[%s49] ss:$4 sm:$0xff] %v23
  %v51 = vld.sshfl [vmem:[#allocation1] sm:$0xff pattern:$0x73625140]
  %v52 = vld.sshfl [vmem:[#allocation1 + $0x8] sm:$0xff pattern:$0x73625140]
  %v53 = vld.sshfl [vmem:[#allocation1 + $0x10] sm:$0xff pattern:$0x73625140]
  %v54 = vld.sshfl [vmem:[#allocation1 + $0x18] sm:$0xff pattern:$0x73625140]
  %v55 = vld.sshfl [vmem:[#allocation1 + $0x20] sm:$0xff pattern:$0x73625140]
  %v56 = vld.sshfl [vmem:[#allocation1 + $0x28] sm:$0xff pattern:$0x73625140]
  %v57 = vld.sshfl [vmem:[#allocation1 + $0x30] sm:$0xff pattern:$0x73625140]
  %v58 = vld.sshfl [vmem:[#allocation1 + $0x38] sm:$0xff pattern:$0x73625140]
  %59 = vst [vmem:[#allocation1] ss:$4 sm:$0xff] %v24
  %60 = vst [vmem:[%s49] ss:$4 sm:$0xff] %v25
  %v61 = vld.sshfl [vmem:[#allocation1] sm:$0xff pattern:$0x73625140]
  %v62 = vld.sshfl [vmem:[#allocation1 + $0x8] sm:$0xff pattern:$0x73625140]
  %v63 = vld.sshfl [vmem:[#allocation1 + $0x10] sm:$0xff pattern:$0x73625140]
  %v64 = vld.sshfl [vmem:[#allocation1 + $0x18] sm:$0xff pattern:$0x73625140]
  %v65 = vld.sshfl [vmem:[#allocation1 + $0x20] sm:$0xff pattern:$0x73625140]
  %v66 = vld.sshfl [vmem:[#allocation1 + $0x28] sm:$0xff pattern:$0x73625140]
  %v67 = vld.sshfl [vmem:[#allocation1 + $0x30] sm:$0xff pattern:$0x73625140]
  %v68 = vld.sshfl [vmem:[#allocation1 + $0x38] sm:$0xff pattern:$0x73625140]
  %69 = vst [vmem:[#allocation1] ss:$4 sm:$0xff] %v26
  %70 = vst [vmem:[%s49] ss:$4 sm:$0xff] %v27
  %v71 = vld.sshfl [vmem:[#allocation1] sm:$0xff pattern:$0x73625140]
  %v72 = vld.sshfl [vmem:[#allocation1 + $0x8] sm:$0xff pattern:$0x73625140]
  %v73 = vld.sshfl [vmem:[#allocation1 + $0x10] sm:$0xff pattern:$0x73625140]
  %v74 = vld.sshfl [vmem:[#allocation1 + $0x18] sm:$0xff pattern:$0x73625140]
  %v75 = vld.sshfl [vmem:[#allocation1 + $0x20] sm:$0xff pattern:$0x73625140]
  %v76 = vld.sshfl [vmem:[#allocation1 + $0x28] sm:$0xff pattern:$0x73625140]
  %v77 = vld.sshfl [vmem:[#allocation1 + $0x30] sm:$0xff pattern:$0x73625140]
  %v78 = vld.sshfl [vmem:[#allocation1 + $0x38] sm:$0xff pattern:$0x73625140]
  %79 = vst [vmem:[#allocation1] ss:$4 sm:$0xff] %v28
  %80 = vst [vmem:[%s49] ss:$4 sm:$0xff] %v29
  %v81 = vld.sshfl [vmem:[#allocation1] sm:$0xff pattern:$0x73625140]
  %v82 = vld.sshfl [vmem:[#allocation1 + $0x8] sm:$0xff pattern:$0x73625140]
  %v83 = vld.sshfl [vmem:[#allocation1 + $0x10] sm:$0xff pattern:$0x73625140]
  %v84 = vld.sshfl [vmem:[#allocation1 + $0x18] sm:$0xff pattern:$0x73625140]
  %v85 = vld.sshfl [vmem:[#allocation1 + $0x20] sm:$0xff pattern:$0x73625140]
  %v86 = vld.sshfl [vmem:[#allocation1 + $0x28] sm:$0xff pattern:$0x73625140]
  %v87 = vld.sshfl [vmem:[#allocation1 + $0x30] sm:$0xff pattern:$0x73625140]
  %v88 = vld.sshfl [vmem:[#allocation1 + $0x38] sm:$0xff pattern:$0x73625140]
  %89 = vst [vmem:[#allocation1] ss:$4 sm:$0xff] %v30
  %90 = vst [vmem:[%s49] ss:$4 sm:$0xff] %v31
  %v91 = vld.sshfl [vmem:[#allocation1] sm:$0xff pattern:$0x73625140]
  %v92 = vld.sshfl [vmem:[#allocation1 + $0x8] sm:$0xff pattern:$0x73625140]
  %v93 = vld.sshfl [vmem:[#allocation1 + $0x10] sm:$0xff pattern:$0x73625140]
  %v94 = vld.sshfl [vmem:[#allocation1 + $0x18] sm:$0xff pattern:$0x73625140]
  %v95 = vld.sshfl [vmem:[#allocation1 + $0x20] sm:$0xff pattern:$0x73625140]
  %v96 = vld.sshfl [vmem:[#allocation1 + $0x28] sm:$0xff pattern:$0x73625140]
  %v97 = vld.sshfl [vmem:[#allocation1 + $0x30] sm:$0xff pattern:$0x73625140]
  %v98 = vld.sshfl [vmem:[#allocation1 + $0x38] sm:$0xff pattern:$0x73625140]
  %99 = vst [vmem:[#allocation1] ss:$4 sm:$0xff] %v32
  %100 = vst [vmem:[%s49] ss:$4 sm:$0xff] %v33
  %v101 = vld.sshfl [vmem:[#allocation1] sm:$0xff pattern:$0x73625140]
  %v102 = vld.sshfl [vmem:[#allocation1 + $0x8] sm:$0xff pattern:$0x73625140]
  %v103 = vld.sshfl [vmem:[#allocation1 + $0x10] sm:$0xff pattern:$0x73625140]
  %v104 = vld.sshfl [vmem:[#allocation1 + $0x18] sm:$0xff pattern:$0x73625140]
  %v105 = vld.sshfl [vmem:[#allocation1 + $0x20] sm:$0xff pattern:$0x73625140]
  %v106 = vld.sshfl [vmem:[#allocation1 + $0x28] sm:$0xff pattern:$0x73625140]
  %v107 = vld.sshfl [vmem:[#allocation1 + $0x30] sm:$0xff pattern:$0x73625140]
  %v108 = vld.sshfl [vmem:[#allocation1 + $0x38] sm:$0xff pattern:$0x73625140]
  %109 = vst [vmem:[#allocation1] ss:$4 sm:$0xff] %v34
  %v110 = vld.sshfl [vmem:[#allocation1] sm:$0xff pattern:$0x73625140]
  %v160 = vpack.c.bf16 %v51, %v51
  %v161 = vpack.c.bf16 %v52, %v52
  %v162 = vpack.c.bf16 %v53, %v53
  %v163 = vpack.c.bf16 %v54, %v54
  %v164 = vpack.c.bf16 %v55, %v55
  %v165 = vpack.c.bf16 %v56, %v56
  %v166 = vpack.c.bf16 %v57, %v57
  %v167 = vpack.c.bf16 %v58, %v58
  %v168 = vpack.c.bf16 %v61, %v61
  %v169 = vpack.c.bf16 %v62, %v62
  %v170 = vpack.c.bf16 %v63, %v63
  %v171 = vpack.c.bf16 %v64, %v64
  %v172 = vpack.c.bf16 %v65, %v65
  %v173 = vpack.c.bf16 %v66, %v66
  %v174 = vpack.c.bf16 %v67, %v67
  %v175 = vpack.c.bf16 %v68, %v68
  %v176 = vpack.c.bf16 %v71, %v71
  %v177 = vpack.c.bf16 %v72, %v72
  %v178 = vpack.c.bf16 %v73, %v73
  %v179 = vpack.c.bf16 %v74, %v74
  %v180 = vpack.c.bf16 %v75, %v75
  %v181 = vpack.c.bf16 %v76, %v76
  %v182 = vpack.c.bf16 %v77, %v77
  %v183 = vpack.c.bf16 %v78, %v78
  %v184 = vpack.c.bf16 %v81, %v81
  %v185 = vpack.c.bf16 %v82, %v82
  %v186 = vpack.c.bf16 %v83, %v83
  %v187 = vpack.c.bf16 %v84, %v84
  %v188 = vpack.c.bf16 %v85, %v85
  %v189 = vpack.c.bf16 %v86, %v86
  %v190 = vpack.c.bf16 %v87, %v87
  %v191 = vpack.c.bf16 %v88, %v88
  %v192 = vpack.c.bf16 %v91, %v91
  %v193 = vpack.c.bf16 %v92, %v92
  %v194 = vpack.c.bf16 %v93, %v93
  %v195 = vpack.c.bf16 %v94, %v94
  %v196 = vpack.c.bf16 %v95, %v95
  %v197 = vpack.c.bf16 %v96, %v96
  %v198 = vpack.c.bf16 %v97, %v97
  %v199 = vpack.c.bf16 %v98, %v98
  %v200 = vpack.c.bf16 %v101, %v101
  %v201 = vpack.c.bf16 %v102, %v102
  %v202 = vpack.c.bf16 %v103, %v103
  %v203 = vpack.c.bf16 %v104, %v104
  %v204 = vpack.c.bf16 %v105, %v105
  %v205 = vpack.c.bf16 %v106, %v106
  %v206 = vpack.c.bf16 %v107, %v107
  %v207 = vpack.c.bf16 %v108, %v108
  %v208 = vpack.c.bf16 %v110, %v110
  %v209 = vld [vmem:[%s1] sm:$0xf]
  %v210 = vld [vmem:[%s1 + $0x4] sm:$0xf]
  %v211 = vld [vmem:[%s1 + $0x8] sm:$0xf]
  %v212 = vld [vmem:[%s1 + $0xc] sm:$0xf]
  %v213 = vld [vmem:[%s1 + $0x10] sm:$0xf]
  %v214 = vld [vmem:[%s1 + $0x14] sm:$0xf]
  %v215 = vld [vmem:[%s1 + $0x18] sm:$0xf]
  %v216 = vld [vmem:[%s1 + $0x1c] sm:$0xf]
  %v217 = vld [vmem:[%s1 + $0x20] sm:$0xf]
  %v218 = vld [vmem:[%s1 + $0x24] sm:$0xf]
  %v219 = vld [vmem:[%s1 + $0x28] sm:$0xf]
  %v220 = vld [vmem:[%s1 + $0x2c] sm:$0xf]
  %v221 = vld [vmem:[%s1 + $0x30] sm:$0xf]
  %v222 = vld [vmem:[%s1 + $0x34] sm:$0xf]
  %v223 = vld [vmem:[%s1 + $0x38] sm:$0xf]
  %v224 = vld [vmem:[%s1 + $0x3c] sm:$0xf]
  %v225 = vld [vmem:[%s1 + $0x40] sm:$0xf]
  %v226 = vld [vmem:[%s1 + $0x44] sm:$0xf]
  %v227 = vld [vmem:[%s1 + $0x48] sm:$0xf]
  %v228 = vld [vmem:[%s1 + $0x4c] sm:$0xf]
  %v229 = vld [vmem:[%s1 + $0x50] sm:$0xf]
  %v230 = vld [vmem:[%s1 + $0x54] sm:$0xf]
  %v231 = vld [vmem:[%s1 + $0x58] sm:$0xf]
  %v232 = vld [vmem:[%s1 + $0x5c] sm:$0xf]
  %v233 = vld [vmem:[%s1 + $0x60] sm:$0xf]
  %v234 = vld [vmem:[%s1 + $0x64] sm:$0xf]
  %v235 = vld [vmem:[%s1 + $0x68] sm:$0xf]
  %v236 = vld [vmem:[%s1 + $0x6c] sm:$0xf]
  %v237 = vld [vmem:[%s1 + $0x70] sm:$0xf]
  %v238 = vld [vmem:[%s1 + $0x74] sm:$0xf]
  %v239 = vld [vmem:[%s1 + $0x78] sm:$0xf]
  %v240 = vld [vmem:[%s1 + $0x7c] sm:$0xf]
  %v241 = vld [vmem:[%s1 + $0x80] sm:$0xf]
  %v242 = vld [vmem:[%s1 + $0x84] sm:$0xf]
  %v243 = vld [vmem:[%s1 + $0x88] sm:$0xf]
  %v244 = vld [vmem:[%s1 + $0x8c] sm:$0xf]
  %v245 = vld [vmem:[%s1 + $0x90] sm:$0xf]
  %v246 = vld [vmem:[%s1 + $0x94] sm:$0xf]
  %v247 = vld [vmem:[%s1 + $0x98] sm:$0xf]
  %v248 = vld [vmem:[%s1 + $0x9c] sm:$0xf]
  %v249 = vld [vmem:[%s1 + $0xa0] sm:$0xf]
  %v250 = vld [vmem:[%s1 + $0xa4] sm:$0xf]
  %v251 = vld [vmem:[%s1 + $0xa8] sm:$0xf]
  %v252 = vld [vmem:[%s1 + $0xac] sm:$0xf]
  %v253 = vld [vmem:[%s1 + $0xb0] sm:$0xf]
  %v254 = vld [vmem:[%s1 + $0xb4] sm:$0xf]
  %v255 = vld [vmem:[%s1 + $0xb8] sm:$0xf]
  %v256 = vld [vmem:[%s1 + $0xbc] sm:$0xf]
  %v257 = vld [vmem:[%s1 + $0xc0] sm:$0xf]
  %v258 = vld [vmem:[%s1 + $0xc4] sm:$0xf]
  %v259 = vld [vmem:[%s1 + $0xc8] sm:$0xf]
  %v260 = vld [vmem:[%s1 + $0xcc] sm:$0xf]
  %v261 = vld [vmem:[%s1 + $0xd0] sm:$0xf]
  %v262 = vld [vmem:[%s1 + $0xd4] sm:$0xf]
  %v263 = vld [vmem:[%s1 + $0xd8] sm:$0xf]
  %v264 = vld [vmem:[%s1 + $0xdc] sm:$0xf]
  %v265 = vld [vmem:[%s1 + $0xe0] sm:$0xf]
  %v266 = vld [vmem:[%s1 + $0xe4] sm:$0xf]
  %v267 = vld [vmem:[%s1 + $0xe8] sm:$0xf]
  %v268 = vld [vmem:[%s1 + $0xec] sm:$0xf]
  %v269 = vld [vmem:[%s1 + $0xf0] sm:$0xf]
  %v270 = vld [vmem:[%s1 + $0xf4] sm:$0xf]
  %v271 = vld [vmem:[%s1 + $0xf8] sm:$0xf]
  %v272 = vld [vmem:[%s1 + $0xfc] sm:$0xf]
  %v273 = vld [vmem:[%s1 + $0x100] sm:$0xf]
  %v274 = vld [vmem:[%s1 + $0x104] sm:$0xf]
  %v275 = vld [vmem:[%s1 + $0x108] sm:$0xf]
  %v276 = vld [vmem:[%s1 + $0x10c] sm:$0xf]
  %v277 = vld [vmem:[%s1 + $0x110] sm:$0xf]
  %v278 = vld [vmem:[%s1 + $0x114] sm:$0xf]
  %v279 = vld [vmem:[%s1 + $0x118] sm:$0xf]
  %v280 = vld [vmem:[%s1 + $0x11c] sm:$0xf]
  %v281 = vld [vmem:[%s1 + $0x120] sm:$0xf]
  %v282 = vld [vmem:[%s1 + $0x124] sm:$0xf]
  %v283 = vld [vmem:[%s1 + $0x128] sm:$0xf]
  %v284 = vld [vmem:[%s1 + $0x12c] sm:$0xf]
  %v285 = vld [vmem:[%s1 + $0x130] sm:$0xf]
  %v286 = vld [vmem:[%s1 + $0x134] sm:$0xf]
  %v287 = vld [vmem:[%s1 + $0x138] sm:$0xf]
  %v288 = vld [vmem:[%s1 + $0x13c] sm:$0xf]
  %v289 = vld [vmem:[%s1 + $0x140] sm:$0xf]
  %v290 = vld [vmem:[%s1 + $0x144] sm:$0xf]
  %v291 = vld [vmem:[%s1 + $0x148] sm:$0xf]
  %v292 = vld [vmem:[%s1 + $0x14c] sm:$0xf]
  %v293 = vld [vmem:[%s1 + $0x150] sm:$0xf]
  %v294 = vld [vmem:[%s1 + $0x154] sm:$0xf]
  %v295 = vld [vmem:[%s1 + $0x158] sm:$0xf]
  %v296 = vld [vmem:[%s1 + $0x15c] sm:$0xf]
  %v297 = vld [vmem:[%s1 + $0x160] sm:$0xf]
  %v298 = vld [vmem:[%s1 + $0x164] sm:$0xf]
  %v299 = vld [vmem:[%s1 + $0x168] sm:$0xf]
  %v300 = vld [vmem:[%s1 + $0x16c] sm:$0xf]
  %v301 = vld [vmem:[%s1 + $0x170] sm:$0xf]
  %v302 = vld [vmem:[%s1 + $0x174] sm:$0xf]
  %v303 = vld [vmem:[%s1 + $0x178] sm:$0xf]
  %v304 = vld [vmem:[%s1 + $0x17c] sm:$0xf]
  %v305 = vld [vmem:[%s1 + $0x180] sm:$0xf]
  %v306 = vld [vmem:[%s1 + $0x184] sm:$0xf]
  %v307 = vld [vmem:[%s1 + $0x188] sm:$0xf]
  %v308 = vld [vmem:[%s1 + $0x18c] sm:$0xf]
  %v309 = vld [vmem:[%s1 + $0x190] sm:$0xf]
  %v310 = vld [vmem:[%s1 + $0x194] sm:$0xf]
  %v311 = vld [vmem:[%s1 + $0x198] sm:$0xf]
  %v312 = vld [vmem:[%s1 + $0x19c] sm:$0xf]
  %v313 = vld [vmem:[%s1 + $0x1a0] sm:$0xf]
  %v314 = vld [vmem:[%s1 + $0x1a4] sm:$0xf]
  %v315 = vld [vmem:[%s1 + $0x1a8] sm:$0xf]
  %v316 = vld [vmem:[%s1 + $0x1ac] sm:$0xf]
  %v317 = vld [vmem:[%s1 + $0x1b0] sm:$0xf]
  %v318 = vld [vmem:[%s1 + $0x1b4] sm:$0xf]
  %v319 = vld [vmem:[%s1 + $0x1b8] sm:$0xf]
  %v320 = vld [vmem:[%s1 + $0x1bc] sm:$0xf]
  %v321 = vld [vmem:[%s1 + $0x1c0] sm:$0xf]
  %v322 = vld [vmem:[%s1 + $0x1c4] sm:$0xf]
  %v323 = vld [vmem:[%s1 + $0x1c8] sm:$0xf]
  %v324 = vld [vmem:[%s1 + $0x1cc] sm:$0xf]
  %v325 = vld [vmem:[%s1 + $0x1d0] sm:$0xf]
  %v326 = vld [vmem:[%s1 + $0x1d4] sm:$0xf]
  %v327 = vld [vmem:[%s1 + $0x1d8] sm:$0xf]
  %v328 = vld [vmem:[%s1 + $0x1dc] sm:$0xf]
  %v329 = vld [vmem:[%s1 + $0x1e0] sm:$0xf]
  %v330 = vld [vmem:[%s1 + $0x1e4] sm:$0xf]
  %v331 = vld [vmem:[%s1 + $0x1e8] sm:$0xf]
  %v332 = vld [vmem:[%s1 + $0x1ec] sm:$0xf]
  %v333 = vld [vmem:[%s1 + $0x1f0] sm:$0xf]
  %v334 = vld [vmem:[%s1 + $0x1f4] sm:$0xf]
  %v335 = vld [vmem:[%s1 + $0x1f8] sm:$0xf]
  %v336 = vld [vmem:[%s1 + $0x1fc] sm:$0xf]
  %v337 = vld [vmem:[%s1 + $0x200] sm:$0xf]
  %v338 = vld [vmem:[%s1 + $0x204] sm:$0xf]
  %v339 = vld [vmem:[%s1 + $0x208] sm:$0xf]
  %v340 = vld [vmem:[%s1 + $0x20c] sm:$0xf]
  %v341 = vld [vmem:[%s1 + $0x210] sm:$0xf]
  %v342 = vld [vmem:[%s1 + $0x214] sm:$0xf]
  %v343 = vld [vmem:[%s1 + $0x218] sm:$0xf]
  %v344 = vld [vmem:[%s1 + $0x21c] sm:$0xf]
  %v345 = vld [vmem:[%s1 + $0x220] sm:$0xf]
  %v346 = vld [vmem:[%s1 + $0x224] sm:$0xf]
  %v347 = vld [vmem:[%s1 + $0x228] sm:$0xf]
  %v348 = vld [vmem:[%s1 + $0x22c] sm:$0xf]
  %v349 = vld [vmem:[%s1 + $0x230] sm:$0xf]
  %v350 = vld [vmem:[%s1 + $0x234] sm:$0xf]
  %v351 = vld [vmem:[%s1 + $0x238] sm:$0xf]
  %v352 = vld [vmem:[%s1 + $0x23c] sm:$0xf]
  %v353 = vld [vmem:[%s1 + $0x240] sm:$0xf]
  %v354 = vld [vmem:[%s1 + $0x244] sm:$0xf]
  %v355 = vld [vmem:[%s1 + $0x248] sm:$0xf]
  %v356 = vld [vmem:[%s1 + $0x24c] sm:$0xf]
  %v357 = vld [vmem:[%s1 + $0x250] sm:$0xf]
  %v358 = vld [vmem:[%s1 + $0x254] sm:$0xf]
  %v359 = vld [vmem:[%s1 + $0x258] sm:$0xf]
  %v360 = vld [vmem:[%s1 + $0x25c] sm:$0xf]
  %v361 = vld [vmem:[%s1 + $0x260] sm:$0xf]
  %v362 = vld [vmem:[%s1 + $0x264] sm:$0xf]
  %v363 = vld [vmem:[%s1 + $0x268] sm:$0xf]
  %v364 = vld [vmem:[%s1 + $0x26c] sm:$0xf]
  %v365 = vld [vmem:[%s1 + $0x270] sm:$0xf]
  %v366 = vld [vmem:[%s1 + $0x274] sm:$0xf]
  %v367 = vld [vmem:[%s1 + $0x278] sm:$0xf]
  %v368 = vld [vmem:[%s1 + $0x27c] sm:$0xf]
  %v369 = vld [vmem:[%s1 + $0x280] sm:$0xf]
  %v370 = vld [vmem:[%s1 + $0x284] sm:$0xf]
  %v371 = vld [vmem:[%s1 + $0x288] sm:$0xf]
  %v372 = vld [vmem:[%s1 + $0x28c] sm:$0xf]
  %v373 = vld [vmem:[%s1 + $0x290] sm:$0xf]
  %v374 = vld [vmem:[%s1 + $0x294] sm:$0xf]
  %v375 = vld [vmem:[%s1 + $0x298] sm:$0xf]
  %v376 = vld [vmem:[%s1 + $0x29c] sm:$0xf]
  %v377 = vld [vmem:[%s1 + $0x2a0] sm:$0xf]
  %v378 = vld [vmem:[%s1 + $0x2a4] sm:$0xf]
  %v379 = vld [vmem:[%s1 + $0x2a8] sm:$0xf]
  %v380 = vld [vmem:[%s1 + $0x2ac] sm:$0xf]
  %v381 = vld [vmem:[%s1 + $0x2b0] sm:$0xf]
  %v382 = vld [vmem:[%s1 + $0x2b4] sm:$0xf]
  %v383 = vld [vmem:[%s1 + $0x2b8] sm:$0xf]
  %v384 = vld [vmem:[%s1 + $0x2bc] sm:$0xf]
  %v385 = vld [vmem:[%s1 + $0x2c0] sm:$0xf]
  %v386 = vld [vmem:[%s1 + $0x2c4] sm:$0xf]
  %v387 = vld [vmem:[%s1 + $0x2c8] sm:$0xf]
  %v388 = vld [vmem:[%s1 + $0x2cc] sm:$0xf]
  %v389 = vld [vmem:[%s1 + $0x2d0] sm:$0xf]
  %v390 = vld [vmem:[%s1 + $0x2d4] sm:$0xf]
  %v391 = vld [vmem:[%s1 + $0x2d8] sm:$0xf]
  %v392 = vld [vmem:[%s1 + $0x2dc] sm:$0xf]
  %v393 = vld [vmem:[%s1 + $0x2e0] sm:$0xf]
  %v394 = vld [vmem:[%s1 + $0x2e4] sm:$0xf]
  %v395 = vld [vmem:[%s1 + $0x2e8] sm:$0xf]
  %v396 = vld [vmem:[%s1 + $0x2ec] sm:$0xf]
  %v397 = vld [vmem:[%s1 + $0x2f0] sm:$0xf]
  %v398 = vld [vmem:[%s1 + $0x2f4] sm:$0xf]
  %v399 = vld [vmem:[%s1 + $0x2f8] sm:$0xf]
  %v400 = vld [vmem:[%s1 + $0x2fc] sm:$0xf]
  %v401 = vld [vmem:[%s1 + $0x300] sm:$0xf]
  %v402 = vld [vmem:[%s1 + $0x304] sm:$0xf]
  %v403 = vld [vmem:[%s1 + $0x308] sm:$0xf]
  %v404 = vld [vmem:[%s1 + $0x30c] sm:$0xf]
  %v405 = vld [vmem:[%s1 + $0x310] sm:$0xf]
  %v406 = vld [vmem:[%s1 + $0x314] sm:$0xf]
  %v407 = vld [vmem:[%s1 + $0x318] sm:$0xf]
  %v408 = vld [vmem:[%s1 + $0x31c] sm:$0xf]
  %v409 = vld [vmem:[%s1 + $0x320] sm:$0xf]
  %v410 = vld [vmem:[%s1 + $0x324] sm:$0xf]
  %v411 = vld [vmem:[%s1 + $0x328] sm:$0xf]
  %v412 = vld [vmem:[%s1 + $0x32c] sm:$0xf]
  %v413 = vld [vmem:[%s1 + $0x330] sm:$0xf]
  %v414 = vld [vmem:[%s1 + $0x334] sm:$0xf]
  %v415 = vld [vmem:[%s1 + $0x338] sm:$0xf]
  %v416 = vld [vmem:[%s1 + $0x33c] sm:$0xf]
  %v417 = vld [vmem:[%s1 + $0x340] sm:$0xf]
  %v418 = vld [vmem:[%s1 + $0x344] sm:$0xf]
  %v419 = vld [vmem:[%s1 + $0x348] sm:$0xf]
  %v420 = vld [vmem:[%s1 + $0x34c] sm:$0xf]
  %v421 = vld [vmem:[%s1 + $0x350] sm:$0xf]
  %v422 = vld [vmem:[%s1 + $0x354] sm:$0xf]
  %v423 = vld [vmem:[%s1 + $0x358] sm:$0xf]
  %v424 = vld [vmem:[%s1 + $0x35c] sm:$0xf]
  %v425 = vld [vmem:[%s1 + $0x360] sm:$0xf]
  %v426 = vld [vmem:[%s1 + $0x364] sm:$0xf]
  %v427 = vld [vmem:[%s1 + $0x368] sm:$0xf]
  %v428 = vld [vmem:[%s1 + $0x36c] sm:$0xf]
  %v429 = vld [vmem:[%s1 + $0x370] sm:$0xf]
  %v430 = vld [vmem:[%s1 + $0x374] sm:$0xf]
  %v431 = vld [vmem:[%s1 + $0x378] sm:$0xf]
  %v432 = vld [vmem:[%s1 + $0x37c] sm:$0xf]
  %v433 = vld [vmem:[%s1 + $0x380] sm:$0xf]
  %v434 = vld [vmem:[%s1 + $0x384] sm:$0xf]
  %v435 = vld [vmem:[%s1 + $0x388] sm:$0xf]
  %v436 = vld [vmem:[%s1 + $0x38c] sm:$0xf]
  %v437 = vld [vmem:[%s1 + $0x390] sm:$0xf]
  %v438 = vld [vmem:[%s1 + $0x394] sm:$0xf]
  %v439 = vld [vmem:[%s1 + $0x398] sm:$0xf]
  %v440 = vld [vmem:[%s1 + $0x39c] sm:$0xf]
  %v441 = vld [vmem:[%s1 + $0x3a0] sm:$0xf]
  %v442 = vld [vmem:[%s1 + $0x3a4] sm:$0xf]
  %v443 = vld [vmem:[%s1 + $0x3a8] sm:$0xf]
  %v444 = vld [vmem:[%s1 + $0x3ac] sm:$0xf]
  %v445 = vld [vmem:[%s1 + $0x3b0] sm:$0xf]
  %v446 = vld [vmem:[%s1 + $0x3b4] sm:$0xf]
  %v447 = vld [vmem:[%s1 + $0x3b8] sm:$0xf]
  %v448 = vld [vmem:[%s1 + $0x3bc] sm:$0xf]
  %v449 = vld [vmem:[%s1 + $0x3c0] sm:$0xf]
  %v450 = vld [vmem:[%s1 + $0x3c4] sm:$0xf]
  %v451 = vld [vmem:[%s1 + $0x3c8] sm:$0xf]
  %v452 = vld [vmem:[%s1 + $0x3cc] sm:$0xf]
  %v453 = vld [vmem:[%s1 + $0x3d0] sm:$0xf]
  %v454 = vld [vmem:[%s1 + $0x3d4] sm:$0xf]
  %v455 = vld [vmem:[%s1 + $0x3d8] sm:$0xf]
  %v456 = vld [vmem:[%s1 + $0x3dc] sm:$0xf]
  %v457 = vld [vmem:[%s1 + $0x3e0] sm:$0xf]
  %v458 = vld [vmem:[%s1 + $0x3e4] sm:$0xf]
  %v459 = vld [vmem:[%s1 + $0x3e8] sm:$0xf]
  %v460 = vld [vmem:[%s1 + $0x3ec] sm:$0xf]
  %v461 = vld [vmem:[%s1 + $0x3f0] sm:$0xf]
  %v462 = vld [vmem:[%s1 + $0x3f4] sm:$0xf]
  %v463 = vld [vmem:[%s1 + $0x3f8] sm:$0xf]
  %v464 = vld [vmem:[%s1 + $0x3fc] sm:$0xf]
  %v465 = vld [vmem:[%s1 + $0x400] sm:$0xf]
  %v466 = vld [vmem:[%s1 + $0x404] sm:$0xf]
  %v467 = vld [vmem:[%s1 + $0x408] sm:$0xf]
  %v468 = vld [vmem:[%s1 + $0x40c] sm:$0xf]
  %v469 = vld [vmem:[%s1 + $0x410] sm:$0xf]
  %v470 = vld [vmem:[%s1 + $0x414] sm:$0xf]
  %v471 = vld [vmem:[%s1 + $0x418] sm:$0xf]
  %v472 = vld [vmem:[%s1 + $0x41c] sm:$0xf]
  %v473 = vld [vmem:[%s1 + $0x420] sm:$0xf]
  %v474 = vld [vmem:[%s1 + $0x424] sm:$0xf]
  %v475 = vld [vmem:[%s1 + $0x428] sm:$0xf]
  %v476 = vld [vmem:[%s1 + $0x42c] sm:$0xf]
  %v477 = vld [vmem:[%s1 + $0x430] sm:$0xf]
  %v478 = vld [vmem:[%s1 + $0x434] sm:$0xf]
  %v479 = vld [vmem:[%s1 + $0x438] sm:$0xf]
  %v480 = vld [vmem:[%s1 + $0x43c] sm:$0xf]
  %v481 = vld [vmem:[%s1 + $0x440] sm:$0xf]
  %v482 = vld [vmem:[%s1 + $0x444] sm:$0xf]
  %v483 = vld [vmem:[%s1 + $0x448] sm:$0xf]
  %v484 = vld [vmem:[%s1 + $0x44c] sm:$0xf]
  %v485 = vld [vmem:[%s1 + $0x450] sm:$0xf]
  %v486 = vld [vmem:[%s1 + $0x454] sm:$0xf]
  %v487 = vld [vmem:[%s1 + $0x458] sm:$0xf]
  %v488 = vld [vmem:[%s1 + $0x45c] sm:$0xf]
  %v489 = vld [vmem:[%s1 + $0x460] sm:$0xf]
  %v490 = vld [vmem:[%s1 + $0x464] sm:$0xf]
  %v491 = vld [vmem:[%s1 + $0x468] sm:$0xf]
  %v492 = vld [vmem:[%s1 + $0x46c] sm:$0xf]
  %v493 = vld [vmem:[%s1 + $0x470] sm:$0xf]
  %v494 = vld [vmem:[%s1 + $0x474] sm:$0xf]
  %v495 = vld [vmem:[%s1 + $0x478] sm:$0xf]
  %v496 = vld [vmem:[%s1 + $0x47c] sm:$0xf]
  %v497 = vld [vmem:[%s1 + $0x480] sm:$0xf]
  %v498 = vld [vmem:[%s1 + $0x484] sm:$0xf]
  %v499 = vld [vmem:[%s1 + $0x488] sm:$0xf]
  %v500 = vld [vmem:[%s1 + $0x48c] sm:$0xf]
  %v501 = vld [vmem:[%s1 + $0x490] sm:$0xf]
  %v502 = vld [vmem:[%s1 + $0x494] sm:$0xf]
  %v503 = vld [vmem:[%s1 + $0x498] sm:$0xf]
  %v504 = vld [vmem:[%s1 + $0x49c] sm:$0xf]
  %v505 = vld [vmem:[%s1 + $0x4a0] sm:$0xf]
  %v506 = vld [vmem:[%s1 + $0x4a4] sm:$0xf]
  %v507 = vld [vmem:[%s1 + $0x4a8] sm:$0xf]
  %v508 = vld [vmem:[%s1 + $0x4ac] sm:$0xf]
  %v509 = vld [vmem:[%s1 + $0x4b0] sm:$0xf]
  %v510 = vld [vmem:[%s1 + $0x4b4] sm:$0xf]
  %v511 = vld [vmem:[%s1 + $0x4b8] sm:$0xf]
  %v512 = vld [vmem:[%s1 + $0x4bc] sm:$0xf]
  %v513 = vld [vmem:[%s1 + $0x4c0] sm:$0xf]
  %v514 = vld [vmem:[%s1 + $0x4c4] sm:$0xf]
  %v515 = vld [vmem:[%s1 + $0x4c8] sm:$0xf]
  %v516 = vld [vmem:[%s1 + $0x4cc] sm:$0xf]
  %v517 = vld [vmem:[%s1 + $0x4d0] sm:$0xf]
  %v518 = vld [vmem:[%s1 + $0x4d4] sm:$0xf]
  %v519 = vld [vmem:[%s1 + $0x4d8] sm:$0xf]
  %v520 = vld [vmem:[%s1 + $0x4dc] sm:$0xf]
  %v521 = vld [vmem:[%s1 + $0x4e0] sm:$0xf]
  %v522 = vld [vmem:[%s1 + $0x4e4] sm:$0xf]
  %v523 = vld [vmem:[%s1 + $0x4e8] sm:$0xf]
  %v524 = vld [vmem:[%s1 + $0x4ec] sm:$0xf]
  %v525 = vld [vmem:[%s1 + $0x4f0] sm:$0xf]
  %v526 = vld [vmem:[%s1 + $0x4f4] sm:$0xf]
  %v527 = vld [vmem:[%s1 + $0x4f8] sm:$0xf]
  %v528 = vld [vmem:[%s1 + $0x4fc] sm:$0xf]
  %v529 = vld [vmem:[%s1 + $0x500] sm:$0xf]
  %v530 = vld [vmem:[%s1 + $0x504] sm:$0xf]
  %v531 = vld [vmem:[%s1 + $0x508] sm:$0xf]
  %v532 = vld [vmem:[%s1 + $0x50c] sm:$0xf]
  %v533 = vld [vmem:[%s1 + $0x510] sm:$0xf]
  %v534 = vld [vmem:[%s1 + $0x514] sm:$0xf]
  %v535 = vld [vmem:[%s1 + $0x518] sm:$0xf]
  %v536 = vld [vmem:[%s1 + $0x51c] sm:$0xf]
  %v537 = vld [vmem:[%s1 + $0x520] sm:$0xf]
  %v538 = vld [vmem:[%s1 + $0x524] sm:$0xf]
  %v539 = vld [vmem:[%s1 + $0x528] sm:$0xf]
  %v540 = vld [vmem:[%s1 + $0x52c] sm:$0xf]
  %v541 = vld [vmem:[%s1 + $0x530] sm:$0xf]
  %v542 = vld [vmem:[%s1 + $0x534] sm:$0xf]
  %v543 = vld [vmem:[%s1 + $0x538] sm:$0xf]
  %v544 = vld [vmem:[%s1 + $0x53c] sm:$0xf]
  %v545 = vld [vmem:[%s1 + $0x540] sm:$0xf]
  %v546 = vld [vmem:[%s1 + $0x544] sm:$0xf]
  %v547 = vld [vmem:[%s1 + $0x548] sm:$0xf]
  %v548 = vld [vmem:[%s1 + $0x54c] sm:$0xf]
  %v549 = vld [vmem:[%s1 + $0x550] sm:$0xf]
  %v550 = vld [vmem:[%s1 + $0x554] sm:$0xf]
  %v551 = vld [vmem:[%s1 + $0x558] sm:$0xf]
  %v552 = vld [vmem:[%s1 + $0x55c] sm:$0xf]
  %v553 = vld [vmem:[%s1 + $0x560] sm:$0xf]
  %v554 = vld [vmem:[%s1 + $0x564] sm:$0xf]
  %v555 = vld [vmem:[%s1 + $0x568] sm:$0xf]
  %v556 = vld [vmem:[%s1 + $0x56c] sm:$0xf]
  %v557 = vld [vmem:[%s1 + $0x570] sm:$0xf]
  %v558 = vld [vmem:[%s1 + $0x574] sm:$0xf]
  %v559 = vld [vmem:[%s1 + $0x578] sm:$0xf]
  %v560 = vld [vmem:[%s1 + $0x57c] sm:$0xf]
  %v561 = vld [vmem:[%s1 + $0x580] sm:$0xf]
  %v562 = vld [vmem:[%s1 + $0x584] sm:$0xf]
  %v563 = vld [vmem:[%s1 + $0x588] sm:$0xf]
  %v564 = vld [vmem:[%s1 + $0x58c] sm:$0xf]
  %v565 = vld [vmem:[%s1 + $0x590] sm:$0xf]
  %v566 = vld [vmem:[%s1 + $0x594] sm:$0xf]
  %v567 = vld [vmem:[%s1 + $0x598] sm:$0xf]
  %v568 = vld [vmem:[%s1 + $0x59c] sm:$0xf]
  %v569 = vld [vmem:[%s1 + $0x5a0] sm:$0xf]
  %v570 = vld [vmem:[%s1 + $0x5a4] sm:$0xf]
  %v571 = vld [vmem:[%s1 + $0x5a8] sm:$0xf]
  %v572 = vld [vmem:[%s1 + $0x5ac] sm:$0xf]
  %v573 = vld [vmem:[%s1 + $0x5b0] sm:$0xf]
  %v574 = vld [vmem:[%s1 + $0x5b4] sm:$0xf]
  %v575 = vld [vmem:[%s1 + $0x5b8] sm:$0xf]
  %v576 = vld [vmem:[%s1 + $0x5bc] sm:$0xf]
  %v577 = vld [vmem:[%s1 + $0x5c0] sm:$0xf]
  %v578 = vld [vmem:[%s1 + $0x5c4] sm:$0xf]
  %v579 = vld [vmem:[%s1 + $0x5c8] sm:$0xf]
  %v580 = vld [vmem:[%s1 + $0x5cc] sm:$0xf]
  %v581 = vld [vmem:[%s1 + $0x5d0] sm:$0xf]
  %v582 = vld [vmem:[%s1 + $0x5d4] sm:$0xf]
  %v583 = vld [vmem:[%s1 + $0x5d8] sm:$0xf]
  %v584 = vld [vmem:[%s1 + $0x5dc] sm:$0xf]
  %v585 = vld [vmem:[%s1 + $0x5e0] sm:$0xf]
  %v586 = vld [vmem:[%s1 + $0x5e4] sm:$0xf]
  %v587 = vld [vmem:[%s1 + $0x5e8] sm:$0xf]
  %v588 = vld [vmem:[%s1 + $0x5ec] sm:$0xf]
  %v589 = vld [vmem:[%s1 + $0x5f0] sm:$0xf]
  %v590 = vld [vmem:[%s1 + $0x5f4] sm:$0xf]
  %v591 = vld [vmem:[%s1 + $0x5f8] sm:$0xf]
  %v592 = vld [vmem:[%s1 + $0x5fc] sm:$0xf]
  %v593 = vld [vmem:[%s1 + $0x600] sm:$0xf]
  %v594 = vld [vmem:[%s1 + $0x604] sm:$0xf]
  %v595 = vld [vmem:[%s1 + $0x608] sm:$0xf]
  %v596 = vld [vmem:[%s1 + $0x60c] sm:$0xf]
  %v597 = vld [vmem:[%s1 + $0x610] sm:$0xf]
  %v598 = vld [vmem:[%s1 + $0x614] sm:$0xf]
  %v599 = vld [vmem:[%s1 + $0x618] sm:$0xf]
  %v600 = vld [vmem:[%s1 + $0x61c] sm:$0xf]
  %v601 = vld [vmem:[%s1 + $0x620] sm:$0xf]
  %v602 = vld [vmem:[%s1 + $0x624] sm:$0xf]
  %v603 = vld [vmem:[%s1 + $0x628] sm:$0xf]
  %v604 = vld [vmem:[%s1 + $0x62c] sm:$0xf]
  %v605 = vld [vmem:[%s1 + $0x630] sm:$0xf]
  %v606 = vld [vmem:[%s1 + $0x634] sm:$0xf]
  %v607 = vld [vmem:[%s1 + $0x638] sm:$0xf]
  %v608 = vld [vmem:[%s1 + $0x63c] sm:$0xf]
  %v609 = vld [vmem:[%s1 + $0x640] sm:$0xf]
  %v610 = vld [vmem:[%s1 + $0x644] sm:$0xf]
  %v611 = vld [vmem:[%s1 + $0x648] sm:$0xf]
  %v612 = vld [vmem:[%s1 + $0x64c] sm:$0xf]
  %v613 = vld [vmem:[%s1 + $0x650] sm:$0xf]
  %v614 = vld [vmem:[%s1 + $0x654] sm:$0xf]
  %v615 = vld [vmem:[%s1 + $0x658] sm:$0xf]
  %v616 = vld [vmem:[%s1 + $0x65c] sm:$0xf]
  %v617 = vld [vmem:[%s1 + $0x660] sm:$0xf]
  %v618 = vld [vmem:[%s1 + $0x664] sm:$0xf]
  %v619 = vld [vmem:[%s1 + $0x668] sm:$0xf]
  %v620 = vld [vmem:[%s1 + $0x66c] sm:$0xf]
  %v621 = vld [vmem:[%s1 + $0x670] sm:$0xf]
  %v622 = vld [vmem:[%s1 + $0x674] sm:$0xf]
  %v623 = vld [vmem:[%s1 + $0x678] sm:$0xf]
  %v624 = vld [vmem:[%s1 + $0x67c] sm:$0xf]
  %v625 = vld [vmem:[%s1 + $0x680] sm:$0xf]
  %v626 = vld [vmem:[%s1 + $0x684] sm:$0xf]
  %v627 = vld [vmem:[%s1 + $0x688] sm:$0xf]
  %v628 = vld [vmem:[%s1 + $0x68c] sm:$0xf]
  %v629 = vld [vmem:[%s1 + $0x690] sm:$0xf]
  %v630 = vld [vmem:[%s1 + $0x694] sm:$0xf]
  %v631 = vld [vmem:[%s1 + $0x698] sm:$0xf]
  %v632 = vld [vmem:[%s1 + $0x69c] sm:$0xf]
  %v633 = vld [vmem:[%s1 + $0x6a0] sm:$0xf]
  %v634 = vld [vmem:[%s1 + $0x6a4] sm:$0xf]
  %v635 = vld [vmem:[%s1 + $0x6a8] sm:$0xf]
  %v636 = vld [vmem:[%s1 + $0x6ac] sm:$0xf]
  %v637 = vld [vmem:[%s1 + $0x6b0] sm:$0xf]
  %v638 = vld [vmem:[%s1 + $0x6b4] sm:$0xf]
  %v639 = vld [vmem:[%s1 + $0x6b8] sm:$0xf]
  %v640 = vld [vmem:[%s1 + $0x6bc] sm:$0xf]
  %v641 = vld [vmem:[%s1 + $0x6c0] sm:$0xf]
  %v642 = vld [vmem:[%s1 + $0x6c4] sm:$0xf]
  %v643 = vld [vmem:[%s1 + $0x6c8] sm:$0xf]
  %v644 = vld [vmem:[%s1 + $0x6cc] sm:$0xf]
  %v645 = vld [vmem:[%s1 + $0x6d0] sm:$0xf]
  %v646 = vld [vmem:[%s1 + $0x6d4] sm:$0xf]
  %v647 = vld [vmem:[%s1 + $0x6d8] sm:$0xf]
  %v648 = vld [vmem:[%s1 + $0x6dc] sm:$0xf]
  %v649 = vld [vmem:[%s1 + $0x6e0] sm:$0xf]
  %v650 = vld [vmem:[%s1 + $0x6e4] sm:$0xf]
  %v651 = vld [vmem:[%s1 + $0x6e8] sm:$0xf]
  %v652 = vld [vmem:[%s1 + $0x6ec] sm:$0xf]
  %v653 = vld [vmem:[%s1 + $0x6f0] sm:$0xf]
  %v654 = vld [vmem:[%s1 + $0x6f4] sm:$0xf]
  %v655 = vld [vmem:[%s1 + $0x6f8] sm:$0xf]
  %v656 = vld [vmem:[%s1 + $0x6fc] sm:$0xf]
  %v657 = vld [vmem:[%s1 + $0x700] sm:$0xf]
  %v658 = vld [vmem:[%s1 + $0x704] sm:$0xf]
  %v659 = vld [vmem:[%s1 + $0x708] sm:$0xf]
  %v660 = vld [vmem:[%s1 + $0x70c] sm:$0xf]
  %v661 = vld [vmem:[%s1 + $0x710] sm:$0xf]
  %v662 = vld [vmem:[%s1 + $0x714] sm:$0xf]
  %v663 = vld [vmem:[%s1 + $0x718] sm:$0xf]
  %v664 = vld [vmem:[%s1 + $0x71c] sm:$0xf]
  %v665 = vld [vmem:[%s1 + $0x720] sm:$0xf]
  %v666 = vld [vmem:[%s1 + $0x724] sm:$0xf]
  %v667 = vld [vmem:[%s1 + $0x728] sm:$0xf]
  %v668 = vld [vmem:[%s1 + $0x72c] sm:$0xf]
  %v669 = vld [vmem:[%s1 + $0x730] sm:$0xf]
  %v670 = vld [vmem:[%s1 + $0x734] sm:$0xf]
  %v671 = vld [vmem:[%s1 + $0x738] sm:$0xf]
  %v672 = vld [vmem:[%s1 + $0x73c] sm:$0xf]
  %v673 = vld [vmem:[%s1 + $0x740] sm:$0xf]
  %v674 = vld [vmem:[%s1 + $0x744] sm:$0xf]
  %v675 = vld [vmem:[%s1 + $0x748] sm:$0xf]
  %v676 = vld [vmem:[%s1 + $0x74c] sm:$0xf]
  %v677 = vld [vmem:[%s1 + $0x750] sm:$0xf]
  %v678 = vld [vmem:[%s1 + $0x754] sm:$0xf]
  %v679 = vld [vmem:[%s1 + $0x758] sm:$0xf]
  %v680 = vld [vmem:[%s1 + $0x75c] sm:$0xf]
  %v681 = vld [vmem:[%s1 + $0x760] sm:$0xf]
  %v682 = vld [vmem:[%s1 + $0x764] sm:$0xf]
  %v683 = vld [vmem:[%s1 + $0x768] sm:$0xf]
  %v684 = vld [vmem:[%s1 + $0x76c] sm:$0xf]
  %v685 = vld [vmem:[%s1 + $0x770] sm:$0xf]
  %v686 = vld [vmem:[%s1 + $0x774] sm:$0xf]
  %v687 = vld [vmem:[%s1 + $0x778] sm:$0xf]
  %v688 = vld [vmem:[%s1 + $0x77c] sm:$0xf]
  %v689 = vld [vmem:[%s1 + $0x780] sm:$0xf]
  %v690 = vld [vmem:[%s1 + $0x784] sm:$0xf]
  %v691 = vld [vmem:[%s1 + $0x788] sm:$0xf]
  %v692 = vld [vmem:[%s1 + $0x78c] sm:$0xf]
  %v693 = vld [vmem:[%s1 + $0x790] sm:$0xf]
  %v694 = vld [vmem:[%s1 + $0x794] sm:$0xf]
  %v695 = vld [vmem:[%s1 + $0x798] sm:$0xf]
  %v696 = vld [vmem:[%s1 + $0x79c] sm:$0xf]
  %v697 = vld [vmem:[%s1 + $0x7a0] sm:$0xf]
  %v698 = vld [vmem:[%s1 + $0x7a4] sm:$0xf]
  %v699 = vld [vmem:[%s1 + $0x7a8] sm:$0xf]
  %v700 = vld [vmem:[%s1 + $0x7ac] sm:$0xf]
  %v701 = vld [vmem:[%s1 + $0x7b0] sm:$0xf]
  %v702 = vld [vmem:[%s1 + $0x7b4] sm:$0xf]
  %v703 = vld [vmem:[%s1 + $0x7b8] sm:$0xf]
  %v704 = vld [vmem:[%s1 + $0x7bc] sm:$0xf]
  %v705 = vld [vmem:[%s1 + $0x7c0] sm:$0xf]
  %v706 = vld [vmem:[%s1 + $0x7c4] sm:$0xf]
  %v707 = vld [vmem:[%s1 + $0x7c8] sm:$0xf]
  %v708 = vld [vmem:[%s1 + $0x7cc] sm:$0xf]
  %v709 = vld [vmem:[%s1 + $0x7d0] sm:$0xf]
  %v710 = vld [vmem:[%s1 + $0x7d4] sm:$0xf]
  %v711 = vld [vmem:[%s1 + $0x7d8] sm:$0xf]
  %v712 = vld [vmem:[%s1 + $0x7dc] sm:$0xf]
  %v713 = vld [vmem:[%s1 + $0x7e0] sm:$0xf]
  %v714 = vld [vmem:[%s1 + $0x7e4] sm:$0xf]
  %v715 = vld [vmem:[%s1 + $0x7e8] sm:$0xf]
  %v716 = vld [vmem:[%s1 + $0x7ec] sm:$0xf]
  %v717 = vld [vmem:[%s1 + $0x7f0] sm:$0xf]
  %v718 = vld [vmem:[%s1 + $0x7f4] sm:$0xf]
  %v719 = vld [vmem:[%s1 + $0x7f8] sm:$0xf]
  %v720 = vld [vmem:[%s1 + $0x7fc] sm:$0xf]
  %v721 = vld [vmem:[%s1 + $0x800] sm:$0xf]
  %v722 = vld [vmem:[%s1 + $0x804] sm:$0xf]
  %v723 = vld [vmem:[%s1 + $0x808] sm:$0xf]
  %v724 = vld [vmem:[%s1 + $0x80c] sm:$0xf]
  %v725 = vld [vmem:[%s1 + $0x810] sm:$0xf]
  %v726 = vld [vmem:[%s1 + $0x814] sm:$0xf]
  %v727 = vld [vmem:[%s1 + $0x818] sm:$0xf]
  %v728 = vld [vmem:[%s1 + $0x81c] sm:$0xf]
  %v729 = vld [vmem:[%s1 + $0x820] sm:$0xf]
  %v730 = vld [vmem:[%s1 + $0x824] sm:$0xf]
  %v731 = vld [vmem:[%s1 + $0x828] sm:$0xf]
  %v732 = vld [vmem:[%s1 + $0x82c] sm:$0xf]
  %v733 = vld [vmem:[%s1 + $0x830] sm:$0xf]
  %v734 = vld [vmem:[%s1 + $0x834] sm:$0xf]
  %v735 = vld [vmem:[%s1 + $0x838] sm:$0xf]
  %v736 = vld [vmem:[%s1 + $0x83c] sm:$0xf]
  %v737 = vld [vmem:[%s1 + $0x840] sm:$0xf]
  %v738 = vld [vmem:[%s1 + $0x844] sm:$0xf]
  %v739 = vld [vmem:[%s1 + $0x848] sm:$0xf]
  %v740 = vld [vmem:[%s1 + $0x84c] sm:$0xf]
  %v741 = vld [vmem:[%s1 + $0x850] sm:$0xf]
  %v742 = vld [vmem:[%s1 + $0x854] sm:$0xf]
  %v743 = vld [vmem:[%s1 + $0x858] sm:$0xf]
  %v744 = vld [vmem:[%s1 + $0x85c] sm:$0xf]
  %v745 = vld [vmem:[%s1 + $0x860] sm:$0xf]
  %v746 = vld [vmem:[%s1 + $0x864] sm:$0xf]
  %v747 = vld [vmem:[%s1 + $0x868] sm:$0xf]
  %v748 = vld [vmem:[%s1 + $0x86c] sm:$0xf]
  %v749 = vld [vmem:[%s1 + $0x870] sm:$0xf]
  %v750 = vld [vmem:[%s1 + $0x874] sm:$0xf]
  %v751 = vld [vmem:[%s1 + $0x878] sm:$0xf]
  %v752 = vld [vmem:[%s1 + $0x87c] sm:$0xf]
  %v753 = vld [vmem:[%s1 + $0x880] sm:$0xf]
  %v754 = vld [vmem:[%s1 + $0x884] sm:$0xf]
  %v755 = vld [vmem:[%s1 + $0x888] sm:$0xf]
  %v756 = vld [vmem:[%s1 + $0x88c] sm:$0xf]
  %v757 = vld [vmem:[%s1 + $0x890] sm:$0xf]
  %v758 = vld [vmem:[%s1 + $0x894] sm:$0xf]
  %v759 = vld [vmem:[%s1 + $0x898] sm:$0xf]
  %v760 = vld [vmem:[%s1 + $0x89c] sm:$0xf]
  %v761 = vld [vmem:[%s1 + $0x8a0] sm:$0xf]
  %v762 = vld [vmem:[%s1 + $0x8a4] sm:$0xf]
  %v763 = vld [vmem:[%s1 + $0x8a8] sm:$0xf]
  %v764 = vld [vmem:[%s1 + $0x8ac] sm:$0xf]
  %v765 = vld [vmem:[%s1 + $0x8b0] sm:$0xf]
  %v766 = vld [vmem:[%s1 + $0x8b4] sm:$0xf]
  %v767 = vld [vmem:[%s1 + $0x8b8] sm:$0xf]
  %v768 = vld [vmem:[%s1 + $0x8bc] sm:$0xf]
  %v769 = vld [vmem:[%s1 + $0x8c0] sm:$0xf]
  %v770 = vld [vmem:[%s1 + $0x8c4] sm:$0xf]
  %v771 = vld [vmem:[%s1 + $0x8c8] sm:$0xf]
  %v772 = vld [vmem:[%s1 + $0x8cc] sm:$0xf]
  %v773 = vld [vmem:[%s1 + $0x8d0] sm:$0xf]
  %v774 = vld [vmem:[%s1 + $0x8d4] sm:$0xf]
  %v775 = vld [vmem:[%s1 + $0x8d8] sm:$0xf]
  %v776 = vld [vmem:[%s1 + $0x8dc] sm:$0xf]
  %v777 = vld [vmem:[%s1 + $0x8e0] sm:$0xf]
  %v778 = vld [vmem:[%s1 + $0x8e4] sm:$0xf]
  %v779 = vld [vmem:[%s1 + $0x8e8] sm:$0xf]
  %v780 = vld [vmem:[%s1 + $0x8ec] sm:$0xf]
  %v781 = vld [vmem:[%s1 + $0x8f0] sm:$0xf]
  %v782 = vld [vmem:[%s1 + $0x8f4] sm:$0xf]
  %v783 = vld [vmem:[%s1 + $0x8f8] sm:$0xf]
  %v784 = vld [vmem:[%s1 + $0x8fc] sm:$0xf]
  %v785 = vld [vmem:[%s1 + $0x900] sm:$0xf]
  %v786 = vld [vmem:[%s1 + $0x904] sm:$0xf]
  %v787 = vld [vmem:[%s1 + $0x908] sm:$0xf]
  %v788 = vld [vmem:[%s1 + $0x90c] sm:$0xf]
  %v789 = vld [vmem:[%s1 + $0x910] sm:$0xf]
  %v790 = vld [vmem:[%s1 + $0x914] sm:$0xf]
  %v791 = vld [vmem:[%s1 + $0x918] sm:$0xf]
  %v792 = vld [vmem:[%s1 + $0x91c] sm:$0xf]
  %v793 = vld [vmem:[%s1 + $0x920] sm:$0xf]
  %v794 = vld [vmem:[%s1 + $0x924] sm:$0xf]
  %v795 = vld [vmem:[%s1 + $0x928] sm:$0xf]
  %v796 = vld [vmem:[%s1 + $0x92c] sm:$0xf]
  %v797 = vld [vmem:[%s1 + $0x930] sm:$0xf]
  %v798 = vld [vmem:[%s1 + $0x934] sm:$0xf]
  %v799 = vld [vmem:[%s1 + $0x938] sm:$0xf]
  %v800 = vld [vmem:[%s1 + $0x93c] sm:$0xf]
  %v801 = vld [vmem:[%s1 + $0x940] sm:$0xf]
  %v802 = vld [vmem:[%s1 + $0x944] sm:$0xf]
  %v803 = vld [vmem:[%s1 + $0x948] sm:$0xf]
  %v804 = vld [vmem:[%s1 + $0x94c] sm:$0xf]
  %v805 = vld [vmem:[%s1 + $0x950] sm:$0xf]
  %v806 = vld [vmem:[%s1 + $0x954] sm:$0xf]
  %v807 = vld [vmem:[%s1 + $0x958] sm:$0xf]
  %v808 = vld [vmem:[%s1 + $0x95c] sm:$0xf]
  %v809 = vld [vmem:[%s1 + $0x960] sm:$0xf]
  %v810 = vld [vmem:[%s1 + $0x964] sm:$0xf]
  %v811 = vld [vmem:[%s1 + $0x968] sm:$0xf]
  %v812 = vld [vmem:[%s1 + $0x96c] sm:$0xf]
  %v813 = vld [vmem:[%s1 + $0x970] sm:$0xf]
  %v814 = vld [vmem:[%s1 + $0x974] sm:$0xf]
  %v815 = vld [vmem:[%s1 + $0x978] sm:$0xf]
  %v816 = vld [vmem:[%s1 + $0x97c] sm:$0xf]
  %v817 = vld [vmem:[%s1 + $0x980] sm:$0xf]
  %v818 = vld [vmem:[%s1 + $0x984] sm:$0xf]
  %v819 = vld [vmem:[%s1 + $0x988] sm:$0xf]
  %v820 = vld [vmem:[%s1 + $0x98c] sm:$0xf]
  %v821 = vld [vmem:[%s1 + $0x990] sm:$0xf]
  %v822 = vld [vmem:[%s1 + $0x994] sm:$0xf]
  %v823 = vld [vmem:[%s1 + $0x998] sm:$0xf]
  %v824 = vld [vmem:[%s1 + $0x99c] sm:$0xf]
  %v825 = vld [vmem:[%s1 + $0x9a0] sm:$0xf]
  %v826 = vld [vmem:[%s1 + $0x9a4] sm:$0xf]
  %v827 = vld [vmem:[%s1 + $0x9a8] sm:$0xf]
  %v828 = vld [vmem:[%s1 + $0x9ac] sm:$0xf]
  %v829 = vld [vmem:[%s1 + $0x9b0] sm:$0xf]
  %v830 = vld [vmem:[%s1 + $0x9b4] sm:$0xf]
  %v831 = vld [vmem:[%s1 + $0x9b8] sm:$0xf]
  %v832 = vld [vmem:[%s1 + $0x9bc] sm:$0xf]
  %v833 = vld [vmem:[%s1 + $0x9c0] sm:$0xf]
  %v834 = vld [vmem:[%s1 + $0x9c4] sm:$0xf]
  %v835 = vld [vmem:[%s1 + $0x9c8] sm:$0xf]
  %v836 = vld [vmem:[%s1 + $0x9cc] sm:$0xf]
  %v837 = vld [vmem:[%s1 + $0x9d0] sm:$0xf]
  %v838 = vld [vmem:[%s1 + $0x9d4] sm:$0xf]
  %v839 = vld [vmem:[%s1 + $0x9d8] sm:$0xf]
  %v840 = vld [vmem:[%s1 + $0x9dc] sm:$0xf]
  %v841 = vld [vmem:[%s1 + $0x9e0] sm:$0xf]
  %v842 = vld [vmem:[%s1 + $0x9e4] sm:$0xf]
  %v843 = vld [vmem:[%s1 + $0x9e8] sm:$0xf]
  %v844 = vld [vmem:[%s1 + $0x9ec] sm:$0xf]
  %v845 = vld [vmem:[%s1 + $0x9f0] sm:$0xf]
  %v846 = vld [vmem:[%s1 + $0x9f4] sm:$0xf]
  %v847 = vld [vmem:[%s1 + $0x9f8] sm:$0xf]
  %v848 = vld [vmem:[%s1 + $0x9fc] sm:$0xf]
  %v849 = vld [vmem:[%s1 + $0xa00] sm:$0xf]
  %v850 = vld [vmem:[%s1 + $0xa04] sm:$0xf]
  %v851 = vld [vmem:[%s1 + $0xa08] sm:$0xf]
  %v852 = vld [vmem:[%s1 + $0xa0c] sm:$0xf]
  %v853 = vld [vmem:[%s1 + $0xa10] sm:$0xf]
  %v854 = vld [vmem:[%s1 + $0xa14] sm:$0xf]
  %v855 = vld [vmem:[%s1 + $0xa18] sm:$0xf]
  %v856 = vld [vmem:[%s1 + $0xa1c] sm:$0xf]
  %v857 = vld [vmem:[%s1 + $0xa20] sm:$0xf]
  %v858 = vld [vmem:[%s1 + $0xa24] sm:$0xf]
  %v859 = vld [vmem:[%s1 + $0xa28] sm:$0xf]
  %v860 = vld [vmem:[%s1 + $0xa2c] sm:$0xf]
  %v861 = vld [vmem:[%s1 + $0xa30] sm:$0xf]
  %v862 = vld [vmem:[%s1 + $0xa34] sm:$0xf]
  %v863 = vld [vmem:[%s1 + $0xa38] sm:$0xf]
  %v864 = vld [vmem:[%s1 + $0xa3c] sm:$0xf]
  %v865 = vld [vmem:[%s1 + $0xa40] sm:$0xf]
  %v866 = vld [vmem:[%s1 + $0xa44] sm:$0xf]
  %v867 = vld [vmem:[%s1 + $0xa48] sm:$0xf]
  %v868 = vld [vmem:[%s1 + $0xa4c] sm:$0xf]
  %v869 = vld [vmem:[%s1 + $0xa50] sm:$0xf]
  %v870 = vld [vmem:[%s1 + $0xa54] sm:$0xf]
  %v871 = vld [vmem:[%s1 + $0xa58] sm:$0xf]
  %v872 = vld [vmem:[%s1 + $0xa5c] sm:$0xf]
  %v873 = vld [vmem:[%s1 + $0xa60] sm:$0xf]
  %v874 = vld [vmem:[%s1 + $0xa64] sm:$0xf]
  %v875 = vld [vmem:[%s1 + $0xa68] sm:$0xf]
  %v876 = vld [vmem:[%s1 + $0xa6c] sm:$0xf]
  %v877 = vld [vmem:[%s1 + $0xa70] sm:$0xf]
  %v878 = vld [vmem:[%s1 + $0xa74] sm:$0xf]
  %v879 = vld [vmem:[%s1 + $0xa78] sm:$0xf]
  %v880 = vld [vmem:[%s1 + $0xa7c] sm:$0xf]
  %v881 = vld [vmem:[%s1 + $0xa80] sm:$0xf]
  %v882 = vld [vmem:[%s1 + $0xa84] sm:$0xf]
  %v883 = vld [vmem:[%s1 + $0xa88] sm:$0xf]
  %v884 = vld [vmem:[%s1 + $0xa8c] sm:$0xf]
  %v885 = vld [vmem:[%s1 + $0xa90] sm:$0xf]
  %v886 = vld [vmem:[%s1 + $0xa94] sm:$0xf]
  %v887 = vld [vmem:[%s1 + $0xa98] sm:$0xf]
  %v888 = vld [vmem:[%s1 + $0xa9c] sm:$0xf]
  %v889 = vld [vmem:[%s1 + $0xaa0] sm:$0xf]
  %v890 = vld [vmem:[%s1 + $0xaa4] sm:$0xf]
  %v891 = vld [vmem:[%s1 + $0xaa8] sm:$0xf]
  %v892 = vld [vmem:[%s1 + $0xaac] sm:$0xf]
  %v893 = vld [vmem:[%s1 + $0xab0] sm:$0xf]
  %v894 = vld [vmem:[%s1 + $0xab4] sm:$0xf]
  %v895 = vld [vmem:[%s1 + $0xab8] sm:$0xf]
  %v896 = vld [vmem:[%s1 + $0xabc] sm:$0xf]
  %v897 = vld [vmem:[%s1 + $0xac0] sm:$0xf]
  %v898 = vld [vmem:[%s1 + $0xac4] sm:$0xf]
  %v899 = vld [vmem:[%s1 + $0xac8] sm:$0xf]
  %v900 = vld [vmem:[%s1 + $0xacc] sm:$0xf]
  %v901 = vld [vmem:[%s1 + $0xad0] sm:$0xf]
  %v902 = vld [vmem:[%s1 + $0xad4] sm:$0xf]
  %v903 = vld [vmem:[%s1 + $0xad8] sm:$0xf]
  %v904 = vld [vmem:[%s1 + $0xadc] sm:$0xf]
  %v905 = vld [vmem:[%s1 + $0xae0] sm:$0xf]
  %v906 = vld [vmem:[%s1 + $0xae4] sm:$0xf]
  %v907 = vld [vmem:[%s1 + $0xae8] sm:$0xf]
  %v908 = vld [vmem:[%s1 + $0xaec] sm:$0xf]
  %v909 = vld [vmem:[%s1 + $0xaf0] sm:$0xf]
  %v910 = vld [vmem:[%s1 + $0xaf4] sm:$0xf]
  %v911 = vld [vmem:[%s1 + $0xaf8] sm:$0xf]
  %v912 = vld [vmem:[%s1 + $0xafc] sm:$0xf]
  %v913 = vld [vmem:[%s1 + $0xb00] sm:$0xf]
  %v914 = vld [vmem:[%s1 + $0xb04] sm:$0xf]
  %v915 = vld [vmem:[%s1 + $0xb08] sm:$0xf]
  %v916 = vld [vmem:[%s1 + $0xb0c] sm:$0xf]
  %v917 = vld [vmem:[%s1 + $0xb10] sm:$0xf]
  %v918 = vld [vmem:[%s1 + $0xb14] sm:$0xf]
  %v919 = vld [vmem:[%s1 + $0xb18] sm:$0xf]
  %v920 = vld [vmem:[%s1 + $0xb1c] sm:$0xf]
  %v921 = vld [vmem:[%s1 + $0xb20] sm:$0xf]
  %v922 = vld [vmem:[%s1 + $0xb24] sm:$0xf]
  %v923 = vld [vmem:[%s1 + $0xb28] sm:$0xf]
  %v924 = vld [vmem:[%s1 + $0xb2c] sm:$0xf]
  %v925 = vld [vmem:[%s1 + $0xb30] sm:$0xf]
  %v926 = vld [vmem:[%s1 + $0xb34] sm:$0xf]
  %v927 = vld [vmem:[%s1 + $0xb38] sm:$0xf]
  %v928 = vld [vmem:[%s1 + $0xb3c] sm:$0xf]
  %v929 = vld [vmem:[%s1 + $0xb40] sm:$0xf]
  %v930 = vld [vmem:[%s1 + $0xb44] sm:$0xf]
  %v931 = vld [vmem:[%s1 + $0xb48] sm:$0xf]
  %v932 = vld [vmem:[%s1 + $0xb4c] sm:$0xf]
  %v933 = vld [vmem:[%s1 + $0xb50] sm:$0xf]
  %v934 = vld [vmem:[%s1 + $0xb54] sm:$0xf]
  %v935 = vld [vmem:[%s1 + $0xb58] sm:$0xf]
  %v936 = vld [vmem:[%s1 + $0xb5c] sm:$0xf]
  %v937 = vld [vmem:[%s1 + $0xb60] sm:$0xf]
  %v938 = vld [vmem:[%s1 + $0xb64] sm:$0xf]
  %v939 = vld [vmem:[%s1 + $0xb68] sm:$0xf]
  %v940 = vld [vmem:[%s1 + $0xb6c] sm:$0xf]
  %v941 = vld [vmem:[%s1 + $0xb70] sm:$0xf]
  %v942 = vld [vmem:[%s1 + $0xb74] sm:$0xf]
  %v943 = vld [vmem:[%s1 + $0xb78] sm:$0xf]
  %v944 = vld [vmem:[%s1 + $0xb7c] sm:$0xf]
  %v945 = vld [vmem:[%s1 + $0xb80] sm:$0xf]
  %v946 = vld [vmem:[%s1 + $0xb84] sm:$0xf]
  %v947 = vld [vmem:[%s1 + $0xb88] sm:$0xf]
  %v948 = vld [vmem:[%s1 + $0xb8c] sm:$0xf]
  %v949 = vld [vmem:[%s1 + $0xb90] sm:$0xf]
  %v950 = vld [vmem:[%s1 + $0xb94] sm:$0xf]
  %v951 = vld [vmem:[%s1 + $0xb98] sm:$0xf]
  %v952 = vld [vmem:[%s1 + $0xb9c] sm:$0xf]
  %v953 = vld [vmem:[%s1 + $0xba0] sm:$0xf]
  %v954 = vld [vmem:[%s1 + $0xba4] sm:$0xf]
  %v955 = vld [vmem:[%s1 + $0xba8] sm:$0xf]
  %v956 = vld [vmem:[%s1 + $0xbac] sm:$0xf]
  %v957 = vld [vmem:[%s1 + $0xbb0] sm:$0xf]
  %v958 = vld [vmem:[%s1 + $0xbb4] sm:$0xf]
  %v959 = vld [vmem:[%s1 + $0xbb8] sm:$0xf]
  %v960 = vld [vmem:[%s1 + $0xbbc] sm:$0xf]
  %v961 = vld [vmem:[%s1 + $0xbc0] sm:$0xf]
  %v962 = vld [vmem:[%s1 + $0xbc4] sm:$0xf]
  %v963 = vld [vmem:[%s1 + $0xbc8] sm:$0xf]
  %v964 = vld [vmem:[%s1 + $0xbcc] sm:$0xf]
  %v965 = vld [vmem:[%s1 + $0xbd0] sm:$0xf]
  %v966 = vld [vmem:[%s1 + $0xbd4] sm:$0xf]
  %v967 = vld [vmem:[%s1 + $0xbd8] sm:$0xf]
  %v968 = vld [vmem:[%s1 + $0xbdc] sm:$0xf]
  %v969 = vld [vmem:[%s1 + $0xbe0] sm:$0xf]
  %v970 = vld [vmem:[%s1 + $0xbe4] sm:$0xf]
  %v971 = vld [vmem:[%s1 + $0xbe8] sm:$0xf]
  %v972 = vld [vmem:[%s1 + $0xbec] sm:$0xf]
  %v973 = vld [vmem:[%s1 + $0xbf0] sm:$0xf]
  %v974 = vld [vmem:[%s1 + $0xbf4] sm:$0xf]
  %v975 = vld [vmem:[%s1 + $0xbf8] sm:$0xf]
  %v976 = vld [vmem:[%s1 + $0xbfc] sm:$0xf]
  %v977 = vld [vmem:[%s1 + $0xc00] sm:$0xf]
  %v978 = vld [vmem:[%s1 + $0xc04] sm:$0xf]
  %v979 = vld [vmem:[%s1 + $0xc08] sm:$0xf]
  %v980 = vld [vmem:[%s1 + $0xc0c] sm:$0xf]
  %v981 = vld [vmem:[%s1 + $0xc10] sm:$0xf]
  %v982 = vld [vmem:[%s1 + $0xc14] sm:$0xf]
  %v983 = vld [vmem:[%s1 + $0xc18] sm:$0xf]
  %v984 = vld [vmem:[%s1 + $0xc1c] sm:$0xf]
  %v985 = vld [vmem:[%s2] sm:$0x1]
  %v987 = vperm.slane %v985, 0
  %v1765 = vunpack.c.l.b16 %v209
  %v1766 = vunpack.c.l.b16 %v210
  %v1767 = vunpack.c.l.b16 %v211
  %v1768 = vunpack.c.l.b16 %v212
  %v1769 = vunpack.c.l.b16 %v213
  %v1770 = vunpack.c.l.b16 %v214
  %v1771 = vunpack.c.l.b16 %v215
  %v1772 = vunpack.c.l.b16 %v216
  %v1773 = vunpack.c.l.b16 %v217
  %v1774 = vunpack.c.l.b16 %v218
  %v1775 = vunpack.c.l.b16 %v219
  %v1776 = vunpack.c.l.b16 %v220
  %v1777 = vunpack.c.l.b16 %v221
  %v1778 = vunpack.c.l.b16 %v222
  %v1779 = vunpack.c.l.b16 %v223
  %v1780 = vunpack.c.l.b16 %v224
  %v1781 = vunpack.c.l.b16 %v225
  %v1782 = vunpack.c.l.b16 %v226
  %v1783 = vunpack.c.l.b16 %v227
  %v1784 = vunpack.c.l.b16 %v228
  %v1785 = vunpack.c.l.b16 %v229
  %v1786 = vunpack.c.l.b16 %v230
  %v1787 = vunpack.c.l.b16 %v231
  %v1788 = vunpack.c.l.b16 %v232
  %v1789 = vunpack.c.l.b16 %v233
  %v1790 = vunpack.c.l.b16 %v234
  %v1791 = vunpack.c.l.b16 %v235
  %v1792 = vunpack.c.l.b16 %v236
  %v1793 = vunpack.c.l.b16 %v237
  %v1794 = vunpack.c.l.b16 %v238
  %v1795 = vunpack.c.l.b16 %v239
  %v1796 = vunpack.c.l.b16 %v240
  %v1797 = vunpack.c.l.b16 %v241
  %v1798 = vunpack.c.l.b16 %v242
  %v1799 = vunpack.c.l.b16 %v243
  %v1800 = vunpack.c.l.b16 %v244
  %v1801 = vunpack.c.l.b16 %v245
  %v1802 = vunpack.c.l.b16 %v246
  %v1803 = vunpack.c.l.b16 %v247
  %v1804 = vunpack.c.l.b16 %v248
  %v1805 = vunpack.c.l.b16 %v249
  %v1806 = vunpack.c.l.b16 %v250
  %v1807 = vunpack.c.l.b16 %v251
  %v1808 = vunpack.c.l.b16 %v252
  %v1809 = vunpack.c.l.b16 %v253
  %v1810 = vunpack.c.l.b16 %v254
  %v1811 = vunpack.c.l.b16 %v255
  %v1812 = vunpack.c.l.b16 %v256
  %v1813 = vunpack.c.l.b16 %v257
  %v1814 = vunpack.c.l.b16 %v258
  %v1815 = vunpack.c.l.b16 %v259
  %v1816 = vunpack.c.l.b16 %v260
  %v1817 = vunpack.c.l.b16 %v261
  %v1818 = vunpack.c.l.b16 %v262
  %v1819 = vunpack.c.l.b16 %v263
  %v1820 = vunpack.c.l.b16 %v264
  %v1821 = vunpack.c.l.b16 %v265
  %v1822 = vunpack.c.l.b16 %v266
  %v1823 = vunpack.c.l.b16 %v267
  %v1824 = vunpack.c.l.b16 %v268
  %v1825 = vunpack.c.l.b16 %v269
  %v1826 = vunpack.c.l.b16 %v270
  %v1827 = vunpack.c.l.b16 %v271
  %v1828 = vunpack.c.l.b16 %v272
  %v1829 = vunpack.c.l.b16 %v273
  %v1830 = vunpack.c.l.b16 %v274
  %v1831 = vunpack.c.l.b16 %v275
  %v1832 = vunpack.c.l.b16 %v276
  %v1833 = vunpack.c.l.b16 %v277
  %v1834 = vunpack.c.l.b16 %v278
  %v1835 = vunpack.c.l.b16 %v279
  %v1836 = vunpack.c.l.b16 %v280
  %v1837 = vunpack.c.l.b16 %v281
  %v1838 = vunpack.c.l.b16 %v282
  %v1839 = vunpack.c.l.b16 %v283
  %v1840 = vunpack.c.l.b16 %v284
  %v1841 = vunpack.c.l.b16 %v285
  %v1842 = vunpack.c.l.b16 %v286
  %v1843 = vunpack.c.l.b16 %v287
  %v1844 = vunpack.c.l.b16 %v288
  %v1845 = vunpack.c.l.b16 %v289
  %v1846 = vunpack.c.l.b16 %v290
  %v1847 = vunpack.c.l.b16 %v291
  %v1848 = vunpack.c.l.b16 %v292
  %v1849 = vunpack.c.l.b16 %v293
  %v1850 = vunpack.c.l.b16 %v294
  %v1851 = vunpack.c.l.b16 %v295
  %v1852 = vunpack.c.l.b16 %v296
  %v1853 = vunpack.c.l.b16 %v297
  %v1854 = vunpack.c.l.b16 %v298
  %v1855 = vunpack.c.l.b16 %v299
  %v1856 = vunpack.c.l.b16 %v300
  %v1857 = vunpack.c.l.b16 %v301
  %v1858 = vunpack.c.l.b16 %v302
  %v1859 = vunpack.c.l.b16 %v303
  %v1860 = vunpack.c.l.b16 %v304
  %v1861 = vunpack.c.l.b16 %v305
  %v1862 = vunpack.c.l.b16 %v306
  %v1863 = vunpack.c.l.b16 %v307
  %v1864 = vunpack.c.l.b16 %v308
  %v1865 = vunpack.c.l.b16 %v309
  %v1866 = vunpack.c.l.b16 %v310
  %v1867 = vunpack.c.l.b16 %v311
  %v1868 = vunpack.c.l.b16 %v312
  %v1869 = vunpack.c.l.b16 %v313
  %v1870 = vunpack.c.l.b16 %v314
  %v1871 = vunpack.c.l.b16 %v315
  %v1872 = vunpack.c.l.b16 %v316
  %v1873 = vunpack.c.l.b16 %v317
  %v1874 = vunpack.c.l.b16 %v318
  %v1875 = vunpack.c.l.b16 %v319
  %v1876 = vunpack.c.l.b16 %v320
  %v1877 = vunpack.c.l.b16 %v321
  %v1878 = vunpack.c.l.b16 %v322
  %v1879 = vunpack.c.l.b16 %v323
  %v1880 = vunpack.c.l.b16 %v324
  %v1881 = vunpack.c.l.b16 %v325
  %v1882 = vunpack.c.l.b16 %v326
  %v1883 = vunpack.c.l.b16 %v327
  %v1884 = vunpack.c.l.b16 %v328
  %v1885 = vunpack.c.l.b16 %v329
  %v1886 = vunpack.c.l.b16 %v330
  %v1887 = vunpack.c.l.b16 %v331
  %v1888 = vunpack.c.l.b16 %v332
  %v1889 = vunpack.c.l.b16 %v333
  %v1890 = vunpack.c.l.b16 %v334
  %v1891 = vunpack.c.l.b16 %v335
  %v1892 = vunpack.c.l.b16 %v336
  %v1893 = vunpack.c.l.b16 %v337
  %v1894 = vunpack.c.l.b16 %v338
  %v1895 = vunpack.c.l.b16 %v339
  %v1896 = vunpack.c.l.b16 %v340
  %v1897 = vunpack.c.l.b16 %v341
  %v1898 = vunpack.c.l.b16 %v342
  %v1899 = vunpack.c.l.b16 %v343
  %v1900 = vunpack.c.l.b16 %v344
  %v1901 = vunpack.c.l.b16 %v345
  %v1902 = vunpack.c.l.b16 %v346
  %v1903 = vunpack.c.l.b16 %v347
  %v1904 = vunpack.c.l.b16 %v348
  %v1905 = vunpack.c.l.b16 %v349
  %v1906 = vunpack.c.l.b16 %v350
  %v1907 = vunpack.c.l.b16 %v351
  %v1908 = vunpack.c.l.b16 %v352
  %v1909 = vunpack.c.l.b16 %v353
  %v1910 = vunpack.c.l.b16 %v354
  %v1911 = vunpack.c.l.b16 %v355
  %v1912 = vunpack.c.l.b16 %v356
  %v1913 = vunpack.c.l.b16 %v357
  %v1914 = vunpack.c.l.b16 %v358
  %v1915 = vunpack.c.l.b16 %v359
  %v1916 = vunpack.c.l.b16 %v360
  %v1917 = vunpack.c.l.b16 %v361
  %v1918 = vunpack.c.l.b16 %v362
  %v1919 = vunpack.c.l.b16 %v363
  %v1920 = vunpack.c.l.b16 %v364
  %v1921 = vunpack.c.l.b16 %v365
  %v1922 = vunpack.c.l.b16 %v366
  %v1923 = vunpack.c.l.b16 %v367
  %v1924 = vunpack.c.l.b16 %v368
  %v1925 = vunpack.c.l.b16 %v369
  %v1926 = vunpack.c.l.b16 %v370
  %v1927 = vunpack.c.l.b16 %v371
  %v1928 = vunpack.c.l.b16 %v372
  %v1929 = vunpack.c.l.b16 %v373
  %v1930 = vunpack.c.l.b16 %v374
  %v1931 = vunpack.c.l.b16 %v375
  %v1932 = vunpack.c.l.b16 %v376
  %v1933 = vunpack.c.l.b16 %v377
  %v1934 = vunpack.c.l.b16 %v378
  %v1935 = vunpack.c.l.b16 %v379
  %v1936 = vunpack.c.l.b16 %v380
  %v1937 = vunpack.c.l.b16 %v381
  %v1938 = vunpack.c.l.b16 %v382
  %v1939 = vunpack.c.l.b16 %v383
  %v1940 = vunpack.c.l.b16 %v384
  %v1941 = vunpack.c.l.b16 %v385
  %v1942 = vunpack.c.l.b16 %v386
  %v1943 = vunpack.c.l.b16 %v387
  %v1944 = vunpack.c.l.b16 %v388
  %v1945 = vunpack.c.l.b16 %v389
  %v1946 = vunpack.c.l.b16 %v390
  %v1947 = vunpack.c.l.b16 %v391
  %v1948 = vunpack.c.l.b16 %v392
  %v1949 = vunpack.c.l.b16 %v393
  %v1950 = vunpack.c.l.b16 %v394
  %v1951 = vunpack.c.l.b16 %v395
  %v1952 = vunpack.c.l.b16 %v396
  %v1953 = vunpack.c.l.b16 %v397
  %v1954 = vunpack.c.l.b16 %v398
  %v1955 = vunpack.c.l.b16 %v399
  %v1956 = vunpack.c.l.b16 %v400
  %v1957 = vunpack.c.l.b16 %v401
  %v1958 = vunpack.c.l.b16 %v402
  %v1959 = vunpack.c.l.b16 %v403
  %v1960 = vunpack.c.l.b16 %v404
  %v1961 = vunpack.c.l.b16 %v405
  %v1962 = vunpack.c.l.b16 %v406
  %v1963 = vunpack.c.l.b16 %v407
  %v1964 = vunpack.c.l.b16 %v408
  %v1965 = vunpack.c.l.b16 %v409
  %v1966 = vunpack.c.l.b16 %v410
  %v1967 = vunpack.c.l.b16 %v411
  %v1968 = vunpack.c.l.b16 %v412
  %v1969 = vunpack.c.l.b16 %v413
  %v1970 = vunpack.c.l.b16 %v414
  %v1971 = vunpack.c.l.b16 %v415
  %v1972 = vunpack.c.l.b16 %v416
  %v1973 = vunpack.c.l.b16 %v417
  %v1974 = vunpack.c.l.b16 %v418
  %v1975 = vunpack.c.l.b16 %v419
  %v1976 = vunpack.c.l.b16 %v420
  %v1977 = vunpack.c.l.b16 %v421
  %v1978 = vunpack.c.l.b16 %v422
  %v1979 = vunpack.c.l.b16 %v423
  %v1980 = vunpack.c.l.b16 %v424
  %v1981 = vunpack.c.l.b16 %v425
  %v1982 = vunpack.c.l.b16 %v426
  %v1983 = vunpack.c.l.b16 %v427
  %v1984 = vunpack.c.l.b16 %v428
  %v1985 = vunpack.c.l.b16 %v429
  %v1986 = vunpack.c.l.b16 %v430
  %v1987 = vunpack.c.l.b16 %v431
  %v1988 = vunpack.c.l.b16 %v432
  %v1989 = vunpack.c.l.b16 %v433
  %v1990 = vunpack.c.l.b16 %v434
  %v1991 = vunpack.c.l.b16 %v435
  %v1992 = vunpack.c.l.b16 %v436
  %v1993 = vunpack.c.l.b16 %v437
  %v1994 = vunpack.c.l.b16 %v438
  %v1995 = vunpack.c.l.b16 %v439
  %v1996 = vunpack.c.l.b16 %v440
  %v1997 = vunpack.c.l.b16 %v441
  %v1998 = vunpack.c.l.b16 %v442
  %v1999 = vunpack.c.l.b16 %v443
  %v2000 = vunpack.c.l.b16 %v444
  %v2001 = vunpack.c.l.b16 %v445
  %v2002 = vunpack.c.l.b16 %v446
  %v2003 = vunpack.c.l.b16 %v447
  %v2004 = vunpack.c.l.b16 %v448
  %v2005 = vunpack.c.l.b16 %v449
  %v2006 = vunpack.c.l.b16 %v450
  %v2007 = vunpack.c.l.b16 %v451
  %v2008 = vunpack.c.l.b16 %v452
  %v2009 = vunpack.c.l.b16 %v453
  %v2010 = vunpack.c.l.b16 %v454
  %v2011 = vunpack.c.l.b16 %v455
  %v2012 = vunpack.c.l.b16 %v456
  %v2013 = vunpack.c.l.b16 %v457
  %v2014 = vunpack.c.l.b16 %v458
  %v2015 = vunpack.c.l.b16 %v459
  %v2016 = vunpack.c.l.b16 %v460
  %v2017 = vunpack.c.l.b16 %v461
  %v2018 = vunpack.c.l.b16 %v462
  %v2019 = vunpack.c.l.b16 %v463
  %v2020 = vunpack.c.l.b16 %v464
  %v2021 = vunpack.c.l.b16 %v465
  %v2022 = vunpack.c.l.b16 %v466
  %v2023 = vunpack.c.l.b16 %v467
  %v2024 = vunpack.c.l.b16 %v468
  %v2025 = vunpack.c.l.b16 %v469
  %v2026 = vunpack.c.l.b16 %v470
  %v2027 = vunpack.c.l.b16 %v471
  %v2028 = vunpack.c.l.b16 %v472
  %v2029 = vunpack.c.l.b16 %v473
  %v2030 = vunpack.c.l.b16 %v474
  %v2031 = vunpack.c.l.b16 %v475
  %v2032 = vunpack.c.l.b16 %v476
  %v2033 = vunpack.c.l.b16 %v477
  %v2034 = vunpack.c.l.b16 %v478
  %v2035 = vunpack.c.l.b16 %v479
  %v2036 = vunpack.c.l.b16 %v480
  %v2037 = vunpack.c.l.b16 %v481
  %v2038 = vunpack.c.l.b16 %v482
  %v2039 = vunpack.c.l.b16 %v483
  %v2040 = vunpack.c.l.b16 %v484
  %v2041 = vunpack.c.l.b16 %v485
  %v2042 = vunpack.c.l.b16 %v486
  %v2043 = vunpack.c.l.b16 %v487
  %v2044 = vunpack.c.l.b16 %v488
  %v2045 = vunpack.c.l.b16 %v489
  %v2046 = vunpack.c.l.b16 %v490
  %v2047 = vunpack.c.l.b16 %v491
  %v2048 = vunpack.c.l.b16 %v492
  %v2049 = vunpack.c.l.b16 %v493
  %v2050 = vunpack.c.l.b16 %v494
  %v2051 = vunpack.c.l.b16 %v495
  %v2052 = vunpack.c.l.b16 %v496
  %v2053 = vunpack.c.l.b16 %v497
  %v2054 = vunpack.c.l.b16 %v498
  %v2055 = vunpack.c.l.b16 %v499
  %v2056 = vunpack.c.l.b16 %v500
  %v2057 = vunpack.c.l.b16 %v501
  %v2058 = vunpack.c.l.b16 %v502
  %v2059 = vunpack.c.l.b16 %v503
  %v2060 = vunpack.c.l.b16 %v504
  %v2061 = vunpack.c.l.b16 %v505
  %v2062 = vunpack.c.l.b16 %v506
  %v2063 = vunpack.c.l.b16 %v507
  %v2064 = vunpack.c.l.b16 %v508
  %v2065 = vunpack.c.l.b16 %v509
  %v2066 = vunpack.c.l.b16 %v510
  %v2067 = vunpack.c.l.b16 %v511
  %v2068 = vunpack.c.l.b16 %v512
  %v2069 = vunpack.c.l.b16 %v513
  %v2070 = vunpack.c.l.b16 %v514
  %v2071 = vunpack.c.l.b16 %v515
  %v2072 = vunpack.c.l.b16 %v516
  %v2073 = vunpack.c.l.b16 %v517
  %v2074 = vunpack.c.l.b16 %v518
  %v2075 = vunpack.c.l.b16 %v519
  %v2076 = vunpack.c.l.b16 %v520
  %v2077 = vunpack.c.l.b16 %v521
  %v2078 = vunpack.c.l.b16 %v522
  %v2079 = vunpack.c.l.b16 %v523
  %v2080 = vunpack.c.l.b16 %v524
  %v2081 = vunpack.c.l.b16 %v525
  %v2082 = vunpack.c.l.b16 %v526
  %v2083 = vunpack.c.l.b16 %v527
  %v2084 = vunpack.c.l.b16 %v528
  %v2085 = vunpack.c.l.b16 %v529
  %v2086 = vunpack.c.l.b16 %v530
  %v2087 = vunpack.c.l.b16 %v531
  %v2088 = vunpack.c.l.b16 %v532
  %v2089 = vunpack.c.l.b16 %v533
  %v2090 = vunpack.c.l.b16 %v534
  %v2091 = vunpack.c.l.b16 %v535
  %v2092 = vunpack.c.l.b16 %v536
  %v2093 = vunpack.c.l.b16 %v537
  %v2094 = vunpack.c.l.b16 %v538
  %v2095 = vunpack.c.l.b16 %v539
  %v2096 = vunpack.c.l.b16 %v540
  %v2097 = vunpack.c.l.b16 %v541
  %v2098 = vunpack.c.l.b16 %v542
  %v2099 = vunpack.c.l.b16 %v543
  %v2100 = vunpack.c.l.b16 %v544
  %v2101 = vunpack.c.l.b16 %v545
  %v2102 = vunpack.c.l.b16 %v546
  %v2103 = vunpack.c.l.b16 %v547
  %v2104 = vunpack.c.l.b16 %v548
  %v2105 = vunpack.c.l.b16 %v549
  %v2106 = vunpack.c.l.b16 %v550
  %v2107 = vunpack.c.l.b16 %v551
  %v2108 = vunpack.c.l.b16 %v552
  %v2109 = vunpack.c.l.b16 %v553
  %v2110 = vunpack.c.l.b16 %v554
  %v2111 = vunpack.c.l.b16 %v555
  %v2112 = vunpack.c.l.b16 %v556
  %v2113 = vunpack.c.l.b16 %v557
  %v2114 = vunpack.c.l.b16 %v558
  %v2115 = vunpack.c.l.b16 %v559
  %v2116 = vunpack.c.l.b16 %v560
  %v2117 = vunpack.c.l.b16 %v561
  %v2118 = vunpack.c.l.b16 %v562
  %v2119 = vunpack.c.l.b16 %v563
  %v2120 = vunpack.c.l.b16 %v564
  %v2121 = vunpack.c.l.b16 %v565
  %v2122 = vunpack.c.l.b16 %v566
  %v2123 = vunpack.c.l.b16 %v567
  %v2124 = vunpack.c.l.b16 %v568
  %v2125 = vunpack.c.l.b16 %v569
  %v2126 = vunpack.c.l.b16 %v570
  %v2127 = vunpack.c.l.b16 %v571
  %v2128 = vunpack.c.l.b16 %v572
  %v2129 = vunpack.c.l.b16 %v573
  %v2130 = vunpack.c.l.b16 %v574
  %v2131 = vunpack.c.l.b16 %v575
  %v2132 = vunpack.c.l.b16 %v576
  %v2133 = vunpack.c.l.b16 %v577
  %v2134 = vunpack.c.l.b16 %v578
  %v2135 = vunpack.c.l.b16 %v579
  %v2136 = vunpack.c.l.b16 %v580
  %v2137 = vunpack.c.l.b16 %v581
  %v2138 = vunpack.c.l.b16 %v582
  %v2139 = vunpack.c.l.b16 %v583
  %v2140 = vunpack.c.l.b16 %v584
  %v2141 = vunpack.c.l.b16 %v585
  %v2142 = vunpack.c.l.b16 %v586
  %v2143 = vunpack.c.l.b16 %v587
  %v2144 = vunpack.c.l.b16 %v588
  %v2145 = vunpack.c.l.b16 %v589
  %v2146 = vunpack.c.l.b16 %v590
  %v2147 = vunpack.c.l.b16 %v591
  %v2148 = vunpack.c.l.b16 %v592
  %v2149 = vunpack.c.l.b16 %v593
  %v2150 = vunpack.c.l.b16 %v594
  %v2151 = vunpack.c.l.b16 %v595
  %v2152 = vunpack.c.l.b16 %v596
  %v2153 = vunpack.c.l.b16 %v597
  %v2154 = vunpack.c.l.b16 %v598
  %v2155 = vunpack.c.l.b16 %v599
  %v2156 = vunpack.c.l.b16 %v600
  %v2157 = vunpack.c.l.b16 %v601
  %v2158 = vunpack.c.l.b16 %v602
  %v2159 = vunpack.c.l.b16 %v603
  %v2160 = vunpack.c.l.b16 %v604
  %v2161 = vunpack.c.l.b16 %v605
  %v2162 = vunpack.c.l.b16 %v606
  %v2163 = vunpack.c.l.b16 %v607
  %v2164 = vunpack.c.l.b16 %v608
  %v2165 = vunpack.c.l.b16 %v609
  %v2166 = vunpack.c.l.b16 %v610
  %v2167 = vunpack.c.l.b16 %v611
  %v2168 = vunpack.c.l.b16 %v612
  %v2169 = vunpack.c.l.b16 %v613
  %v2170 = vunpack.c.l.b16 %v614
  %v2171 = vunpack.c.l.b16 %v615
  %v2172 = vunpack.c.l.b16 %v616
  %v2173 = vunpack.c.l.b16 %v617
  %v2174 = vunpack.c.l.b16 %v618
  %v2175 = vunpack.c.l.b16 %v619
  %v2176 = vunpack.c.l.b16 %v620
  %v2177 = vunpack.c.l.b16 %v621
  %v2178 = vunpack.c.l.b16 %v622
  %v2179 = vunpack.c.l.b16 %v623
  %v2180 = vunpack.c.l.b16 %v624
  %v2181 = vunpack.c.l.b16 %v625
  %v2182 = vunpack.c.l.b16 %v626
  %v2183 = vunpack.c.l.b16 %v627
  %v2184 = vunpack.c.l.b16 %v628
  %v2185 = vunpack.c.l.b16 %v629
  %v2186 = vunpack.c.l.b16 %v630
  %v2187 = vunpack.c.l.b16 %v631
  %v2188 = vunpack.c.l.b16 %v632
  %v2189 = vunpack.c.l.b16 %v633
  %v2190 = vunpack.c.l.b16 %v634
  %v2191 = vunpack.c.l.b16 %v635
  %v2192 = vunpack.c.l.b16 %v636
  %v2193 = vunpack.c.l.b16 %v637
  %v2194 = vunpack.c.l.b16 %v638
  %v2195 = vunpack.c.l.b16 %v639
  %v2196 = vunpack.c.l.b16 %v640
  %v2197 = vunpack.c.l.b16 %v641
  %v2198 = vunpack.c.l.b16 %v642
  %v2199 = vunpack.c.l.b16 %v643
  %v2200 = vunpack.c.l.b16 %v644
  %v2201 = vunpack.c.l.b16 %v645
  %v2202 = vunpack.c.l.b16 %v646
  %v2203 = vunpack.c.l.b16 %v647
  %v2204 = vunpack.c.l.b16 %v648
  %v2205 = vunpack.c.l.b16 %v649
  %v2206 = vunpack.c.l.b16 %v650
  %v2207 = vunpack.c.l.b16 %v651
  %v2208 = vunpack.c.l.b16 %v652
  %v2209 = vunpack.c.l.b16 %v653
  %v2210 = vunpack.c.l.b16 %v654
  %v2211 = vunpack.c.l.b16 %v655
  %v2212 = vunpack.c.l.b16 %v656
  %v2213 = vunpack.c.l.b16 %v657
  %v2214 = vunpack.c.l.b16 %v658
  %v2215 = vunpack.c.l.b16 %v659
  %v2216 = vunpack.c.l.b16 %v660
  %v2217 = vunpack.c.l.b16 %v661
  %v2218 = vunpack.c.l.b16 %v662
  %v2219 = vunpack.c.l.b16 %v663
  %v2220 = vunpack.c.l.b16 %v664
  %v2221 = vunpack.c.l.b16 %v665
  %v2222 = vunpack.c.l.b16 %v666
  %v2223 = vunpack.c.l.b16 %v667
  %v2224 = vunpack.c.l.b16 %v668
  %v2225 = vunpack.c.l.b16 %v669
  %v2226 = vunpack.c.l.b16 %v670
  %v2227 = vunpack.c.l.b16 %v671
  %v2228 = vunpack.c.l.b16 %v672
  %v2229 = vunpack.c.l.b16 %v673
  %v2230 = vunpack.c.l.b16 %v674
  %v2231 = vunpack.c.l.b16 %v675
  %v2232 = vunpack.c.l.b16 %v676
  %v2233 = vunpack.c.l.b16 %v677
  %v2234 = vunpack.c.l.b16 %v678
  %v2235 = vunpack.c.l.b16 %v679
  %v2236 = vunpack.c.l.b16 %v680
  %v2237 = vunpack.c.l.b16 %v681
  %v2238 = vunpack.c.l.b16 %v682
  %v2239 = vunpack.c.l.b16 %v683
  %v2240 = vunpack.c.l.b16 %v684
  %v2241 = vunpack.c.l.b16 %v685
  %v2242 = vunpack.c.l.b16 %v686
  %v2243 = vunpack.c.l.b16 %v687
  %v2244 = vunpack.c.l.b16 %v688
  %v2245 = vunpack.c.l.b16 %v689
  %v2246 = vunpack.c.l.b16 %v690
  %v2247 = vunpack.c.l.b16 %v691
  %v2248 = vunpack.c.l.b16 %v692
  %v2249 = vunpack.c.l.b16 %v693
  %v2250 = vunpack.c.l.b16 %v694
  %v2251 = vunpack.c.l.b16 %v695
  %v2252 = vunpack.c.l.b16 %v696
  %v2253 = vunpack.c.l.b16 %v697
  %v2254 = vunpack.c.l.b16 %v698
  %v2255 = vunpack.c.l.b16 %v699
  %v2256 = vunpack.c.l.b16 %v700
  %v2257 = vunpack.c.l.b16 %v701
  %v2258 = vunpack.c.l.b16 %v702
  %v2259 = vunpack.c.l.b16 %v703
  %v2260 = vunpack.c.l.b16 %v704
  %v2261 = vunpack.c.l.b16 %v705
  %v2262 = vunpack.c.l.b16 %v706
  %v2263 = vunpack.c.l.b16 %v707
  %v2264 = vunpack.c.l.b16 %v708
  %v2265 = vunpack.c.l.b16 %v709
  %v2266 = vunpack.c.l.b16 %v710
  %v2267 = vunpack.c.l.b16 %v711
  %v2268 = vunpack.c.l.b16 %v712
  %v2269 = vunpack.c.l.b16 %v713
  %v2270 = vunpack.c.l.b16 %v714
  %v2271 = vunpack.c.l.b16 %v715
  %v2272 = vunpack.c.l.b16 %v716
  %v2273 = vunpack.c.l.b16 %v717
  %v2274 = vunpack.c.l.b16 %v718
  %v2275 = vunpack.c.l.b16 %v719
  %v2276 = vunpack.c.l.b16 %v720
  %v2277 = vunpack.c.l.b16 %v721
  %v2278 = vunpack.c.l.b16 %v722
  %v2279 = vunpack.c.l.b16 %v723
  %v2280 = vunpack.c.l.b16 %v724
  %v2281 = vunpack.c.l.b16 %v725
  %v2282 = vunpack.c.l.b16 %v726
  %v2283 = vunpack.c.l.b16 %v727
  %v2284 = vunpack.c.l.b16 %v728
  %v2285 = vunpack.c.l.b16 %v729
  %v2286 = vunpack.c.l.b16 %v730
  %v2287 = vunpack.c.l.b16 %v731
  %v2288 = vunpack.c.l.b16 %v732
  %v2289 = vunpack.c.l.b16 %v733
  %v2290 = vunpack.c.l.b16 %v734
  %v2291 = vunpack.c.l.b16 %v735
  %v2292 = vunpack.c.l.b16 %v736
  %v2293 = vunpack.c.l.b16 %v737
  %v2294 = vunpack.c.l.b16 %v738
  %v2295 = vunpack.c.l.b16 %v739
  %v2296 = vunpack.c.l.b16 %v740
  %v2297 = vunpack.c.l.b16 %v741
  %v2298 = vunpack.c.l.b16 %v742
  %v2299 = vunpack.c.l.b16 %v743
  %v2300 = vunpack.c.l.b16 %v744
  %v2301 = vunpack.c.l.b16 %v745
  %v2302 = vunpack.c.l.b16 %v746
  %v2303 = vunpack.c.l.b16 %v747
  %v2304 = vunpack.c.l.b16 %v748
  %v2305 = vunpack.c.l.b16 %v749
  %v2306 = vunpack.c.l.b16 %v750
  %v2307 = vunpack.c.l.b16 %v751
  %v2308 = vunpack.c.l.b16 %v752
  %v2309 = vunpack.c.l.b16 %v753
  %v2310 = vunpack.c.l.b16 %v754
  %v2311 = vunpack.c.l.b16 %v755
  %v2312 = vunpack.c.l.b16 %v756
  %v2313 = vunpack.c.l.b16 %v757
  %v2314 = vunpack.c.l.b16 %v758
  %v2315 = vunpack.c.l.b16 %v759
  %v2316 = vunpack.c.l.b16 %v760
  %v2317 = vunpack.c.l.b16 %v761
  %v2318 = vunpack.c.l.b16 %v762
  %v2319 = vunpack.c.l.b16 %v763
  %v2320 = vunpack.c.l.b16 %v764
  %v2321 = vunpack.c.l.b16 %v765
  %v2322 = vunpack.c.l.b16 %v766
  %v2323 = vunpack.c.l.b16 %v767
  %v2324 = vunpack.c.l.b16 %v768
  %v2325 = vunpack.c.l.b16 %v769
  %v2326 = vunpack.c.l.b16 %v770
  %v2327 = vunpack.c.l.b16 %v771
  %v2328 = vunpack.c.l.b16 %v772
  %v2329 = vunpack.c.l.b16 %v773
  %v2330 = vunpack.c.l.b16 %v774
  %v2331 = vunpack.c.l.b16 %v775
  %v2332 = vunpack.c.l.b16 %v776
  %v2333 = vunpack.c.l.b16 %v777
  %v2334 = vunpack.c.l.b16 %v778
  %v2335 = vunpack.c.l.b16 %v779
  %v2336 = vunpack.c.l.b16 %v780
  %v2337 = vunpack.c.l.b16 %v781
  %v2338 = vunpack.c.l.b16 %v782
  %v2339 = vunpack.c.l.b16 %v783
  %v2340 = vunpack.c.l.b16 %v784
  %v2341 = vunpack.c.l.b16 %v785
  %v2342 = vunpack.c.l.b16 %v786
  %v2343 = vunpack.c.l.b16 %v787
  %v2344 = vunpack.c.l.b16 %v788
  %v2345 = vunpack.c.l.b16 %v789
  %v2346 = vunpack.c.l.b16 %v790
  %v2347 = vunpack.c.l.b16 %v791
  %v2348 = vunpack.c.l.b16 %v792
  %v2349 = vunpack.c.l.b16 %v793
  %v2350 = vunpack.c.l.b16 %v794
  %v2351 = vunpack.c.l.b16 %v795
  %v2352 = vunpack.c.l.b16 %v796
  %v2353 = vunpack.c.l.b16 %v797
  %v2354 = vunpack.c.l.b16 %v798
  %v2355 = vunpack.c.l.b16 %v799
  %v2356 = vunpack.c.l.b16 %v800
  %v2357 = vunpack.c.l.b16 %v801
  %v2358 = vunpack.c.l.b16 %v802
  %v2359 = vunpack.c.l.b16 %v803
  %v2360 = vunpack.c.l.b16 %v804
  %v2361 = vunpack.c.l.b16 %v805
  %v2362 = vunpack.c.l.b16 %v806
  %v2363 = vunpack.c.l.b16 %v807
  %v2364 = vunpack.c.l.b16 %v808
  %v2365 = vunpack.c.l.b16 %v809
  %v2366 = vunpack.c.l.b16 %v810
  %v2367 = vunpack.c.l.b16 %v811
  %v2368 = vunpack.c.l.b16 %v812
  %v2369 = vunpack.c.l.b16 %v813
  %v2370 = vunpack.c.l.b16 %v814
  %v2371 = vunpack.c.l.b16 %v815
  %v2372 = vunpack.c.l.b16 %v816
  %v2373 = vunpack.c.l.b16 %v817
  %v2374 = vunpack.c.l.b16 %v818
  %v2375 = vunpack.c.l.b16 %v819
  %v2376 = vunpack.c.l.b16 %v820
  %v2377 = vunpack.c.l.b16 %v821
  %v2378 = vunpack.c.l.b16 %v822
  %v2379 = vunpack.c.l.b16 %v823
  %v2380 = vunpack.c.l.b16 %v824
  %v2381 = vunpack.c.l.b16 %v825
  %v2382 = vunpack.c.l.b16 %v826
  %v2383 = vunpack.c.l.b16 %v827
  %v2384 = vunpack.c.l.b16 %v828
  %v2385 = vunpack.c.l.b16 %v829
  %v2386 = vunpack.c.l.b16 %v830
  %v2387 = vunpack.c.l.b16 %v831
  %v2388 = vunpack.c.l.b16 %v832
  %v2389 = vunpack.c.l.b16 %v833
  %v2390 = vunpack.c.l.b16 %v834
  %v2391 = vunpack.c.l.b16 %v835
  %v2392 = vunpack.c.l.b16 %v836
  %v2393 = vunpack.c.l.b16 %v837
  %v2394 = vunpack.c.l.b16 %v838
  %v2395 = vunpack.c.l.b16 %v839
  %v2396 = vunpack.c.l.b16 %v840
  %v2397 = vunpack.c.l.b16 %v841
  %v2398 = vunpack.c.l.b16 %v842
  %v2399 = vunpack.c.l.b16 %v843
  %v2400 = vunpack.c.l.b16 %v844
  %v2401 = vunpack.c.l.b16 %v845
  %v2402 = vunpack.c.l.b16 %v846
  %v2403 = vunpack.c.l.b16 %v847
  %v2404 = vunpack.c.l.b16 %v848
  %v2405 = vunpack.c.l.b16 %v849
  %v2406 = vunpack.c.l.b16 %v850
  %v2407 = vunpack.c.l.b16 %v851
  %v2408 = vunpack.c.l.b16 %v852
  %v2409 = vunpack.c.l.b16 %v853
  %v2410 = vunpack.c.l.b16 %v854
  %v2411 = vunpack.c.l.b16 %v855
  %v2412 = vunpack.c.l.b16 %v856
  %v2413 = vunpack.c.l.b16 %v857
  %v2414 = vunpack.c.l.b16 %v858
  %v2415 = vunpack.c.l.b16 %v859
  %v2416 = vunpack.c.l.b16 %v860
  %v2417 = vunpack.c.l.b16 %v861
  %v2418 = vunpack.c.l.b16 %v862
  %v2419 = vunpack.c.l.b16 %v863
  %v2420 = vunpack.c.l.b16 %v864
  %v2421 = vunpack.c.l.b16 %v865
  %v2422 = vunpack.c.l.b16 %v866
  %v2423 = vunpack.c.l.b16 %v867
  %v2424 = vunpack.c.l.b16 %v868
  %v2425 = vunpack.c.l.b16 %v869
  %v2426 = vunpack.c.l.b16 %v870
  %v2427 = vunpack.c.l.b16 %v871
  %v2428 = vunpack.c.l.b16 %v872
  %v2429 = vunpack.c.l.b16 %v873
  %v2430 = vunpack.c.l.b16 %v874
  %v2431 = vunpack.c.l.b16 %v875
  %v2432 = vunpack.c.l.b16 %v876
  %v2433 = vunpack.c.l.b16 %v877
  %v2434 = vunpack.c.l.b16 %v878
  %v2435 = vunpack.c.l.b16 %v879
  %v2436 = vunpack.c.l.b16 %v880
  %v2437 = vunpack.c.l.b16 %v881
  %v2438 = vunpack.c.l.b16 %v882
  %v2439 = vunpack.c.l.b16 %v883
  %v2440 = vunpack.c.l.b16 %v884
  %v2441 = vunpack.c.l.b16 %v885
  %v2442 = vunpack.c.l.b16 %v886
  %v2443 = vunpack.c.l.b16 %v887
  %v2444 = vunpack.c.l.b16 %v888
  %v2445 = vunpack.c.l.b16 %v889
  %v2446 = vunpack.c.l.b16 %v890
  %v2447 = vunpack.c.l.b16 %v891
  %v2448 = vunpack.c.l.b16 %v892
  %v2449 = vunpack.c.l.b16 %v893
  %v2450 = vunpack.c.l.b16 %v894
  %v2451 = vunpack.c.l.b16 %v895
  %v2452 = vunpack.c.l.b16 %v896
  %v2453 = vunpack.c.l.b16 %v897
  %v2454 = vunpack.c.l.b16 %v898
  %v2455 = vunpack.c.l.b16 %v899
  %v2456 = vunpack.c.l.b16 %v900
  %v2457 = vunpack.c.l.b16 %v901
  %v2458 = vunpack.c.l.b16 %v902
  %v2459 = vunpack.c.l.b16 %v903
  %v2460 = vunpack.c.l.b16 %v904
  %v2461 = vunpack.c.l.b16 %v905
  %v2462 = vunpack.c.l.b16 %v906
  %v2463 = vunpack.c.l.b16 %v907
  %v2464 = vunpack.c.l.b16 %v908
  %v2465 = vunpack.c.l.b16 %v909
  %v2466 = vunpack.c.l.b16 %v910
  %v2467 = vunpack.c.l.b16 %v911
  %v2468 = vunpack.c.l.b16 %v912
  %v2469 = vunpack.c.l.b16 %v913
  %v2470 = vunpack.c.l.b16 %v914
  %v2471 = vunpack.c.l.b16 %v915
  %v2472 = vunpack.c.l.b16 %v916
  %v2473 = vunpack.c.l.b16 %v917
  %v2474 = vunpack.c.l.b16 %v918
  %v2475 = vunpack.c.l.b16 %v919
  %v2476 = vunpack.c.l.b16 %v920
  %v2477 = vunpack.c.l.b16 %v921
  %v2478 = vunpack.c.l.b16 %v922
  %v2479 = vunpack.c.l.b16 %v923
  %v2480 = vunpack.c.l.b16 %v924
  %v2481 = vunpack.c.l.b16 %v925
  %v2482 = vunpack.c.l.b16 %v926
  %v2483 = vunpack.c.l.b16 %v927
  %v2484 = vunpack.c.l.b16 %v928
  %v2485 = vunpack.c.l.b16 %v929
  %v2486 = vunpack.c.l.b16 %v930
  %v2487 = vunpack.c.l.b16 %v931
  %v2488 = vunpack.c.l.b16 %v932
  %v2489 = vunpack.c.l.b16 %v933
  %v2490 = vunpack.c.l.b16 %v934
  %v2491 = vunpack.c.l.b16 %v935
  %v2492 = vunpack.c.l.b16 %v936
  %v2493 = vunpack.c.l.b16 %v937
  %v2494 = vunpack.c.l.b16 %v938
  %v2495 = vunpack.c.l.b16 %v939
  %v2496 = vunpack.c.l.b16 %v940
  %v2497 = vunpack.c.l.b16 %v941
  %v2498 = vunpack.c.l.b16 %v942
  %v2499 = vunpack.c.l.b16 %v943
  %v2500 = vunpack.c.l.b16 %v944
  %v2501 = vunpack.c.l.b16 %v945
  %v2502 = vunpack.c.l.b16 %v946
  %v2503 = vunpack.c.l.b16 %v947
  %v2504 = vunpack.c.l.b16 %v948
  %v2505 = vunpack.c.l.b16 %v949
  %v2506 = vunpack.c.l.b16 %v950
  %v2507 = vunpack.c.l.b16 %v951
  %v2508 = vunpack.c.l.b16 %v952
  %v2509 = vunpack.c.l.b16 %v953
  %v2510 = vunpack.c.l.b16 %v954
  %v2511 = vunpack.c.l.b16 %v955
  %v2512 = vunpack.c.l.b16 %v956
  %v2513 = vunpack.c.l.b16 %v957
  %v2514 = vunpack.c.l.b16 %v958
  %v2515 = vunpack.c.l.b16 %v959
  %v2516 = vunpack.c.l.b16 %v960
  %v2517 = vunpack.c.l.b16 %v961
  %v2518 = vunpack.c.l.b16 %v962
  %v2519 = vunpack.c.l.b16 %v963
  %v2520 = vunpack.c.l.b16 %v964
  %v2521 = vunpack.c.l.b16 %v965
  %v2522 = vunpack.c.l.b16 %v966
  %v2523 = vunpack.c.l.b16 %v967
  %v2524 = vunpack.c.l.b16 %v968
  %v2525 = vunpack.c.l.b16 %v969
  %v2526 = vunpack.c.l.b16 %v970
  %v2527 = vunpack.c.l.b16 %v971
  %v2528 = vunpack.c.l.b16 %v972
  %v2529 = vunpack.c.l.b16 %v973
  %v2530 = vunpack.c.l.b16 %v974
  %v2531 = vunpack.c.l.b16 %v975
  %v2532 = vunpack.c.l.b16 %v976
  %v2533 = vunpack.c.l.b16 %v977
  %v2534 = vunpack.c.l.b16 %v978
  %v2535 = vunpack.c.l.b16 %v979
  %v2536 = vunpack.c.l.b16 %v980
  %v2537 = vunpack.c.l.b16 %v981
  %v2538 = vunpack.c.l.b16 %v982
  %v2539 = vunpack.c.l.b16 %v983
  %v2540 = vunpack.c.l.b16 %v984
  %v2541 = vpack.c.b16 %v1766, %v1765
  %v2542 = vpack.c.b16 %v1768, %v1767
  %v2543 = vpack.c.b16 %v1770, %v1769
  %v2544 = vpack.c.b16 %v1772, %v1771
  %v2545 = vpack.c.b16 %v1774, %v1773
  %v2546 = vpack.c.b16 %v1776, %v1775
  %v2547 = vpack.c.b16 %v1778, %v1777
  %v2548 = vpack.c.b16 %v1780, %v1779
  %v2549 = vpack.c.b16 %v1782, %v1781
  %v2550 = vpack.c.b16 %v1784, %v1783
  %v2551 = vpack.c.b16 %v1786, %v1785
  %v2552 = vpack.c.b16 %v1788, %v1787
  %v2553 = vpack.c.b16 %v1790, %v1789
  %v2554 = vpack.c.b16 %v1792, %v1791
  %v2555 = vpack.c.b16 %v1794, %v1793
  %v2556 = vpack.c.b16 %v1796, %v1795
  %v2557 = vpack.c.b16 %v1798, %v1797
  %v2558 = vpack.c.b16 %v1800, %v1799
  %v2559 = vpack.c.b16 %v1802, %v1801
  %v2560 = vpack.c.b16 %v1804, %v1803
  %v2561 = vpack.c.b16 %v1806, %v1805
  %v2562 = vpack.c.b16 %v1808, %v1807
  %v2563 = vpack.c.b16 %v1810, %v1809
  %v2564 = vpack.c.b16 %v1812, %v1811
  %v2565 = vpack.c.b16 %v1814, %v1813
  %v2566 = vpack.c.b16 %v1816, %v1815
  %v2567 = vpack.c.b16 %v1818, %v1817
  %v2568 = vpack.c.b16 %v1820, %v1819
  %v2569 = vpack.c.b16 %v1822, %v1821
  %v2570 = vpack.c.b16 %v1824, %v1823
  %v2571 = vpack.c.b16 %v1826, %v1825
  %v2572 = vpack.c.b16 %v1828, %v1827
  %v2573 = vpack.c.b16 %v1830, %v1829
  %v2574 = vpack.c.b16 %v1832, %v1831
  %v2575 = vpack.c.b16 %v1834, %v1833
  %v2576 = vpack.c.b16 %v1836, %v1835
  %v2577 = vpack.c.b16 %v1838, %v1837
  %v2578 = vpack.c.b16 %v1840, %v1839
  %v2579 = vpack.c.b16 %v1842, %v1841
  %v2580 = vpack.c.b16 %v1844, %v1843
  %v2581 = vpack.c.b16 %v1846, %v1845
  %v2582 = vpack.c.b16 %v1848, %v1847
  %v2583 = vpack.c.b16 %v1850, %v1849
  %v2584 = vpack.c.b16 %v1852, %v1851
  %v2585 = vpack.c.b16 %v1854, %v1853
  %v2586 = vpack.c.b16 %v1856, %v1855
  %v2587 = vpack.c.b16 %v1858, %v1857
  %v2588 = vpack.c.b16 %v1860, %v1859
  %v2589 = vpack.c.b16 %v1862, %v1861
  %v2590 = vpack.c.b16 %v1864, %v1863
  %v2591 = vpack.c.b16 %v1866, %v1865
  %v2592 = vpack.c.b16 %v1868, %v1867
  %v2593 = vpack.c.b16 %v1870, %v1869
  %v2594 = vpack.c.b16 %v1872, %v1871
  %v2595 = vpack.c.b16 %v1874, %v1873
  %v2596 = vpack.c.b16 %v1876, %v1875
  %v2597 = vpack.c.b16 %v1878, %v1877
  %v2598 = vpack.c.b16 %v1880, %v1879
  %v2599 = vpack.c.b16 %v1882, %v1881
  %v2600 = vpack.c.b16 %v1884, %v1883
  %v2601 = vpack.c.b16 %v1886, %v1885
  %v2602 = vpack.c.b16 %v1888, %v1887
  %v2603 = vpack.c.b16 %v1890, %v1889
  %v2604 = vpack.c.b16 %v1892, %v1891
  %v2605 = vpack.c.b16 %v1894, %v1893
  %v2606 = vpack.c.b16 %v1896, %v1895
  %v2607 = vpack.c.b16 %v1898, %v1897
  %v2608 = vpack.c.b16 %v1900, %v1899
  %v2609 = vpack.c.b16 %v1902, %v1901
  %v2610 = vpack.c.b16 %v1904, %v1903
  %v2611 = vpack.c.b16 %v1906, %v1905
  %v2612 = vpack.c.b16 %v1908, %v1907
  %v2613 = vpack.c.b16 %v1910, %v1909
  %v2614 = vpack.c.b16 %v1912, %v1911
  %v2615 = vpack.c.b16 %v1914, %v1913
  %v2616 = vpack.c.b16 %v1916, %v1915
  %v2617 = vpack.c.b16 %v1918, %v1917
  %v2618 = vpack.c.b16 %v1920, %v1919
  %v2619 = vpack.c.b16 %v1922, %v1921
  %v2620 = vpack.c.b16 %v1924, %v1923
  %v2621 = vpack.c.b16 %v1926, %v1925
  %v2622 = vpack.c.b16 %v1928, %v1927
  %v2623 = vpack.c.b16 %v1930, %v1929
  %v2624 = vpack.c.b16 %v1932, %v1931
  %v2625 = vpack.c.b16 %v1934, %v1933
  %v2626 = vpack.c.b16 %v1936, %v1935
  %v2627 = vpack.c.b16 %v1938, %v1937
  %v2628 = vpack.c.b16 %v1940, %v1939
  %v2629 = vpack.c.b16 %v1942, %v1941
  %v2630 = vpack.c.b16 %v1944, %v1943
  %v2631 = vpack.c.b16 %v1946, %v1945
  %v2632 = vpack.c.b16 %v1948, %v1947
  %v2633 = vpack.c.b16 %v1950, %v1949
  %v2634 = vpack.c.b16 %v1952, %v1951
  %v2635 = vpack.c.b16 %v1954, %v1953
  %v2636 = vpack.c.b16 %v1956, %v1955
  %v2637 = vpack.c.b16 %v1958, %v1957
  %v2638 = vpack.c.b16 %v1960, %v1959
  %v2639 = vpack.c.b16 %v1962, %v1961
  %v2640 = vpack.c.b16 %v1964, %v1963
  %v2641 = vpack.c.b16 %v1966, %v1965
  %v2642 = vpack.c.b16 %v1968, %v1967
  %v2643 = vpack.c.b16 %v1970, %v1969
  %v2644 = vpack.c.b16 %v1972, %v1971
  %v2645 = vpack.c.b16 %v1974, %v1973
  %v2646 = vpack.c.b16 %v1976, %v1975
  %v2647 = vpack.c.b16 %v1978, %v1977
  %v2648 = vpack.c.b16 %v1980, %v1979
  %v2649 = vpack.c.b16 %v1982, %v1981
  %v2650 = vpack.c.b16 %v1984, %v1983
  %v2651 = vpack.c.b16 %v1986, %v1985
  %v2652 = vpack.c.b16 %v1988, %v1987
  %v2653 = vpack.c.b16 %v1990, %v1989
  %v2654 = vpack.c.b16 %v1992, %v1991
  %v2655 = vpack.c.b16 %v1994, %v1993
  %v2656 = vpack.c.b16 %v1996, %v1995
  %v2657 = vpack.c.b16 %v1998, %v1997
  %v2658 = vpack.c.b16 %v2000, %v1999
  %v2659 = vpack.c.b16 %v2002, %v2001
  %v2660 = vpack.c.b16 %v2004, %v2003
  %v2661 = vpack.c.b16 %v2006, %v2005
  %v2662 = vpack.c.b16 %v2008, %v2007
  %v2663 = vpack.c.b16 %v2010, %v2009
  %v2664 = vpack.c.b16 %v2012, %v2011
  %v2665 = vpack.c.b16 %v2014, %v2013
  %v2666 = vpack.c.b16 %v2016, %v2015
  %v2667 = vpack.c.b16 %v2018, %v2017
  %v2668 = vpack.c.b16 %v2020, %v2019
  %v2669 = vpack.c.b16 %v2022, %v2021
  %v2670 = vpack.c.b16 %v2024, %v2023
  %v2671 = vpack.c.b16 %v2026, %v2025
  %v2672 = vpack.c.b16 %v2028, %v2027
  %v2673 = vpack.c.b16 %v2030, %v2029
  %v2674 = vpack.c.b16 %v2032, %v2031
  %v2675 = vpack.c.b16 %v2034, %v2033
  %v2676 = vpack.c.b16 %v2036, %v2035
  %v2677 = vpack.c.b16 %v2038, %v2037
  %v2678 = vpack.c.b16 %v2040, %v2039
  %v2679 = vpack.c.b16 %v2042, %v2041
  %v2680 = vpack.c.b16 %v2044, %v2043
  %v2681 = vpack.c.b16 %v2046, %v2045
  %v2682 = vpack.c.b16 %v2048, %v2047
  %v2683 = vpack.c.b16 %v2050, %v2049
  %v2684 = vpack.c.b16 %v2052, %v2051
  %v2685 = vpack.c.b16 %v2054, %v2053
  %v2686 = vpack.c.b16 %v2056, %v2055
  %v2687 = vpack.c.b16 %v2058, %v2057
  %v2688 = vpack.c.b16 %v2060, %v2059
  %v2689 = vpack.c.b16 %v2062, %v2061
  %v2690 = vpack.c.b16 %v2064, %v2063
  %v2691 = vpack.c.b16 %v2066, %v2065
  %v2692 = vpack.c.b16 %v2068, %v2067
  %v2693 = vpack.c.b16 %v2070, %v2069
  %v2694 = vpack.c.b16 %v2072, %v2071
  %v2695 = vpack.c.b16 %v2074, %v2073
  %v2696 = vpack.c.b16 %v2076, %v2075
  %v2697 = vpack.c.b16 %v2078, %v2077
  %v2698 = vpack.c.b16 %v2080, %v2079
  %v2699 = vpack.c.b16 %v2082, %v2081
  %v2700 = vpack.c.b16 %v2084, %v2083
  %v2701 = vpack.c.b16 %v2086, %v2085
  %v2702 = vpack.c.b16 %v2088, %v2087
  %v2703 = vpack.c.b16 %v2090, %v2089
  %v2704 = vpack.c.b16 %v2092, %v2091
  %v2705 = vpack.c.b16 %v2094, %v2093
  %v2706 = vpack.c.b16 %v2096, %v2095
  %v2707 = vpack.c.b16 %v2098, %v2097
  %v2708 = vpack.c.b16 %v2100, %v2099
  %v2709 = vpack.c.b16 %v2102, %v2101
  %v2710 = vpack.c.b16 %v2104, %v2103
  %v2711 = vpack.c.b16 %v2106, %v2105
  %v2712 = vpack.c.b16 %v2108, %v2107
  %v2713 = vpack.c.b16 %v2110, %v2109
  %v2714 = vpack.c.b16 %v2112, %v2111
  %v2715 = vpack.c.b16 %v2114, %v2113
  %v2716 = vpack.c.b16 %v2116, %v2115
  %v2717 = vpack.c.b16 %v2118, %v2117
  %v2718 = vpack.c.b16 %v2120, %v2119
  %v2719 = vpack.c.b16 %v2122, %v2121
  %v2720 = vpack.c.b16 %v2124, %v2123
  %v2721 = vpack.c.b16 %v2126, %v2125
  %v2722 = vpack.c.b16 %v2128, %v2127
  %v2723 = vpack.c.b16 %v2130, %v2129
  %v2724 = vpack.c.b16 %v2132, %v2131
  %v2725 = vpack.c.b16 %v2134, %v2133
  %v2726 = vpack.c.b16 %v2136, %v2135
  %v2727 = vpack.c.b16 %v2138, %v2137
  %v2728 = vpack.c.b16 %v2140, %v2139
  %v2729 = vpack.c.b16 %v2142, %v2141
  %v2730 = vpack.c.b16 %v2144, %v2143
  %v2731 = vpack.c.b16 %v2146, %v2145
  %v2732 = vpack.c.b16 %v2148, %v2147
  %v2733 = vpack.c.b16 %v2150, %v2149
  %v2734 = vpack.c.b16 %v2152, %v2151
  %v2735 = vpack.c.b16 %v2154, %v2153
  %v2736 = vpack.c.b16 %v2156, %v2155
  %v2737 = vpack.c.b16 %v2158, %v2157
  %v2738 = vpack.c.b16 %v2160, %v2159
  %v2739 = vpack.c.b16 %v2162, %v2161
  %v2740 = vpack.c.b16 %v2164, %v2163
  %v2741 = vpack.c.b16 %v2166, %v2165
  %v2742 = vpack.c.b16 %v2168, %v2167
  %v2743 = vpack.c.b16 %v2170, %v2169
  %v2744 = vpack.c.b16 %v2172, %v2171
  %v2745 = vpack.c.b16 %v2174, %v2173
  %v2746 = vpack.c.b16 %v2176, %v2175
  %v2747 = vpack.c.b16 %v2178, %v2177
  %v2748 = vpack.c.b16 %v2180, %v2179
  %v2749 = vpack.c.b16 %v2182, %v2181
  %v2750 = vpack.c.b16 %v2184, %v2183
  %v2751 = vpack.c.b16 %v2186, %v2185
  %v2752 = vpack.c.b16 %v2188, %v2187
  %v2753 = vpack.c.b16 %v2190, %v2189
  %v2754 = vpack.c.b16 %v2192, %v2191
  %v2755 = vpack.c.b16 %v2194, %v2193
  %v2756 = vpack.c.b16 %v2196, %v2195
  %v2757 = vpack.c.b16 %v2198, %v2197
  %v2758 = vpack.c.b16 %v2200, %v2199
  %v2759 = vpack.c.b16 %v2202, %v2201
  %v2760 = vpack.c.b16 %v2204, %v2203
  %v2761 = vpack.c.b16 %v2206, %v2205
  %v2762 = vpack.c.b16 %v2208, %v2207
  %v2763 = vpack.c.b16 %v2210, %v2209
  %v2764 = vpack.c.b16 %v2212, %v2211
  %v2765 = vpack.c.b16 %v2214, %v2213
  %v2766 = vpack.c.b16 %v2216, %v2215
  %v2767 = vpack.c.b16 %v2218, %v2217
  %v2768 = vpack.c.b16 %v2220, %v2219
  %v2769 = vpack.c.b16 %v2222, %v2221
  %v2770 = vpack.c.b16 %v2224, %v2223
  %v2771 = vpack.c.b16 %v2226, %v2225
  %v2772 = vpack.c.b16 %v2228, %v2227
  %v2773 = vpack.c.b16 %v2230, %v2229
  %v2774 = vpack.c.b16 %v2232, %v2231
  %v2775 = vpack.c.b16 %v2234, %v2233
  %v2776 = vpack.c.b16 %v2236, %v2235
  %v2777 = vpack.c.b16 %v2238, %v2237
  %v2778 = vpack.c.b16 %v2240, %v2239
  %v2779 = vpack.c.b16 %v2242, %v2241
  %v2780 = vpack.c.b16 %v2244, %v2243
  %v2781 = vpack.c.b16 %v2246, %v2245
  %v2782 = vpack.c.b16 %v2248, %v2247
  %v2783 = vpack.c.b16 %v2250, %v2249
  %v2784 = vpack.c.b16 %v2252, %v2251
  %v2785 = vpack.c.b16 %v2254, %v2253
  %v2786 = vpack.c.b16 %v2256, %v2255
  %v2787 = vpack.c.b16 %v2258, %v2257
  %v2788 = vpack.c.b16 %v2260, %v2259
  %v2789 = vpack.c.b16 %v2262, %v2261
  %v2790 = vpack.c.b16 %v2264, %v2263
  %v2791 = vpack.c.b16 %v2266, %v2265
  %v2792 = vpack.c.b16 %v2268, %v2267
  %v2793 = vpack.c.b16 %v2270, %v2269
  %v2794 = vpack.c.b16 %v2272, %v2271
  %v2795 = vpack.c.b16 %v2274, %v2273
  %v2796 = vpack.c.b16 %v2276, %v2275
  %v2797 = vpack.c.b16 %v2278, %v2277
  %v2798 = vpack.c.b16 %v2280, %v2279
  %v2799 = vpack.c.b16 %v2282, %v2281
  %v2800 = vpack.c.b16 %v2284, %v2283
  %v2801 = vpack.c.b16 %v2286, %v2285
  %v2802 = vpack.c.b16 %v2288, %v2287
  %v2803 = vpack.c.b16 %v2290, %v2289
  %v2804 = vpack.c.b16 %v2292, %v2291
  %v2805 = vpack.c.b16 %v2294, %v2293
  %v2806 = vpack.c.b16 %v2296, %v2295
  %v2807 = vpack.c.b16 %v2298, %v2297
  %v2808 = vpack.c.b16 %v2300, %v2299
  %v2809 = vpack.c.b16 %v2302, %v2301
  %v2810 = vpack.c.b16 %v2304, %v2303
  %v2811 = vpack.c.b16 %v2306, %v2305
  %v2812 = vpack.c.b16 %v2308, %v2307
  %v2813 = vpack.c.b16 %v2310, %v2309
  %v2814 = vpack.c.b16 %v2312, %v2311
  %v2815 = vpack.c.b16 %v2314, %v2313
  %v2816 = vpack.c.b16 %v2316, %v2315
  %v2817 = vpack.c.b16 %v2318, %v2317
  %v2818 = vpack.c.b16 %v2320, %v2319
  %v2819 = vpack.c.b16 %v2322, %v2321
  %v2820 = vpack.c.b16 %v2324, %v2323
  %v2821 = vpack.c.b16 %v2326, %v2325
  %v2822 = vpack.c.b16 %v2328, %v2327
  %v2823 = vpack.c.b16 %v2330, %v2329
  %v2824 = vpack.c.b16 %v2332, %v2331
  %v2825 = vpack.c.b16 %v2334, %v2333
  %v2826 = vpack.c.b16 %v2336, %v2335
  %v2827 = vpack.c.b16 %v2338, %v2337
  %v2828 = vpack.c.b16 %v2340, %v2339
  %v2829 = vpack.c.b16 %v2342, %v2341
  %v2830 = vpack.c.b16 %v2344, %v2343
  %v2831 = vpack.c.b16 %v2346, %v2345
  %v2832 = vpack.c.b16 %v2348, %v2347
  %v2833 = vpack.c.b16 %v2350, %v2349
  %v2834 = vpack.c.b16 %v2352, %v2351
  %v2835 = vpack.c.b16 %v2354, %v2353
  %v2836 = vpack.c.b16 %v2356, %v2355
  %v2837 = vpack.c.b16 %v2358, %v2357
  %v2838 = vpack.c.b16 %v2360, %v2359
  %v2839 = vpack.c.b16 %v2362, %v2361
  %v2840 = vpack.c.b16 %v2364, %v2363
  %v2841 = vpack.c.b16 %v2366, %v2365
  %v2842 = vpack.c.b16 %v2368, %v2367
  %v2843 = vpack.c.b16 %v2370, %v2369
  %v2844 = vpack.c.b16 %v2372, %v2371
  %v2845 = vpack.c.b16 %v2374, %v2373
  %v2846 = vpack.c.b16 %v2376, %v2375
  %v2847 = vpack.c.b16 %v2378, %v2377
  %v2848 = vpack.c.b16 %v2380, %v2379
  %v2849 = vpack.c.b16 %v2382, %v2381
  %v2850 = vpack.c.b16 %v2384, %v2383
  %v2851 = vpack.c.b16 %v2386, %v2385
  %v2852 = vpack.c.b16 %v2388, %v2387
  %v2853 = vpack.c.b16 %v2390, %v2389
  %v2854 = vpack.c.b16 %v2392, %v2391
  %v2855 = vpack.c.b16 %v2394, %v2393
  %v2856 = vpack.c.b16 %v2396, %v2395
  %v2857 = vpack.c.b16 %v2398, %v2397
  %v2858 = vpack.c.b16 %v2400, %v2399
  %v2859 = vpack.c.b16 %v2402, %v2401
  %v2860 = vpack.c.b16 %v2404, %v2403
  %v2861 = vpack.c.b16 %v2406, %v2405
  %v2862 = vpack.c.b16 %v2408, %v2407
  %v2863 = vpack.c.b16 %v2410, %v2409
  %v2864 = vpack.c.b16 %v2412, %v2411
  %v2865 = vpack.c.b16 %v2414, %v2413
  %v2866 = vpack.c.b16 %v2416, %v2415
  %v2867 = vpack.c.b16 %v2418, %v2417
  %v2868 = vpack.c.b16 %v2420, %v2419
  %v2869 = vpack.c.b16 %v2422, %v2421
  %v2870 = vpack.c.b16 %v2424, %v2423
  %v2871 = vpack.c.b16 %v2426, %v2425
  %v2872 = vpack.c.b16 %v2428, %v2427
  %v2873 = vpack.c.b16 %v2430, %v2429
  %v2874 = vpack.c.b16 %v2432, %v2431
  %v2875 = vpack.c.b16 %v2434, %v2433
  %v2876 = vpack.c.b16 %v2436, %v2435
  %v2877 = vpack.c.b16 %v2438, %v2437
  %v2878 = vpack.c.b16 %v2440, %v2439
  %v2879 = vpack.c.b16 %v2442, %v2441
  %v2880 = vpack.c.b16 %v2444, %v2443
  %v2881 = vpack.c.b16 %v2446, %v2445
  %v2882 = vpack.c.b16 %v2448, %v2447
  %v2883 = vpack.c.b16 %v2450, %v2449
  %v2884 = vpack.c.b16 %v2452, %v2451
  %v2885 = vpack.c.b16 %v2454, %v2453
  %v2886 = vpack.c.b16 %v2456, %v2455
  %v2887 = vpack.c.b16 %v2458, %v2457
  %v2888 = vpack.c.b16 %v2460, %v2459
  %v2889 = vpack.c.b16 %v2462, %v2461
  %v2890 = vpack.c.b16 %v2464, %v2463
  %v2891 = vpack.c.b16 %v2466, %v2465
  %v2892 = vpack.c.b16 %v2468, %v2467
  %v2893 = vpack.c.b16 %v2470, %v2469
  %v2894 = vpack.c.b16 %v2472, %v2471
  %v2895 = vpack.c.b16 %v2474, %v2473
  %v2896 = vpack.c.b16 %v2476, %v2475
  %v2897 = vpack.c.b16 %v2478, %v2477
  %v2898 = vpack.c.b16 %v2480, %v2479
  %v2899 = vpack.c.b16 %v2482, %v2481
  %v2900 = vpack.c.b16 %v2484, %v2483
  %v2901 = vpack.c.b16 %v2486, %v2485
  %v2902 = vpack.c.b16 %v2488, %v2487
  %v2903 = vpack.c.b16 %v2490, %v2489
  %v2904 = vpack.c.b16 %v2492, %v2491
  %v2905 = vpack.c.b16 %v2494, %v2493
  %v2906 = vpack.c.b16 %v2496, %v2495
  %v2907 = vpack.c.b16 %v2498, %v2497
  %v2908 = vpack.c.b16 %v2500, %v2499
  %v2909 = vpack.c.b16 %v2502, %v2501
  %v2910 = vpack.c.b16 %v2504, %v2503
  %v2911 = vpack.c.b16 %v2506, %v2505
  %v2912 = vpack.c.b16 %v2508, %v2507
  %v2913 = vpack.c.b16 %v2510, %v2509
  %v2914 = vpack.c.b16 %v2512, %v2511
  %v2915 = vpack.c.b16 %v2514, %v2513
  %v2916 = vpack.c.b16 %v2516, %v2515
  %v2917 = vpack.c.b16 %v2518, %v2517
  %v2918 = vpack.c.b16 %v2520, %v2519
  %v2919 = vpack.c.b16 %v2522, %v2521
  %v2920 = vpack.c.b16 %v2524, %v2523
  %v2921 = vpack.c.b16 %v2526, %v2525
  %v2922 = vpack.c.b16 %v2528, %v2527
  %v2923 = vpack.c.b16 %v2530, %v2529
  %v2924 = vpack.c.b16 %v2532, %v2531
  %v2925 = vpack.c.b16 %v2534, %v2533
  %v2926 = vpack.c.b16 %v2536, %v2535
  %v2927 = vpack.c.b16 %v2538, %v2537
  %v2928 = vpack.c.b16 %v2540, %v2539
  %vm3317 = vcmask 523264
  %v3319 = vsel %vm3317, %v208, 0
  %3321 = vmatpush.bf16.msra.mxu0 %v2548
  %3322 = vmatpush.bf16.msra.mxu0 %v2547
  %3323 = vmatpush.bf16.msra.mxu0 %v2546
  %3324 = vmatpush.bf16.msra.mxu0 %v2545
  %3325 = vmatpush.bf16.msra.mxu0 %v2544
  %3326 = vmatpush.bf16.msra.mxu0 %v2543
  %3327 = vmatpush.bf16.msra.mxu0 %v2542
  %3328 = vmatpush.bf16.msra.mxu0 %v2541
  %3329 = vmatmul.bf16.gmra.mxu0 %v160
  %v3330 = vpop.f32.mrf.mxu0
  %v3331 = vadd.f32 %v987, %v3330
  %v3332 = vpop.f32.mrf.mxu0
  %3333 = vdwg.mxu0
  %3334 = vmatpush.bf16.msra.mxu0 %v2556
  %3335 = vmatpush.bf16.msra.mxu0 %v2555
  %3336 = vmatpush.bf16.msra.mxu0 %v2554
  %3337 = vmatpush.bf16.msra.mxu0 %v2553
  %3338 = vmatpush.bf16.msra.mxu0 %v2552
  %3339 = vmatpush.bf16.msra.mxu0 %v2551
  %3340 = vmatpush.bf16.msra.mxu0 %v2550
  %3341 = vmatpush.bf16.msra.mxu0 %v2549
  %3342 = vmatmul.bf16.gmra.mxu0 %v161
  %v3343 = vpop.f32.mrf.mxu0
  %v3344 = vadd.f32 %v3331, %v3343
  %v3345 = vpop.f32.mrf.mxu0
  %3346 = vdwg.mxu0
  %3347 = vmatpush.bf16.msra.mxu0 %v2564
  %3348 = vmatpush.bf16.msra.mxu0 %v2563
  %3349 = vmatpush.bf16.msra.mxu0 %v2562
  %3350 = vmatpush.bf16.msra.mxu0 %v2561
  %3351 = vmatpush.bf16.msra.mxu0 %v2560
  %3352 = vmatpush.bf16.msra.mxu0 %v2559
  %3353 = vmatpush.bf16.msra.mxu0 %v2558
  %3354 = vmatpush.bf16.msra.mxu0 %v2557
  %3355 = vmatmul.bf16.gmra.mxu0 %v162
  %v3356 = vpop.f32.mrf.mxu0
  %v3357 = vadd.f32 %v3344, %v3356
  %v3358 = vpop.f32.mrf.mxu0
  %3359 = vdwg.mxu0
  %3360 = vmatpush.bf16.msra.mxu0 %v2572
  %3361 = vmatpush.bf16.msra.mxu0 %v2571
  %3362 = vmatpush.bf16.msra.mxu0 %v2570
  %3363 = vmatpush.bf16.msra.mxu0 %v2569
  %3364 = vmatpush.bf16.msra.mxu0 %v2568
  %3365 = vmatpush.bf16.msra.mxu0 %v2567
  %3366 = vmatpush.bf16.msra.mxu0 %v2566
  %3367 = vmatpush.bf16.msra.mxu0 %v2565
  %3368 = vmatmul.bf16.gmra.mxu0 %v163
  %v3369 = vpop.f32.mrf.mxu0
  %v3370 = vadd.f32 %v3357, %v3369
  %v3371 = vpop.f32.mrf.mxu0
  %3372 = vdwg.mxu0
  %3373 = vmatpush.bf16.msra.mxu0 %v2580
  %3374 = vmatpush.bf16.msra.mxu0 %v2579
  %3375 = vmatpush.bf16.msra.mxu0 %v2578
  %3376 = vmatpush.bf16.msra.mxu0 %v2577
  %3377 = vmatpush.bf16.msra.mxu0 %v2576
  %3378 = vmatpush.bf16.msra.mxu0 %v2575
  %3379 = vmatpush.bf16.msra.mxu0 %v2574
  %3380 = vmatpush.bf16.msra.mxu0 %v2573
  %3381 = vmatmul.bf16.gmra.mxu0 %v164
  %v3382 = vpop.f32.mrf.mxu0
  %v3383 = vadd.f32 %v3370, %v3382
  %v3384 = vpop.f32.mrf.mxu0
  %3385 = vdwg.mxu0
  %3386 = vmatpush.bf16.msra.mxu0 %v2588
  %3387 = vmatpush.bf16.msra.mxu0 %v2587
  %3388 = vmatpush.bf16.msra.mxu0 %v2586
  %3389 = vmatpush.bf16.msra.mxu0 %v2585
  %3390 = vmatpush.bf16.msra.mxu0 %v2584
  %3391 = vmatpush.bf16.msra.mxu0 %v2583
  %3392 = vmatpush.bf16.msra.mxu0 %v2582
  %3393 = vmatpush.bf16.msra.mxu0 %v2581
  %3394 = vmatmul.bf16.gmra.mxu0 %v165
  %v3395 = vpop.f32.mrf.mxu0
  %v3396 = vadd.f32 %v3383, %v3395
  %v3397 = vpop.f32.mrf.mxu0
  %3398 = vdwg.mxu0
  %3399 = vmatpush.bf16.msra.mxu0 %v2596
  %3400 = vmatpush.bf16.msra.mxu0 %v2595
  %3401 = vmatpush.bf16.msra.mxu0 %v2594
  %3402 = vmatpush.bf16.msra.mxu0 %v2593
  %3403 = vmatpush.bf16.msra.mxu0 %v2592
  %3404 = vmatpush.bf16.msra.mxu0 %v2591
  %3405 = vmatpush.bf16.msra.mxu0 %v2590
  %3406 = vmatpush.bf16.msra.mxu0 %v2589
  %3407 = vmatmul.bf16.gmra.mxu0 %v166
  %v3408 = vpop.f32.mrf.mxu0
  %v3409 = vadd.f32 %v3396, %v3408
  %v3410 = vpop.f32.mrf.mxu0
  %3411 = vdwg.mxu0
  %3412 = vmatpush.bf16.msra.mxu0 %v2604
  %3413 = vmatpush.bf16.msra.mxu0 %v2603
  %3414 = vmatpush.bf16.msra.mxu0 %v2602
  %3415 = vmatpush.bf16.msra.mxu0 %v2601
  %3416 = vmatpush.bf16.msra.mxu0 %v2600
  %3417 = vmatpush.bf16.msra.mxu0 %v2599
  %3418 = vmatpush.bf16.msra.mxu0 %v2598
  %3419 = vmatpush.bf16.msra.mxu0 %v2597
  %3420 = vmatmul.bf16.gmra.mxu0 %v167
  %v3421 = vpop.f32.mrf.mxu0
  %v3422 = vadd.f32 %v3409, %v3421
  %v3423 = vpop.f32.mrf.mxu0
  %3424 = vdwg.mxu0
  %3425 = vmatpush.bf16.msra.mxu0 %v2612
  %3426 = vmatpush.bf16.msra.mxu0 %v2611
  %3427 = vmatpush.bf16.msra.mxu0 %v2610
  %3428 = vmatpush.bf16.msra.mxu0 %v2609
  %3429 = vmatpush.bf16.msra.mxu0 %v2608
  %3430 = vmatpush.bf16.msra.mxu0 %v2607
  %3431 = vmatpush.bf16.msra.mxu0 %v2606
  %3432 = vmatpush.bf16.msra.mxu0 %v2605
  %3433 = vmatmul.bf16.gmra.mxu0 %v168
  %v3434 = vpop.f32.mrf.mxu0
  %v3435 = vadd.f32 %v3422, %v3434
  %v3436 = vpop.f32.mrf.mxu0
  %3437 = vdwg.mxu0
  %3438 = vmatpush.bf16.msra.mxu0 %v2620
  %3439 = vmatpush.bf16.msra.mxu0 %v2619
  %3440 = vmatpush.bf16.msra.mxu0 %v2618
  %3441 = vmatpush.bf16.msra.mxu0 %v2617
  %3442 = vmatpush.bf16.msra.mxu0 %v2616
  %3443 = vmatpush.bf16.msra.mxu0 %v2615
  %3444 = vmatpush.bf16.msra.mxu0 %v2614
  %3445 = vmatpush.bf16.msra.mxu0 %v2613
  %3446 = vmatmul.bf16.gmra.mxu0 %v169
  %v3447 = vpop.f32.mrf.mxu0
  %v3448 = vadd.f32 %v3435, %v3447
  %v3449 = vpop.f32.mrf.mxu0
  %3450 = vdwg.mxu0
  %3451 = vmatpush.bf16.msra.mxu0 %v2628
  %3452 = vmatpush.bf16.msra.mxu0 %v2627
  %3453 = vmatpush.bf16.msra.mxu0 %v2626
  %3454 = vmatpush.bf16.msra.mxu0 %v2625
  %3455 = vmatpush.bf16.msra.mxu0 %v2624
  %3456 = vmatpush.bf16.msra.mxu0 %v2623
  %3457 = vmatpush.bf16.msra.mxu0 %v2622
  %3458 = vmatpush.bf16.msra.mxu0 %v2621
  %3459 = vmatmul.bf16.gmra.mxu0 %v170
  %v3460 = vpop.f32.mrf.mxu0
  %v3461 = vadd.f32 %v3448, %v3460
  %v3462 = vpop.f32.mrf.mxu0
  %3463 = vdwg.mxu0
  %3464 = vmatpush.bf16.msra.mxu0 %v2636
  %3465 = vmatpush.bf16.msra.mxu0 %v2635
  %3466 = vmatpush.bf16.msra.mxu0 %v2634
  %3467 = vmatpush.bf16.msra.mxu0 %v2633
  %3468 = vmatpush.bf16.msra.mxu0 %v2632
  %3469 = vmatpush.bf16.msra.mxu0 %v2631
  %3470 = vmatpush.bf16.msra.mxu0 %v2630
  %3471 = vmatpush.bf16.msra.mxu0 %v2629
  %3472 = vmatmul.bf16.gmra.mxu0 %v171
  %v3473 = vpop.f32.mrf.mxu0
  %v3474 = vadd.f32 %v3461, %v3473
  %v3475 = vpop.f32.mrf.mxu0
  %3476 = vdwg.mxu0
  %3477 = vmatpush.bf16.msra.mxu0 %v2644
  %3478 = vmatpush.bf16.msra.mxu0 %v2643
  %3479 = vmatpush.bf16.msra.mxu0 %v2642
  %3480 = vmatpush.bf16.msra.mxu0 %v2641
  %3481 = vmatpush.bf16.msra.mxu0 %v2640
  %3482 = vmatpush.bf16.msra.mxu0 %v2639
  %3483 = vmatpush.bf16.msra.mxu0 %v2638
  %3484 = vmatpush.bf16.msra.mxu0 %v2637
  %3485 = vmatmul.bf16.gmra.mxu0 %v172
  %v3486 = vpop.f32.mrf.mxu0
  %v3487 = vadd.f32 %v3474, %v3486
  %v3488 = vpop.f32.mrf.mxu0
  %3489 = vdwg.mxu0
  %3490 = vmatpush.bf16.msra.mxu0 %v2652
  %3491 = vmatpush.bf16.msra.mxu0 %v2651
  %3492 = vmatpush.bf16.msra.mxu0 %v2650
  %3493 = vmatpush.bf16.msra.mxu0 %v2649
  %3494 = vmatpush.bf16.msra.mxu0 %v2648
  %3495 = vmatpush.bf16.msra.mxu0 %v2647
  %3496 = vmatpush.bf16.msra.mxu0 %v2646
  %3497 = vmatpush.bf16.msra.mxu0 %v2645
  %3498 = vmatmul.bf16.gmra.mxu0 %v173
  %v3499 = vpop.f32.mrf.mxu0
  %v3500 = vadd.f32 %v3487, %v3499
  %v3501 = vpop.f32.mrf.mxu0
  %3502 = vdwg.mxu0
  %3503 = vmatpush.bf16.msra.mxu0 %v2660
  %3504 = vmatpush.bf16.msra.mxu0 %v2659
  %3505 = vmatpush.bf16.msra.mxu0 %v2658
  %3506 = vmatpush.bf16.msra.mxu0 %v2657
  %3507 = vmatpush.bf16.msra.mxu0 %v2656
  %3508 = vmatpush.bf16.msra.mxu0 %v2655
  %3509 = vmatpush.bf16.msra.mxu0 %v2654
  %3510 = vmatpush.bf16.msra.mxu0 %v2653
  %3511 = vmatmul.bf16.gmra.mxu0 %v174
  %v3512 = vpop.f32.mrf.mxu0
  %v3513 = vadd.f32 %v3500, %v3512
  %v3514 = vpop.f32.mrf.mxu0
  %3515 = vdwg.mxu0
  %3516 = vmatpush.bf16.msra.mxu0 %v2668
  %3517 = vmatpush.bf16.msra.mxu0 %v2667
  %3518 = vmatpush.bf16.msra.mxu0 %v2666
  %3519 = vmatpush.bf16.msra.mxu0 %v2665
  %3520 = vmatpush.bf16.msra.mxu0 %v2664
  %3521 = vmatpush.bf16.msra.mxu0 %v2663
  %3522 = vmatpush.bf16.msra.mxu0 %v2662
  %3523 = vmatpush.bf16.msra.mxu0 %v2661
  %3524 = vmatmul.bf16.gmra.mxu0 %v175
  %v3525 = vpop.f32.mrf.mxu0
  %v3526 = vadd.f32 %v3513, %v3525
  %v3527 = vpop.f32.mrf.mxu0
  %3528 = vdwg.mxu0
  %3529 = vmatpush.bf16.msra.mxu0 %v2676
  %3530 = vmatpush.bf16.msra.mxu0 %v2675
  %3531 = vmatpush.bf16.msra.mxu0 %v2674
  %3532 = vmatpush.bf16.msra.mxu0 %v2673
  %3533 = vmatpush.bf16.msra.mxu0 %v2672
  %3534 = vmatpush.bf16.msra.mxu0 %v2671
  %3535 = vmatpush.bf16.msra.mxu0 %v2670
  %3536 = vmatpush.bf16.msra.mxu0 %v2669
  %3537 = vmatmul.bf16.gmra.mxu0 %v176
  %v3538 = vpop.f32.mrf.mxu0
  %v3539 = vadd.f32 %v3526, %v3538
  %v3540 = vpop.f32.mrf.mxu0
  %3541 = vdwg.mxu0
  %3542 = vmatpush.bf16.msra.mxu0 %v2684
  %3543 = vmatpush.bf16.msra.mxu0 %v2683
  %3544 = vmatpush.bf16.msra.mxu0 %v2682
  %3545 = vmatpush.bf16.msra.mxu0 %v2681
  %3546 = vmatpush.bf16.msra.mxu0 %v2680
  %3547 = vmatpush.bf16.msra.mxu0 %v2679
  %3548 = vmatpush.bf16.msra.mxu0 %v2678
  %3549 = vmatpush.bf16.msra.mxu0 %v2677
  %3550 = vmatmul.bf16.gmra.mxu0 %v177
  %v3551 = vpop.f32.mrf.mxu0
  %v3552 = vadd.f32 %v3539, %v3551
  %v3553 = vpop.f32.mrf.mxu0
  %3554 = vdwg.mxu0
  %3555 = vmatpush.bf16.msra.mxu0 %v2692
  %3556 = vmatpush.bf16.msra.mxu0 %v2691
  %3557 = vmatpush.bf16.msra.mxu0 %v2690
  %3558 = vmatpush.bf16.msra.mxu0 %v2689
  %3559 = vmatpush.bf16.msra.mxu0 %v2688
  %3560 = vmatpush.bf16.msra.mxu0 %v2687
  %3561 = vmatpush.bf16.msra.mxu0 %v2686
  %3562 = vmatpush.bf16.msra.mxu0 %v2685
  %3563 = vmatmul.bf16.gmra.mxu0 %v178
  %v3564 = vpop.f32.mrf.mxu0
  %v3565 = vadd.f32 %v3552, %v3564
  %v3566 = vpop.f32.mrf.mxu0
  %3567 = vdwg.mxu0
  %3568 = vmatpush.bf16.msra.mxu0 %v2700
  %3569 = vmatpush.bf16.msra.mxu0 %v2699
  %3570 = vmatpush.bf16.msra.mxu0 %v2698
  %3571 = vmatpush.bf16.msra.mxu0 %v2697
  %3572 = vmatpush.bf16.msra.mxu0 %v2696
  %3573 = vmatpush.bf16.msra.mxu0 %v2695
  %3574 = vmatpush.bf16.msra.mxu0 %v2694
  %3575 = vmatpush.bf16.msra.mxu0 %v2693
  %3576 = vmatmul.bf16.gmra.mxu0 %v179
  %v3577 = vpop.f32.mrf.mxu0
  %v3578 = vadd.f32 %v3565, %v3577
  %v3579 = vpop.f32.mrf.mxu0
  %3580 = vdwg.mxu0
  %3581 = vmatpush.bf16.msra.mxu0 %v2708
  %3582 = vmatpush.bf16.msra.mxu0 %v2707
  %3583 = vmatpush.bf16.msra.mxu0 %v2706
  %3584 = vmatpush.bf16.msra.mxu0 %v2705
  %3585 = vmatpush.bf16.msra.mxu0 %v2704
  %3586 = vmatpush.bf16.msra.mxu0 %v2703
  %3587 = vmatpush.bf16.msra.mxu0 %v2702
  %3588 = vmatpush.bf16.msra.mxu0 %v2701
  %3589 = vmatmul.bf16.gmra.mxu0 %v180
  %v3590 = vpop.f32.mrf.mxu0
  %v3591 = vadd.f32 %v3578, %v3590
  %v3592 = vpop.f32.mrf.mxu0
  %3593 = vdwg.mxu0
  %3594 = vmatpush.bf16.msra.mxu0 %v2716
  %3595 = vmatpush.bf16.msra.mxu0 %v2715
  %3596 = vmatpush.bf16.msra.mxu0 %v2714
  %3597 = vmatpush.bf16.msra.mxu0 %v2713
  %3598 = vmatpush.bf16.msra.mxu0 %v2712
  %3599 = vmatpush.bf16.msra.mxu0 %v2711
  %3600 = vmatpush.bf16.msra.mxu0 %v2710
  %3601 = vmatpush.bf16.msra.mxu0 %v2709
  %3602 = vmatmul.bf16.gmra.mxu0 %v181
  %v3603 = vpop.f32.mrf.mxu0
  %v3604 = vadd.f32 %v3591, %v3603
  %v3605 = vpop.f32.mrf.mxu0
  %3606 = vdwg.mxu0
  %3607 = vmatpush.bf16.msra.mxu0 %v2724
  %3608 = vmatpush.bf16.msra.mxu0 %v2723
  %3609 = vmatpush.bf16.msra.mxu0 %v2722
  %3610 = vmatpush.bf16.msra.mxu0 %v2721
  %3611 = vmatpush.bf16.msra.mxu0 %v2720
  %3612 = vmatpush.bf16.msra.mxu0 %v2719
  %3613 = vmatpush.bf16.msra.mxu0 %v2718
  %3614 = vmatpush.bf16.msra.mxu0 %v2717
  %3615 = vmatmul.bf16.gmra.mxu0 %v182
  %v3616 = vpop.f32.mrf.mxu0
  %v3617 = vadd.f32 %v3604, %v3616
  %v3618 = vpop.f32.mrf.mxu0
  %3619 = vdwg.mxu0
  %3620 = vmatpush.bf16.msra.mxu0 %v2732
  %3621 = vmatpush.bf16.msra.mxu0 %v2731
  %3622 = vmatpush.bf16.msra.mxu0 %v2730
  %3623 = vmatpush.bf16.msra.mxu0 %v2729
  %3624 = vmatpush.bf16.msra.mxu0 %v2728
  %3625 = vmatpush.bf16.msra.mxu0 %v2727
  %3626 = vmatpush.bf16.msra.mxu0 %v2726
  %3627 = vmatpush.bf16.msra.mxu0 %v2725
  %3628 = vmatmul.bf16.gmra.mxu0 %v183
  %v3629 = vpop.f32.mrf.mxu0
  %v3630 = vadd.f32 %v3617, %v3629
  %v3631 = vpop.f32.mrf.mxu0
  %3632 = vdwg.mxu0
  %3633 = vmatpush.bf16.msra.mxu0 %v2740
  %3634 = vmatpush.bf16.msra.mxu0 %v2739
  %3635 = vmatpush.bf16.msra.mxu0 %v2738
  %3636 = vmatpush.bf16.msra.mxu0 %v2737
  %3637 = vmatpush.bf16.msra.mxu0 %v2736
  %3638 = vmatpush.bf16.msra.mxu0 %v2735
  %3639 = vmatpush.bf16.msra.mxu0 %v2734
  %3640 = vmatpush.bf16.msra.mxu0 %v2733
  %3641 = vmatmul.bf16.gmra.mxu0 %v184
  %v3642 = vpop.f32.mrf.mxu0
  %v3643 = vadd.f32 %v3630, %v3642
  %v3644 = vpop.f32.mrf.mxu0
  %3645 = vdwg.mxu0
  %3646 = vmatpush.bf16.msra.mxu0 %v2748
  %3647 = vmatpush.bf16.msra.mxu0 %v2747
  %3648 = vmatpush.bf16.msra.mxu0 %v2746
  %3649 = vmatpush.bf16.msra.mxu0 %v2745
  %3650 = vmatpush.bf16.msra.mxu0 %v2744
  %3651 = vmatpush.bf16.msra.mxu0 %v2743
  %3652 = vmatpush.bf16.msra.mxu0 %v2742
  %3653 = vmatpush.bf16.msra.mxu0 %v2741
  %3654 = vmatmul.bf16.gmra.mxu0 %v185
  %v3655 = vpop.f32.mrf.mxu0
  %v3656 = vadd.f32 %v3643, %v3655
  %v3657 = vpop.f32.mrf.mxu0
  %3658 = vdwg.mxu0
  %3659 = vmatpush.bf16.msra.mxu0 %v2756
  %3660 = vmatpush.bf16.msra.mxu0 %v2755
  %3661 = vmatpush.bf16.msra.mxu0 %v2754
  %3662 = vmatpush.bf16.msra.mxu0 %v2753
  %3663 = vmatpush.bf16.msra.mxu0 %v2752
  %3664 = vmatpush.bf16.msra.mxu0 %v2751
  %3665 = vmatpush.bf16.msra.mxu0 %v2750
  %3666 = vmatpush.bf16.msra.mxu0 %v2749
  %3667 = vmatmul.bf16.gmra.mxu0 %v186
  %v3668 = vpop.f32.mrf.mxu0
  %v3669 = vadd.f32 %v3656, %v3668
  %v3670 = vpop.f32.mrf.mxu0
  %3671 = vdwg.mxu0
  %3672 = vmatpush.bf16.msra.mxu0 %v2764
  %3673 = vmatpush.bf16.msra.mxu0 %v2763
  %3674 = vmatpush.bf16.msra.mxu0 %v2762
  %3675 = vmatpush.bf16.msra.mxu0 %v2761
  %3676 = vmatpush.bf16.msra.mxu0 %v2760
  %3677 = vmatpush.bf16.msra.mxu0 %v2759
  %3678 = vmatpush.bf16.msra.mxu0 %v2758
  %3679 = vmatpush.bf16.msra.mxu0 %v2757
  %3680 = vmatmul.bf16.gmra.mxu0 %v187
  %v3681 = vpop.f32.mrf.mxu0
  %v3682 = vadd.f32 %v3669, %v3681
  %v3683 = vpop.f32.mrf.mxu0
  %3684 = vdwg.mxu0
  %3685 = vmatpush.bf16.msra.mxu0 %v2772
  %3686 = vmatpush.bf16.msra.mxu0 %v2771
  %3687 = vmatpush.bf16.msra.mxu0 %v2770
  %3688 = vmatpush.bf16.msra.mxu0 %v2769
  %3689 = vmatpush.bf16.msra.mxu0 %v2768
  %3690 = vmatpush.bf16.msra.mxu0 %v2767
  %3691 = vmatpush.bf16.msra.mxu0 %v2766
  %3692 = vmatpush.bf16.msra.mxu0 %v2765
  %3693 = vmatmul.bf16.gmra.mxu0 %v188
  %v3694 = vpop.f32.mrf.mxu0
  %v3695 = vadd.f32 %v3682, %v3694
  %v3696 = vpop.f32.mrf.mxu0
  %3697 = vdwg.mxu0
  %3698 = vmatpush.bf16.msra.mxu0 %v2780
  %3699 = vmatpush.bf16.msra.mxu0 %v2779
  %3700 = vmatpush.bf16.msra.mxu0 %v2778
  %3701 = vmatpush.bf16.msra.mxu0 %v2777
  %3702 = vmatpush.bf16.msra.mxu0 %v2776
  %3703 = vmatpush.bf16.msra.mxu0 %v2775
  %3704 = vmatpush.bf16.msra.mxu0 %v2774
  %3705 = vmatpush.bf16.msra.mxu0 %v2773
  %3706 = vmatmul.bf16.gmra.mxu0 %v189
  %v3707 = vpop.f32.mrf.mxu0
  %v3708 = vadd.f32 %v3695, %v3707
  %v3709 = vpop.f32.mrf.mxu0
  %3710 = vdwg.mxu0
  %3711 = vmatpush.bf16.msra.mxu0 %v2788
  %3712 = vmatpush.bf16.msra.mxu0 %v2787
  %3713 = vmatpush.bf16.msra.mxu0 %v2786
  %3714 = vmatpush.bf16.msra.mxu0 %v2785
  %3715 = vmatpush.bf16.msra.mxu0 %v2784
  %3716 = vmatpush.bf16.msra.mxu0 %v2783
  %3717 = vmatpush.bf16.msra.mxu0 %v2782
  %3718 = vmatpush.bf16.msra.mxu0 %v2781
  %3719 = vmatmul.bf16.gmra.mxu0 %v190
  %v3720 = vpop.f32.mrf.mxu0
  %v3721 = vadd.f32 %v3708, %v3720
  %v3722 = vpop.f32.mrf.mxu0
  %3723 = vdwg.mxu0
  %3724 = vmatpush.bf16.msra.mxu0 %v2796
  %3725 = vmatpush.bf16.msra.mxu0 %v2795
  %3726 = vmatpush.bf16.msra.mxu0 %v2794
  %3727 = vmatpush.bf16.msra.mxu0 %v2793
  %3728 = vmatpush.bf16.msra.mxu0 %v2792
  %3729 = vmatpush.bf16.msra.mxu0 %v2791
  %3730 = vmatpush.bf16.msra.mxu0 %v2790
  %3731 = vmatpush.bf16.msra.mxu0 %v2789
  %3732 = vmatmul.bf16.gmra.mxu0 %v191
  %v3733 = vpop.f32.mrf.mxu0
  %v3734 = vadd.f32 %v3721, %v3733
  %v3735 = vpop.f32.mrf.mxu0
  %3736 = vdwg.mxu0
  %3737 = vmatpush.bf16.msra.mxu0 %v2804
  %3738 = vmatpush.bf16.msra.mxu0 %v2803
  %3739 = vmatpush.bf16.msra.mxu0 %v2802
  %3740 = vmatpush.bf16.msra.mxu0 %v2801
  %3741 = vmatpush.bf16.msra.mxu0 %v2800
  %3742 = vmatpush.bf16.msra.mxu0 %v2799
  %3743 = vmatpush.bf16.msra.mxu0 %v2798
  %3744 = vmatpush.bf16.msra.mxu0 %v2797
  %3745 = vmatmul.bf16.gmra.mxu0 %v192
  %v3746 = vpop.f32.mrf.mxu0
  %v3747 = vadd.f32 %v3734, %v3746
  %v3748 = vpop.f32.mrf.mxu0
  %3749 = vdwg.mxu0
  %3750 = vmatpush.bf16.msra.mxu0 %v2812
  %3751 = vmatpush.bf16.msra.mxu0 %v2811
  %3752 = vmatpush.bf16.msra.mxu0 %v2810
  %3753 = vmatpush.bf16.msra.mxu0 %v2809
  %3754 = vmatpush.bf16.msra.mxu0 %v2808
  %3755 = vmatpush.bf16.msra.mxu0 %v2807
  %3756 = vmatpush.bf16.msra.mxu0 %v2806
  %3757 = vmatpush.bf16.msra.mxu0 %v2805
  %3758 = vmatmul.bf16.gmra.mxu0 %v193
  %v3759 = vpop.f32.mrf.mxu0
  %v3760 = vadd.f32 %v3747, %v3759
  %v3761 = vpop.f32.mrf.mxu0
  %3762 = vdwg.mxu0
  %3763 = vmatpush.bf16.msra.mxu0 %v2820
  %3764 = vmatpush.bf16.msra.mxu0 %v2819
  %3765 = vmatpush.bf16.msra.mxu0 %v2818
  %3766 = vmatpush.bf16.msra.mxu0 %v2817
  %3767 = vmatpush.bf16.msra.mxu0 %v2816
  %3768 = vmatpush.bf16.msra.mxu0 %v2815
  %3769 = vmatpush.bf16.msra.mxu0 %v2814
  %3770 = vmatpush.bf16.msra.mxu0 %v2813
  %3771 = vmatmul.bf16.gmra.mxu0 %v194
  %v3772 = vpop.f32.mrf.mxu0
  %v3773 = vadd.f32 %v3760, %v3772
  %v3774 = vpop.f32.mrf.mxu0
  %3775 = vdwg.mxu0
  %3776 = vmatpush.bf16.msra.mxu0 %v2828
  %3777 = vmatpush.bf16.msra.mxu0 %v2827
  %3778 = vmatpush.bf16.msra.mxu0 %v2826
  %3779 = vmatpush.bf16.msra.mxu0 %v2825
  %3780 = vmatpush.bf16.msra.mxu0 %v2824
  %3781 = vmatpush.bf16.msra.mxu0 %v2823
  %3782 = vmatpush.bf16.msra.mxu0 %v2822
  %3783 = vmatpush.bf16.msra.mxu0 %v2821
  %3784 = vmatmul.bf16.gmra.mxu0 %v195
  %v3785 = vpop.f32.mrf.mxu0
  %v3786 = vadd.f32 %v3773, %v3785
  %v3787 = vpop.f32.mrf.mxu0
  %3788 = vdwg.mxu0
  %3789 = vmatpush.bf16.msra.mxu0 %v2836
  %3790 = vmatpush.bf16.msra.mxu0 %v2835
  %3791 = vmatpush.bf16.msra.mxu0 %v2834
  %3792 = vmatpush.bf16.msra.mxu0 %v2833
  %3793 = vmatpush.bf16.msra.mxu0 %v2832
  %3794 = vmatpush.bf16.msra.mxu0 %v2831
  %3795 = vmatpush.bf16.msra.mxu0 %v2830
  %3796 = vmatpush.bf16.msra.mxu0 %v2829
  %3797 = vmatmul.bf16.gmra.mxu0 %v196
  %v3798 = vpop.f32.mrf.mxu0
  %v3799 = vadd.f32 %v3786, %v3798
  %v3800 = vpop.f32.mrf.mxu0
  %3801 = vdwg.mxu0
  %3802 = vmatpush.bf16.msra.mxu0 %v2844
  %3803 = vmatpush.bf16.msra.mxu0 %v2843
  %3804 = vmatpush.bf16.msra.mxu0 %v2842
  %3805 = vmatpush.bf16.msra.mxu0 %v2841
  %3806 = vmatpush.bf16.msra.mxu0 %v2840
  %3807 = vmatpush.bf16.msra.mxu0 %v2839
  %3808 = vmatpush.bf16.msra.mxu0 %v2838
  %3809 = vmatpush.bf16.msra.mxu0 %v2837
  %3810 = vmatmul.bf16.gmra.mxu0 %v197
  %v3811 = vpop.f32.mrf.mxu0
  %v3812 = vadd.f32 %v3799, %v3811
  %v3813 = vpop.f32.mrf.mxu0
  %3814 = vdwg.mxu0
  %3815 = vmatpush.bf16.msra.mxu0 %v2852
  %3816 = vmatpush.bf16.msra.mxu0 %v2851
  %3817 = vmatpush.bf16.msra.mxu0 %v2850
  %3818 = vmatpush.bf16.msra.mxu0 %v2849
  %3819 = vmatpush.bf16.msra.mxu0 %v2848
  %3820 = vmatpush.bf16.msra.mxu0 %v2847
  %3821 = vmatpush.bf16.msra.mxu0 %v2846
  %3822 = vmatpush.bf16.msra.mxu0 %v2845
  %3823 = vmatmul.bf16.gmra.mxu0 %v198
  %v3824 = vpop.f32.mrf.mxu0
  %v3825 = vadd.f32 %v3812, %v3824
  %v3826 = vpop.f32.mrf.mxu0
  %3827 = vdwg.mxu0
  %3828 = vmatpush.bf16.msra.mxu0 %v2860
  %3829 = vmatpush.bf16.msra.mxu0 %v2859
  %3830 = vmatpush.bf16.msra.mxu0 %v2858
  %3831 = vmatpush.bf16.msra.mxu0 %v2857
  %3832 = vmatpush.bf16.msra.mxu0 %v2856
  %3833 = vmatpush.bf16.msra.mxu0 %v2855
  %3834 = vmatpush.bf16.msra.mxu0 %v2854
  %3835 = vmatpush.bf16.msra.mxu0 %v2853
  %3836 = vmatmul.bf16.gmra.mxu0 %v199
  %v3837 = vpop.f32.mrf.mxu0
  %v3838 = vadd.f32 %v3825, %v3837
  %v3839 = vpop.f32.mrf.mxu0
  %3840 = vdwg.mxu0
  %3841 = vmatpush.bf16.msra.mxu0 %v2868
  %3842 = vmatpush.bf16.msra.mxu0 %v2867
  %3843 = vmatpush.bf16.msra.mxu0 %v2866
  %3844 = vmatpush.bf16.msra.mxu0 %v2865
  %3845 = vmatpush.bf16.msra.mxu0 %v2864
  %3846 = vmatpush.bf16.msra.mxu0 %v2863
  %3847 = vmatpush.bf16.msra.mxu0 %v2862
  %3848 = vmatpush.bf16.msra.mxu0 %v2861
  %3849 = vmatmul.bf16.gmra.mxu0 %v200
  %v3850 = vpop.f32.mrf.mxu0
  %v3851 = vadd.f32 %v3838, %v3850
  %v3852 = vpop.f32.mrf.mxu0
  %3853 = vdwg.mxu0
  %3854 = vmatpush.bf16.msra.mxu0 %v2876
  %3855 = vmatpush.bf16.msra.mxu0 %v2875
  %3856 = vmatpush.bf16.msra.mxu0 %v2874
  %3857 = vmatpush.bf16.msra.mxu0 %v2873
  %3858 = vmatpush.bf16.msra.mxu0 %v2872
  %3859 = vmatpush.bf16.msra.mxu0 %v2871
  %3860 = vmatpush.bf16.msra.mxu0 %v2870
  %3861 = vmatpush.bf16.msra.mxu0 %v2869
  %3862 = vmatmul.bf16.gmra.mxu0 %v201
  %v3863 = vpop.f32.mrf.mxu0
  %v3864 = vadd.f32 %v3851, %v3863
  %v3865 = vpop.f32.mrf.mxu0
  %3866 = vdwg.mxu0
  %3867 = vmatpush.bf16.msra.mxu0 %v2884
  %3868 = vmatpush.bf16.msra.mxu0 %v2883
  %3869 = vmatpush.bf16.msra.mxu0 %v2882
  %3870 = vmatpush.bf16.msra.mxu0 %v2881
  %3871 = vmatpush.bf16.msra.mxu0 %v2880
  %3872 = vmatpush.bf16.msra.mxu0 %v2879
  %3873 = vmatpush.bf16.msra.mxu0 %v2878
  %3874 = vmatpush.bf16.msra.mxu0 %v2877
  %3875 = vmatmul.bf16.gmra.mxu0 %v202
  %v3876 = vpop.f32.mrf.mxu0
  %v3877 = vadd.f32 %v3864, %v3876
  %v3878 = vpop.f32.mrf.mxu0
  %3879 = vdwg.mxu0
  %3880 = vmatpush.bf16.msra.mxu0 %v2892
  %3881 = vmatpush.bf16.msra.mxu0 %v2891
  %3882 = vmatpush.bf16.msra.mxu0 %v2890
  %3883 = vmatpush.bf16.msra.mxu0 %v2889
  %3884 = vmatpush.bf16.msra.mxu0 %v2888
  %3885 = vmatpush.bf16.msra.mxu0 %v2887
  %3886 = vmatpush.bf16.msra.mxu0 %v2886
  %3887 = vmatpush.bf16.msra.mxu0 %v2885
  %3888 = vmatmul.bf16.gmra.mxu0 %v203
  %v3889 = vpop.f32.mrf.mxu0
  %v3890 = vadd.f32 %v3877, %v3889
  %v3891 = vpop.f32.mrf.mxu0
  %3892 = vdwg.mxu0
  %3893 = vmatpush.bf16.msra.mxu0 %v2900
  %3894 = vmatpush.bf16.msra.mxu0 %v2899
  %3895 = vmatpush.bf16.msra.mxu0 %v2898
  %3896 = vmatpush.bf16.msra.mxu0 %v2897
  %3897 = vmatpush.bf16.msra.mxu0 %v2896
  %3898 = vmatpush.bf16.msra.mxu0 %v2895
  %3899 = vmatpush.bf16.msra.mxu0 %v2894
  %3900 = vmatpush.bf16.msra.mxu0 %v2893
  %3901 = vmatmul.bf16.gmra.mxu0 %v204
  %v3902 = vpop.f32.mrf.mxu0
  %v3903 = vadd.f32 %v3890, %v3902
  %v3904 = vpop.f32.mrf.mxu0
  %3905 = vdwg.mxu0
  %3906 = vmatpush.bf16.msra.mxu0 %v2908
  %3907 = vmatpush.bf16.msra.mxu0 %v2907
  %3908 = vmatpush.bf16.msra.mxu0 %v2906
  %3909 = vmatpush.bf16.msra.mxu0 %v2905
  %3910 = vmatpush.bf16.msra.mxu0 %v2904
  %3911 = vmatpush.bf16.msra.mxu0 %v2903
  %3912 = vmatpush.bf16.msra.mxu0 %v2902
  %3913 = vmatpush.bf16.msra.mxu0 %v2901
  %3914 = vmatmul.bf16.gmra.mxu0 %v205
  %v3915 = vpop.f32.mrf.mxu0
  %v3916 = vadd.f32 %v3903, %v3915
  %v3917 = vpop.f32.mrf.mxu0
  %3918 = vdwg.mxu0
  %3919 = vmatpush.bf16.msra.mxu0 %v2916
  %3920 = vmatpush.bf16.msra.mxu0 %v2915
  %3921 = vmatpush.bf16.msra.mxu0 %v2914
  %3922 = vmatpush.bf16.msra.mxu0 %v2913
  %3923 = vmatpush.bf16.msra.mxu0 %v2912
  %3924 = vmatpush.bf16.msra.mxu0 %v2911
  %3925 = vmatpush.bf16.msra.mxu0 %v2910
  %3926 = vmatpush.bf16.msra.mxu0 %v2909
  %3927 = vmatmul.bf16.gmra.mxu0 %v206
  %v3928 = vpop.f32.mrf.mxu0
  %v3929 = vadd.f32 %v3916, %v3928
  %v3930 = vpop.f32.mrf.mxu0
  %3931 = vdwg.mxu0
  %3932 = vmatpush.bf16.msra.mxu0 %v2924
  %3933 = vmatpush.bf16.msra.mxu0 %v2923
  %3934 = vmatpush.bf16.msra.mxu0 %v2922
  %3935 = vmatpush.bf16.msra.mxu0 %v2921
  %3936 = vmatpush.bf16.msra.mxu0 %v2920
  %3937 = vmatpush.bf16.msra.mxu0 %v2919
  %3938 = vmatpush.bf16.msra.mxu0 %v2918
  %3939 = vmatpush.bf16.msra.mxu0 %v2917
  %3940 = vmatmul.bf16.gmra.mxu0 %v207
  %v3941 = vpop.f32.mrf.mxu0
  %v3942 = vadd.f32 %v3929, %v3941
  %v3943 = vpop.f32.mrf.mxu0
  %3944 = vdwg.mxu0
  %3945 = vmatpush.bf16.msra.mxu0 0
  %3946 = vmatpush.bf16.msra.mxu0 0
  %3947 = vmatpush.bf16.msra.mxu0 0
  %3948 = vmatpush.bf16.msra.mxu0 0
  %3949 = vmatpush.bf16.msra.mxu0 %v2928
  %3950 = vmatpush.bf16.msra.mxu0 %v2927
  %3951 = vmatpush.bf16.msra.mxu0 %v2926
  %3952 = vmatpush.bf16.msra.mxu0 %v2925
  %3953 = vmatmul.bf16.gmra.mxu0 %v3319
  %v3954 = vpop.f32.mrf.mxu0
  %v3955 = vadd.f32 %v3942, %v3954
  %v3956 = vpop.f32.mrf.mxu0
  %3957 = vdwg.mxu0
  %v3958 = vmul.f32 %v3955, 0.5
  %v3959 = vmul.f32 %v3955, 0.70710677
  %v3960 = vand.u32 2147483647, %v3959
  %v3961 = vmul.f32 %v3960, 0.3275911
  %v3962 = vadd.f32 %v3961, 1.0
  %v3963 = vrcp.pop %v3962
  %v3964 = vmul.f32 %v3962, %v3963
  %v3965 = vsub.f32 1.0, %v3964
  %v3966 = vmul.f32 %v3963, %v3965
  %v3967 = vadd.f32 %v3963, %v3966
  %vm3968 = vweird.f32 %v3962
  %vm3969 = vweird.f32 %v3963
  %vm3970 = vmor %vm3968, %vm3969
  %v3971 = vsel %vm3970, %v3963, %v3967
  %v3972 = vand.u32 2147483647, %v3962
  %vm3973 = vcmp.eq.f32.partialorder %v3972, 8.507059e+37
  %v3974 = vand.u32 %v3962, 2147483648
  %v3975 = vor.u32 1.1754944e-38, %v3974
  %v3976 = vsel %vm3973, %v3975, %v3971
  %v3977 = vmul.f32 1.0, %v3976
  %v3978 = vmul.f32 %v3977, 1.0614054
  %v3979 = vadd.f32 %v3978, -1.4531521
  %v3980 = vmul.f32 %v3977, %v3979
  %v3981 = vadd.f32 %v3980, 1.4214138
  %v3982 = vmul.f32 %v3977, %v3981
  %v3983 = vadd.f32 %v3982, -0.28449672
  %v3984 = vmul.f32 %v3977, %v3983
  %v3985 = vadd.f32 %v3984, 0.2548296
  %v3986 = vmul.f32 %v3977, %v3985
  %v3987 = vsub.f32 0.0, %v3960
  %v3988 = vmul.f32 %v3987, %v3960
  %v3989 = vmul.f32 %v3988, 1.442695
  %v3990 = vpow.pop %v3989
  %v3991 = vmul.f32 %v3986, %v3990
  %v3992 = vsub.f32 1.0, %v3991
  %vm3993 = vcmp.lt.f32.partialorder %v3959, 0.0
  %v3994 = vsub.f32 0.0, %v3992
  %v3995 = vsel %vm3993, %v3994, %v3992
  %v3996 = vadd.f32 %v3995, 1.0
  %v3997 = vmul.f32 %v3958, %v3996
  %v3998 = vld [vmem:[%s3] sm:$0x1]
  %v4000 = vperm.slane %v3998, 0
  %v4002 = vmul.f32 %v3997, %v4000
  %vm4003 = vcmask 517120
  %v4004 = vsel %vm4003, %v4002, 0.0
  %4005 = vadd.xlane.f32.xlu0 %v4004
  %v4006 = vpop.xlane.xlu0 %4005
  %s4007 = sld [smem:[#allocation2]]
  %v4008 = vstv %s4007
  %v4009 = vadd.f32 %v4006, %v4008
  %vm4010 = vcmask 1024
  %4011 = vst.msk [vmem:[%s5] sm:$0x3] %vm4010, %v4009
  // Predicated region
  $region22: #{polar_area_regressor.1} parent=0 // pred_check
    _
  $region23: #{polar_area_regressor.1} parent=0 // pred_check_branch
    %4013 = sbr.rel (0) target = $region25
  $region24: #{polar_area_regressor.1} parent=0 // pred_region
    _
  $region25: #{polar_area_regressor.1} parent=0 // pred_fallthru
    _
  // Predicated region
  $region26: #{polar_area_regressor.1} parent=0 // pred_check
    _
  $region27: #{polar_area_regressor.1} parent=0 // pred_check_branch
    %4015 = sbr.rel (0) target = $region29
  $region28: #{polar_area_regressor.1} parent=0 // pred_region
    _
  $region29: #{polar_area_regressor.1} parent=0 // pred_fallthru
    _

</llo_original>
